<compile_context>
chip_gen: v7x
topology: tpu7x:2x2x1
jax: 0.10.0
libtpu: 0.0.40
codegen_flags: <defaults>
</compile_context>

<pallas_src>
import numpy as np
import jax
import jax.numpy as jnp
from jax.experimental import pallas as pl
from jax.experimental.pallas import tpu as pltpu

IN_CHANNELS = 16          # small synthetic channel count (original Inception used 512)
N_CLASSES = 10
H = W = 14                # AvgPool2d(5, stride=3): 14 -> 4, so flatten = 4*4*128 = 2048
POOL_K, POOL_S = 5, 3
POOL_OUT = 4
N_POOL = POOL_OUT * POOL_OUT          # 16 pooled positions
CONV_OUT = 128
FC_IN = N_POOL * CONV_OUT             # 2048
FC_HIDDEN = 1024
N_CORES = 2                           # leading "parallel" grid axis (megacore shard on v7x)
FC_TILE = 256                         # hidden tile; 1 MiB bf16 w1 blocks
TILES_PER_CORE = FC_HIDDEN // (N_CORES * FC_TILE)   # 2
LOGIT_PAD = 128                       # pad 10 logits to a full lane width
BN_EPS = 1e-5


# ----------------------------- pooling matrices --------------------------------

def _pool_matrix():
    """(16, 196) matrix implementing AvgPool2d(kernel=5, stride=3) on a 14x14 map."""
    P = np.zeros((N_POOL, H * W), dtype=np.float32)
    for oh in range(POOL_OUT):
        for ow in range(POOL_OUT):
            p = oh * POOL_OUT + ow
            for kh in range(POOL_K):
                for kw in range(POOL_K):
                    P[p, (oh * POOL_S + kh) * W + (ow * POOL_S + kw)] = 1.0 / (POOL_K * POOL_K)
    return P


def _pool_matrix_batched(n, b_pad):
    """Block-diagonal pool matrix, rows ordered (pool_pos-major, batch-minor), batch padded
    to b_pad rows per pool position so every slice in the kernel is 8-sublane aligned."""
    P = _pool_matrix()
    M = np.zeros((N_POOL * b_pad, n * H * W), dtype=np.float32)
    for p in range(N_POOL):
        for b in range(n):
            M[p * b_pad + b, b * H * W:(b + 1) * H * W] = P[p]
    return jnp.asarray(M)


# ----------------------------- fused Pallas kernel ------------------------------

def _make_fused_kernel(b_pad):
    def kernel(x_ref, pmat_ref, wc_ref, bc_ref, w1_ref, b1_ref, w2_ref,
               o_ref, feats_ref):
        t = pl.program_id(1)          # hidden-tile index within this core's shard

        @pl.when(t == 0)
        def _():
            # AvgPool2d(5,3) as one block-diagonal matmul over the flattened batch.
            pooled = jnp.dot(pmat_ref[...], x_ref[...],
                             preferred_element_type=jnp.float32)          # (16*b_pad, C)
            # 1x1 conv with eval-mode BN and conv bias folded in; ReLU afterwards.
            conv = jnp.dot(pooled, wc_ref[...],
                           preferred_element_type=jnp.float32)            # (16*b_pad, 128)
            y = jnp.maximum(conv + bc_ref[...], 0.0)
            # Scatter (pool_pos p, batch n, channel c) -> feats[n, p*128 + c]; w1 rows were
            # pre-permuted to this ordering, so it matches PyTorch's view(-1, 4*4*128).
            for p in range(N_POOL):
                feats_ref[:, p * CONV_OUT:(p + 1) * CONV_OUT] = (
                    y[p * b_pad:(p + 1) * b_pad, :].astype(feats_ref.dtype))
            # Initialize this core's resident partial-logits accumulator.
            o_ref[...] = jnp.zeros_like(o_ref)

        # FC stage, tiled over this core's slice of the hidden dimension:
        # partial Linear(2048,1024)+ReLU, then the matching slice of Linear(1024, n_classes)
        # accumulated into the resident partial logits.
        h = jnp.dot(feats_ref[...], w1_ref[...],
                    preferred_element_type=jnp.float32) + b1_ref[...]
        h = jnp.maximum(h, 0.0)
        # TODO(synk): Dropout(p=0.7) is identity in eval mode; training-mode RNG mask not reproduced.
        o_ref[...] += jnp.dot(h.astype(jnp.bfloat16), w2_ref[...],
                              preferred_element_type=jnp.float32)

    return kernel


# ------------------------------- wrapper ----------------------------------------

def inception_auxiliary(x_nchw, kparams):
    N, C, h, w = x_nchw.shape
    assert (h, w) == (H, W) and C == IN_CHANNELS
    HW = h * w
    b_pad = ((N + 7) // 8) * 8                      # pad batch to a sublane multiple

    # NCHW -> (N*H*W, C): channels-last so C sits on lanes; single cheap XLA transpose.
    x_flat = jnp.transpose(x_nchw, (0, 2, 3, 1)).reshape(N * HW, C)
    pmat = _pool_matrix_batched(N, b_pad)           # (16*b_pad, N*HW)

    partials = pl.pallas_call(
        _make_fused_kernel(b_pad),
        out_shape=jax.ShapeDtypeStruct((N_CORES * b_pad, LOGIT_PAD), jnp.float32),
        grid_spec=pltpu.PrefetchScalarGridSpec(
            num_scalar_prefetch=0,
            grid=(N_CORES, TILES_PER_CORE),
            in_specs=[
                pl.BlockSpec((N * HW, C), lambda c, t: (0, 0)),              # x (fetched once)
                pl.BlockSpec((N_POOL * b_pad, N * HW), lambda c, t: (0, 0)), # pool matrix
                pl.BlockSpec((C, CONV_OUT), lambda c, t: (0, 0)),            # folded conv weight
                pl.BlockSpec((1, CONV_OUT), lambda c, t: (0, 0)),            # folded conv/BN bias
                pl.BlockSpec((FC_IN, FC_TILE),                               # w1 tile (bf16)
                             lambda c, t: (0, c * TILES_PER_CORE + t)),
                pl.BlockSpec((1, FC_TILE),                                   # b1 tile
                             lambda c, t: (0, c * TILES_PER_CORE + t)),
                pl.BlockSpec((FC_TILE, LOGIT_PAD),                           # w2 tile (bf16, padded)
                             lambda c, t: (c * TILES_PER_CORE + t, 0)),
            ],
            out_specs=pl.BlockSpec((b_pad, LOGIT_PAD), lambda c, t: (c, 0)), # per-core accumulator
            scratch_shapes=[pltpu.VMEM((b_pad, FC_IN), jnp.bfloat16)],       # feats (per core)
        ),
        compiler_params=pltpu.CompilerParams(
            dimension_semantics=("parallel", "arbitrary")),
    )(x_flat, pmat, kparams["conv_w"], kparams["conv_b"],
      kparams["w1"], kparams["b1"], kparams["w2"])

    # Combine the two hidden-dimension partial sums and add the classifier bias.
    logits = partials.reshape(N_CORES, b_pad, LOGIT_PAD).sum(axis=0)
    return logits[:N, :N_CLASSES] + kparams["b2"][None, :]


# --------------------------- params (torch-style) & kernel prep ------------------

def init_params(key):
    """PyTorch-convention parameters (used directly by the reference)."""
    ks = jax.random.split(key, 8)
    return {
        "conv_w": 0.05 * jax.random.normal(ks[0], (CONV_OUT, IN_CHANNELS), jnp.float32),  # (out,in)
        "conv_b": 0.05 * jax.random.normal(ks[1], (CONV_OUT,), jnp.float32),
        "bn_gamma": 1.0 + 0.05 * jax.random.normal(ks[2], (CONV_OUT,), jnp.float32),
        "bn_beta": 0.05 * jax.random.normal(ks[3], (CONV_OUT,), jnp.float32),
        "bn_mean": jnp.zeros((CONV_OUT,), jnp.float32),   # eval-mode running stats (fresh init)
        "bn_var": jnp.ones((CONV_OUT,), jnp.float32),
        "w1": 0.02 * jax.random.normal(ks[4], (FC_HIDDEN, FC_IN), jnp.float32),   # Linear (out,in)
        "b1": 0.02 * jax.random.normal(ks[5], (FC_HIDDEN,), jnp.float32),
        "w2": 0.02 * jax.random.normal(ks[6], (N_CLASSES, FC_HIDDEN), jnp.float32),
        "b2": 0.02 * jax.random.normal(ks[7], (N_CLASSES,), jnp.float32),
    }


def prepare_kernel_params(p):
    """Fold eval-mode BN into the conv, permute w1 rows to the kernel feature layout,
    pad the classifier weight to 128 lanes, and cast the big FC weights to bf16."""
    scale = p["bn_gamma"] * jax.lax.rsqrt(p["bn_var"] + BN_EPS)                 # (128,)
    conv_w = (p["conv_w"] * scale[:, None]).T                                   # (C, 128), f32 (tiny)
    conv_b = ((p["conv_b"] - p["bn_mean"]) * scale + p["bn_beta"]).reshape(1, CONV_OUT)

    # kernel feature index k = p*128 + c  <->  torch index c*16 + p
    perm = np.arange(FC_IN).reshape(CONV_OUT, N_POOL).T.reshape(-1)
    w1 = p["w1"].T[perm, :].astype(jnp.bfloat16)                                # (2048, 1024)
    b1 = p["b1"].reshape(1, FC_HIDDEN)

    w2 = jnp.zeros((FC_HIDDEN, LOGIT_PAD), jnp.float32)
    w2 = w2.at[:, :N_CLASSES].set(p["w2"].T).astype(jnp.bfloat16)               # (1024, 128)

    return {"conv_w": conv_w, "conv_b": conv_b, "w1": w1, "b1": b1,
            "w2": w2, "b2": p["b2"]}


# ------------------------------- pure-JAX reference ------------------------------

def reference(x_nchw, p):
    """Pure-JAX reference with PyTorch (eval-mode) semantics and torch-layout params."""
    N = x_nchw.shape[0]
    pooled = jnp.stack([
        jnp.stack([
            jnp.mean(x_nchw[:, :, oh * POOL_S:oh * POOL_S + POOL_K,
                            ow * POOL_S:ow * POOL_S + POOL_K], axis=(2, 3))
            for ow in range(POOL_OUT)], axis=-1)
        for oh in range(POOL_OUT)], axis=-2)                                  # (N, C, 4, 4)
    conv = jnp.einsum("nchw,oc->nohw", pooled, p["conv_w"]) + p["conv_b"][None, :, None, None]
    inv = jax.lax.rsqrt(p["bn_var"] + BN_EPS)
    y = (conv - p["bn_mean"][None, :, None, None]) * (inv * p["bn_gamma"])[None, :, None, None] \
        + p["bn_beta"][None, :, None, None]
    y = jnp.maximum(y, 0.0)
    feats = y.reshape(N, FC_IN)                                               # torch view ordering
    h = jnp.maximum(feats @ p["w1"].T + p["b1"], 0.0)
    return h @ p["w2"].T + p["b2"]


if __name__ == "__main__":
    key = jax.random.PRNGKey(0)
    k_x, k_p = jax.random.split(key)
    x = jax.random.normal(k_x, (2, IN_CHANNELS, H, W), jnp.float32)   # NCHW like PyTorch
    params = init_params(k_p)
    kparams = prepare_kernel_params(params)

    out = inception_auxiliary(x, kparams)
    out = jax.block_until_ready(out)

    ref = reference(x, params)
    assert out.shape == (2, N_CLASSES), out.shape
    max_err = float(jnp.max(jnp.abs(out - ref)))
    if max_err > 2e-2:
        raise AssertionError(f"Pallas kernel mismatch vs reference, max_err={max_err}")
    print("KERNEL_OK")
</pallas_src>

<mosaic_0001>
module attributes {stable_mosaic.version = 11 : i64} {
  func.func @kernel(%arg0: i32, %arg1: i32, %arg2: memref<392x16xf32, #tpu.memory_space<vmem>>, %arg3: memref<128x392xf32, #tpu.memory_space<vmem>>, %arg4: memref<16x128xf32, #tpu.memory_space<vmem>>, %arg5: memref<1x128xf32, #tpu.memory_space<vmem>>, %arg6: memref<2048x256xbf16, #tpu.memory_space<vmem>>, %arg7: memref<1x256xf32, #tpu.memory_space<vmem>>, %arg8: memref<256x128xbf16, #tpu.memory_space<vmem>>, %arg9: memref<8x128xf32, #tpu.memory_space<vmem>>, %arg10: memref<8x2048xbf16, #tpu.memory_space<vmem>>) attributes {dimension_semantics = [#tpu.dimension_semantics<parallel>, #tpu.dimension_semantics<arbitrary>], iteration_bounds = array<i64: 2, 2>, scalar_prefetch = 0 : i64, scratch_operands = 1 : i64, tpu.core_type = #tpu.core_type<tc>, window_params = [{pipeline_mode = #tpu.pipeline_mode<synchronous>, transform_indices = @transform_0, window_bounds = array<i64: 392, 16>}, {pipeline_mode = #tpu.pipeline_mode<synchronous>, transform_indices = @transform_1, window_bounds = array<i64: 128, 392>}, {pipeline_mode = #tpu.pipeline_mode<synchronous>, transform_indices = @transform_2, window_bounds = array<i64: 16, 128>}, {pipeline_mode = #tpu.pipeline_mode<synchronous>, transform_indices = @transform_3, window_bounds = array<i64: 1, 128>}, {transform_indices = @transform_4, window_bounds = array<i64: 2048, 256>}, {transform_indices = @transform_5, window_bounds = array<i64: 1, 256>}, {transform_indices = @transform_6, window_bounds = array<i64: 256, 128>}, {transform_indices = @transform_7, window_bounds = array<i64: 8, 128>}]} {
    %c0_i32 = arith.constant 0 : i32
    %0 = arith.cmpi eq, %arg1, %c0_i32 : i32
    %1 = arith.extui %0 : i1 to i32
    %c0_i32_0 = arith.constant 0 : i32
    %2 = arith.cmpi ne, %1, %c0_i32_0 : i32
    scf.if %2 {
      %c0_14 = arith.constant 0 : index
      %c0_15 = arith.constant 0 : index
      %17 = vector.load %arg3[%c0_14, %c0_15] : memref<128x392xf32, #tpu.memory_space<vmem>>, vector<128x392xf32>
      %c0_16 = arith.constant 0 : index
      %c0_17 = arith.constant 0 : index
      %18 = vector.load %arg2[%c0_16, %c0_17] : memref<392x16xf32, #tpu.memory_space<vmem>>, vector<392x16xf32>
      %cst_18 = arith.constant dense<0.000000e+00> : vector<128x16xf32>
      %19 = tpu.matmul %17, %18, %cst_18 {dimension_numbers = #tpu.dot_dimension_numbers<[1], [0], [0], [1], [0, 0, 1, 1], [], []>} : vector<128x392xf32>, vector<392x16xf32>, vector<128x16xf32> -> vector<128x16xf32>
      %c0_19 = arith.constant 0 : index
      %c0_20 = arith.constant 0 : index
      %20 = vector.load %arg4[%c0_19, %c0_20] : memref<16x128xf32, #tpu.memory_space<vmem>>, vector<16x128xf32>
      %cst_21 = arith.constant dense<0.000000e+00> : vector<128x128xf32>
      %21 = tpu.matmul %19, %20, %cst_21 {dimension_numbers = #tpu.dot_dimension_numbers<[1], [0], [0], [1], [0, 0, 1, 1], [], []>} : vector<128x16xf32>, vector<16x128xf32>, vector<128x128xf32> -> vector<128x128xf32>
      %c0_22 = arith.constant 0 : index
      %c0_23 = arith.constant 0 : index
      %22 = vector.load %arg5[%c0_22, %c0_23] : memref<1x128xf32, #tpu.memory_space<vmem>>, vector<1x128xf32>
      %23 = vector.broadcast %22 : vector<1x128xf32> to vector<128x128xf32>
      %24 = arith.addf %21, %23 : vector<128x128xf32>
      %cst_24 = arith.constant 0.000000e+00 : f32
      %25 = vector.broadcast %cst_24 : f32 to vector<128x128xf32>
      %26 = arith.maximumf %24, %25 : vector<128x128xf32>
      %27 = vector.extract_strided_slice %26 {offsets = [0, 0], sizes = [8, 128], strides = [1, 1]} : vector<128x128xf32> to vector<8x128xf32>
      %28 = arith.truncf %27 : vector<8x128xf32> to vector<8x128xbf16>
      %c0_25 = arith.constant 0 : index
      %c0_26 = arith.constant 0 : index
      %29 = vector.load %arg10[%c0_25, %c0_26] : memref<8x2048xbf16, #tpu.memory_space<vmem>>, vector<8x128xbf16>
      tpu.vector_store %arg10[%c0_25, %c0_26], %28 {strides = array<i32>} : memref<8x2048xbf16, #tpu.memory_space<vmem>>, vector<8x128xbf16>,
      %30 = vector.extract_strided_slice %26 {offsets = [8, 0], sizes = [8, 128], strides = [1, 1]} : vector<128x128xf32> to vector<8x128xf32>
      %31 = arith.truncf %30 : vector<8x128xf32> to vector<8x128xbf16>
      %c0_27 = arith.constant 0 : index
      %c128 = arith.constant 128 : index
      %32 = vector.load %arg10[%c0_27, %c128] : memref<8x2048xbf16, #tpu.memory_space<vmem>>, vector<8x128xbf16>
      tpu.vector_store %arg10[%c0_27, %c128], %31 {strides = array<i32>} : memref<8x2048xbf16, #tpu.memory_space<vmem>>, vector<8x128xbf16>,
      %33 = vector.extract_strided_slice %26 {offsets = [16, 0], sizes = [8, 128], strides = [1, 1]} : vector<128x128xf32> to vector<8x128xf32>
      %34 = arith.truncf %33 : vector<8x128xf32> to vector<8x128xbf16>
      %c0_28 = arith.constant 0 : index
      %c256 = arith.constant 256 : index
      %35 = vector.load %arg10[%c0_28, %c256] : memref<8x2048xbf16, #tpu.memory_space<vmem>>, vector<8x128xbf16>
      tpu.vector_store %arg10[%c0_28, %c256], %34 {strides = array<i32>} : memref<8x2048xbf16, #tpu.memory_space<vmem>>, vector<8x128xbf16>,
      %36 = vector.extract_strided_slice %26 {offsets = [24, 0], sizes = [8, 128], strides = [1, 1]} : vector<128x128xf32> to vector<8x128xf32>
      %37 = arith.truncf %36 : vector<8x128xf32> to vector<8x128xbf16>
      %c0_29 = arith.constant 0 : index
      %c384 = arith.constant 384 : index
      %38 = vector.load %arg10[%c0_29, %c384] : memref<8x2048xbf16, #tpu.memory_space<vmem>>, vector<8x128xbf16>
      tpu.vector_store %arg10[%c0_29, %c384], %37 {strides = array<i32>} : memref<8x2048xbf16, #tpu.memory_space<vmem>>, vector<8x128xbf16>,
      %39 = vector.extract_strided_slice %26 {offsets = [32, 0], sizes = [8, 128], strides = [1, 1]} : vector<128x128xf32> to vector<8x128xf32>
      %40 = arith.truncf %39 : vector<8x128xf32> to vector<8x128xbf16>
      %c0_30 = arith.constant 0 : index
      %c512 = arith.constant 512 : index
      %41 = vector.load %arg10[%c0_30, %c512] : memref<8x2048xbf16, #tpu.memory_space<vmem>>, vector<8x128xbf16>
      tpu.vector_store %arg10[%c0_30, %c512], %40 {strides = array<i32>} : memref<8x2048xbf16, #tpu.memory_space<vmem>>, vector<8x128xbf16>,
      %42 = vector.extract_strided_slice %26 {offsets = [40, 0], sizes = [8, 128], strides = [1, 1]} : vector<128x128xf32> to vector<8x128xf32>
      %43 = arith.truncf %42 : vector<8x128xf32> to vector<8x128xbf16>
      %c0_31 = arith.constant 0 : index
      %c640 = arith.constant 640 : index
      %44 = vector.load %arg10[%c0_31, %c640] : memref<8x2048xbf16, #tpu.memory_space<vmem>>, vector<8x128xbf16>
      tpu.vector_store %arg10[%c0_31, %c640], %43 {strides = array<i32>} : memref<8x2048xbf16, #tpu.memory_space<vmem>>, vector<8x128xbf16>,
      %45 = vector.extract_strided_slice %26 {offsets = [48, 0], sizes = [8, 128], strides = [1, 1]} : vector<128x128xf32> to vector<8x128xf32>
      %46 = arith.truncf %45 : vector<8x128xf32> to vector<8x128xbf16>
      %c0_32 = arith.constant 0 : index
      %c768 = arith.constant 768 : index
      %47 = vector.load %arg10[%c0_32, %c768] : memref<8x2048xbf16, #tpu.memory_space<vmem>>, vector<8x128xbf16>
      tpu.vector_store %arg10[%c0_32, %c768], %46 {strides = array<i32>} : memref<8x2048xbf16, #tpu.memory_space<vmem>>, vector<8x128xbf16>,
      %48 = vector.extract_strided_slice %26 {offsets = [56, 0], sizes = [8, 128], strides = [1, 1]} : vector<128x128xf32> to vector<8x128xf32>
      %49 = arith.truncf %48 : vector<8x128xf32> to vector<8x128xbf16>
      %c0_33 = arith.constant 0 : index
      %c896 = arith.constant 896 : index
      %50 = vector.load %arg10[%c0_33, %c896] : memref<8x2048xbf16, #tpu.memory_space<vmem>>, vector<8x128xbf16>
      tpu.vector_store %arg10[%c0_33, %c896], %49 {strides = array<i32>} : memref<8x2048xbf16, #tpu.memory_space<vmem>>, vector<8x128xbf16>,
      %51 = vector.extract_strided_slice %26 {offsets = [64, 0], sizes = [8, 128], strides = [1, 1]} : vector<128x128xf32> to vector<8x128xf32>
      %52 = arith.truncf %51 : vector<8x128xf32> to vector<8x128xbf16>
      %c0_34 = arith.constant 0 : index
      %c1024 = arith.constant 1024 : index
      %53 = vector.load %arg10[%c0_34, %c1024] : memref<8x2048xbf16, #tpu.memory_space<vmem>>, vector<8x128xbf16>
      tpu.vector_store %arg10[%c0_34, %c1024], %52 {strides = array<i32>} : memref<8x2048xbf16, #tpu.memory_space<vmem>>, vector<8x128xbf16>,
      %54 = vector.extract_strided_slice %26 {offsets = [72, 0], sizes = [8, 128], strides = [1, 1]} : vector<128x128xf32> to vector<8x128xf32>
      %55 = arith.truncf %54 : vector<8x128xf32> to vector<8x128xbf16>
      %c0_35 = arith.constant 0 : index
      %c1152 = arith.constant 1152 : index
      %56 = vector.load %arg10[%c0_35, %c1152] : memref<8x2048xbf16, #tpu.memory_space<vmem>>, vector<8x128xbf16>
      tpu.vector_store %arg10[%c0_35, %c1152], %55 {strides = array<i32>} : memref<8x2048xbf16, #tpu.memory_space<vmem>>, vector<8x128xbf16>,
      %57 = vector.extract_strided_slice %26 {offsets = [80, 0], sizes = [8, 128], strides = [1, 1]} : vector<128x128xf32> to vector<8x128xf32>
      %58 = arith.truncf %57 : vector<8x128xf32> to vector<8x128xbf16>
      %c0_36 = arith.constant 0 : index
      %c1280 = arith.constant 1280 : index
      %59 = vector.load %arg10[%c0_36, %c1280] : memref<8x2048xbf16, #tpu.memory_space<vmem>>, vector<8x128xbf16>
      tpu.vector_store %arg10[%c0_36, %c1280], %58 {strides = array<i32>} : memref<8x2048xbf16, #tpu.memory_space<vmem>>, vector<8x128xbf16>,
      %60 = vector.extract_strided_slice %26 {offsets = [88, 0], sizes = [8, 128], strides = [1, 1]} : vector<128x128xf32> to vector<8x128xf32>
      %61 = arith.truncf %60 : vector<8x128xf32> to vector<8x128xbf16>
      %c0_37 = arith.constant 0 : index
      %c1408 = arith.constant 1408 : index
      %62 = vector.load %arg10[%c0_37, %c1408] : memref<8x2048xbf16, #tpu.memory_space<vmem>>, vector<8x128xbf16>
      tpu.vector_store %arg10[%c0_37, %c1408], %61 {strides = array<i32>} : memref<8x2048xbf16, #tpu.memory_space<vmem>>, vector<8x128xbf16>,
      %63 = vector.extract_strided_slice %26 {offsets = [96, 0], sizes = [8, 128], strides = [1, 1]} : vector<128x128xf32> to vector<8x128xf32>
      %64 = arith.truncf %63 : vector<8x128xf32> to vector<8x128xbf16>
      %c0_38 = arith.constant 0 : index
      %c1536 = arith.constant 1536 : index
      %65 = vector.load %arg10[%c0_38, %c1536] : memref<8x2048xbf16, #tpu.memory_space<vmem>>, vector<8x128xbf16>
      tpu.vector_store %arg10[%c0_38, %c1536], %64 {strides = array<i32>} : memref<8x2048xbf16, #tpu.memory_space<vmem>>, vector<8x128xbf16>,
      %66 = vector.extract_strided_slice %26 {offsets = [104, 0], sizes = [8, 128], strides = [1, 1]} : vector<128x128xf32> to vector<8x128xf32>
      %67 = arith.truncf %66 : vector<8x128xf32> to vector<8x128xbf16>
      %c0_39 = arith.constant 0 : index
      %c1664 = arith.constant 1664 : index
      %68 = vector.load %arg10[%c0_39, %c1664] : memref<8x2048xbf16, #tpu.memory_space<vmem>>, vector<8x128xbf16>
      tpu.vector_store %arg10[%c0_39, %c1664], %67 {strides = array<i32>} : memref<8x2048xbf16, #tpu.memory_space<vmem>>, vector<8x128xbf16>,
      %69 = vector.extract_strided_slice %26 {offsets = [112, 0], sizes = [8, 128], strides = [1, 1]} : vector<128x128xf32> to vector<8x128xf32>
      %70 = arith.truncf %69 : vector<8x128xf32> to vector<8x128xbf16>
      %c0_40 = arith.constant 0 : index
      %c1792 = arith.constant 1792 : index
      %71 = vector.load %arg10[%c0_40, %c1792] : memref<8x2048xbf16, #tpu.memory_space<vmem>>, vector<8x128xbf16>
      tpu.vector_store %arg10[%c0_40, %c1792], %70 {strides = array<i32>} : memref<8x2048xbf16, #tpu.memory_space<vmem>>, vector<8x128xbf16>,
      %72 = vector.extract_strided_slice %26 {offsets = [120, 0], sizes = [8, 128], strides = [1, 1]} : vector<128x128xf32> to vector<8x128xf32>
      %73 = arith.truncf %72 : vector<8x128xf32> to vector<8x128xbf16>
      %c0_41 = arith.constant 0 : index
      %c1920 = arith.constant 1920 : index
      %74 = vector.load %arg10[%c0_41, %c1920] : memref<8x2048xbf16, #tpu.memory_space<vmem>>, vector<8x128xbf16>
      tpu.vector_store %arg10[%c0_41, %c1920], %73 {strides = array<i32>} : memref<8x2048xbf16, #tpu.memory_space<vmem>>, vector<8x128xbf16>,
      %cst_42 = arith.constant 0.000000e+00 : f32
      %75 = vector.broadcast %cst_42 : f32 to vector<8x128xf32>
      %c0_43 = arith.constant 0 : index
      %c0_44 = arith.constant 0 : index
      %76 = vector.load %arg9[%c0_43, %c0_44] : memref<8x128xf32, #tpu.memory_space<vmem>>, vector<8x128xf32>
      tpu.vector_store %arg9[%c0_43, %c0_44], %75 {strides = array<i32>} : memref<8x128xf32, #tpu.memory_space<vmem>>, vector<8x128xf32>,
    } else {
    }
    %c0 = arith.constant 0 : index
    %c0_1 = arith.constant 0 : index
    %3 = vector.load %arg10[%c0, %c0_1] : memref<8x2048xbf16, #tpu.memory_space<vmem>>, vector<8x2048xbf16>
    %c0_2 = arith.constant 0 : index
    %c0_3 = arith.constant 0 : index
    %4 = vector.load %arg6[%c0_2, %c0_3] : memref<2048x256xbf16, #tpu.memory_space<vmem>>, vector<2048x256xbf16>
    %cst = arith.constant dense<0.000000e+00> : vector<8x256xf32>
    %5 = tpu.matmul %3, %4, %cst {dimension_numbers = #tpu.dot_dimension_numbers<[1], [0], [0], [1], [0, 0, 1, 1], [], []>} : vector<8x2048xbf16>, vector<2048x256xbf16>, vector<8x256xf32> -> vector<8x256xf32>
    %c0_4 = arith.constant 0 : index
    %c0_5 = arith.constant 0 : index
    %6 = vector.load %arg7[%c0_4, %c0_5] : memref<1x256xf32, #tpu.memory_space<vmem>>, vector<1x256xf32>
    %7 = vector.broadcast %6 : vector<1x256xf32> to vector<8x256xf32>
    %8 = arith.addf %5, %7 : vector<8x256xf32>
    %cst_6 = arith.constant 0.000000e+00 : f32
    %9 = vector.broadcast %cst_6 : f32 to vector<8x256xf32>
    %10 = arith.maximumf %8, %9 : vector<8x256xf32>
    %c0_7 = arith.constant 0 : index
    %c0_8 = arith.constant 0 : index
    %11 = vector.load %arg9[%c0_7, %c0_8] : memref<8x128xf32, #tpu.memory_space<vmem>>, vector<8x128xf32>
    %12 = arith.truncf %10 : vector<8x256xf32> to vector<8x256xbf16>
    %c0_9 = arith.constant 0 : index
    %c0_10 = arith.constant 0 : index
    %13 = vector.load %arg8[%c0_9, %c0_10] : memref<256x128xbf16, #tpu.memory_space<vmem>>, vector<256x128xbf16>
    %cst_11 = arith.constant dense<0.000000e+00> : vector<8x128xf32>
    %14 = tpu.matmul %12, %13, %cst_11 {dimension_numbers = #tpu.dot_dimension_numbers<[1], [0], [0], [1], [0, 0, 1, 1], [], []>} : vector<8x256xbf16>, vector<256x128xbf16>, vector<8x128xf32> -> vector<8x128xf32>
    %15 = arith.addf %11, %14 : vector<8x128xf32>
    %c0_12 = arith.constant 0 : index
    %c0_13 = arith.constant 0 : index
    %16 = vector.load %arg9[%c0_12, %c0_13] : memref<8x128xf32, #tpu.memory_space<vmem>>, vector<8x128xf32>
    tpu.vector_store %arg9[%c0_12, %c0_13], %15 {strides = array<i32>} : memref<8x128xf32, #tpu.memory_space<vmem>>, vector<8x128xf32>,
    return
  }
  func.func @transform_0(%arg0: i32, %arg1: i32) -> (i32, i32) {
    %c0_i32 = arith.constant 0 : i32
    %c0_i32_0 = arith.constant 0 : i32
    %c0_i32_1 = arith.constant 0 : i32
    return %c0_i32, %c0_i32_0 : i32, i32
  }
  func.func @transform_1(%arg0: i32, %arg1: i32) -> (i32, i32) {
    %c0_i32 = arith.constant 0 : i32
    %c0_i32_0 = arith.constant 0 : i32
    %c0_i32_1 = arith.constant 0 : i32
    return %c0_i32, %c0_i32_0 : i32, i32
  }
  func.func @transform_2(%arg0: i32, %arg1: i32) -> (i32, i32) {
    %c0_i32 = arith.constant 0 : i32
    %c0_i32_0 = arith.constant 0 : i32
    %c0_i32_1 = arith.constant 0 : i32
    return %c0_i32, %c0_i32_0 : i32, i32
  }
  func.func @transform_3(%arg0: i32, %arg1: i32) -> (i32, i32) {
    %c0_i32 = arith.constant 0 : i32
    %c0_i32_0 = arith.constant 0 : i32
    %c0_i32_1 = arith.constant 0 : i32
    return %c0_i32, %c0_i32_0 : i32, i32
  }
  func.func @transform_4(%arg0: i32, %arg1: i32) -> (i32, i32) {
    %c2_i32 = arith.constant 2 : i32
    %0 = arith.muli %arg0, %c2_i32 : i32
    %1 = arith.addi %0, %arg1 : i32
    %c0_i32 = arith.constant 0 : i32
    %c0_i32_0 = arith.constant 0 : i32
    return %c0_i32, %1 : i32, i32
  }
  func.func @transform_5(%arg0: i32, %arg1: i32) -> (i32, i32) {
    %c2_i32 = arith.constant 2 : i32
    %0 = arith.muli %arg0, %c2_i32 : i32
    %1 = arith.addi %0, %arg1 : i32
    %c0_i32 = arith.constant 0 : i32
    %c0_i32_0 = arith.constant 0 : i32
    return %c0_i32, %1 : i32, i32
  }
  func.func @transform_6(%arg0: i32, %arg1: i32) -> (i32, i32) {
    %c2_i32 = arith.constant 2 : i32
    %0 = arith.muli %arg0, %c2_i32 : i32
    %1 = arith.addi %0, %arg1 : i32
    %c0_i32 = arith.constant 0 : i32
    %c0_i32_0 = arith.constant 0 : i32
    return %1, %c0_i32 : i32, i32
  }
  func.func @transform_7(%arg0: i32, %arg1: i32) -> (i32, i32) {
    %c0_i32 = arith.constant 0 : i32
    %c0_i32_0 = arith.constant 0 : i32
    return %arg0, %c0_i32 : i32, i32
  }
}

</mosaic_0001>

<llo_original>
// kernel: tpu_custom_call.1
$region0: #{tpu_custom_call.1}
  #allocation0 [shape = 'u32[]', space=smem, size = 0x4, offset = 0x4, fixed_abs, tag = 'smem constant byte address 0x4 - core index']
  #allocation1 [shape = 'u32[144,128]{1,0:T(1,128)}', space=vmem, size = 0x12000, scoped, tag = 'internal scratch']
  #allocation2 [shape = 'bf16[8,2048]{1,0:T(8,128)(2,1)}', space=vmem, size = 0x8000, scoped, tag = 'scratch operand']
  %s0 = inlined_call_operand.vmem [shape: f32[392,16], index: 0, kind: input, shape index: {}]
  %s1 = inlined_call_operand.vmem [shape: f32[128,392], index: 1, kind: input, shape index: {}]
  %s2 = inlined_call_operand.hbm [shape: f32[16,128], index: 2, kind: input, shape index: {}]
  %s3 = inlined_call_operand.hbm [shape: f32[1,128], index: 3, kind: input, shape index: {}]
  %s4 = inlined_call_operand.hbm [shape: bf16[2048,1024], index: 4, kind: input, shape index: {}]
  %s5 = inlined_call_operand.hbm [shape: f32[1,1024], index: 5, kind: input, shape index: {}]
  %s6 = inlined_call_operand.hbm [shape: bf16[1024,128], index: 6, kind: input, shape index: {}]
  %s7 = inlined_call_operand.hbm [shape: f32[16,128], index: 7, kind: output, shape index: {}]
  %s8 = sld [smem:[#allocation0]]
  $region85: #{tpu_custom_call.1} parent=0
    _
  %s10 = ssub.s32 1, %s8
  %s11 = scalar_select 0, %s10, %s8
  $region1: #{tpu_custom_call.1} parent=0
    #allocation3 [shape = 'u8[8192]{0}', space=vmem, size = 0x2000, scoped, tag = 'input window, operand 2, single buffered']
    #allocation4 [shape = 's32[2]{0}', space=sflag, size = 0x8, scoped, tag = 'scoped memory for tpu_custom_call.1']
    #allocation5 [shape = 's32[2]{0}', space=sflag, size = 0x8, scoped, tag = 'scoped memory for tpu_custom_call.1']
    #allocation6 [shape = 'u8[512]{0}', space=vmem, size = 0x400, scoped, tag = 'input window, operand 3, single buffered']
    #allocation7 [shape = 's32[1]{0}', space=sflag, size = 0x4, scoped, tag = 'scoped memory for tpu_custom_call.1']
    #allocation8 [shape = 'u8[2097152]{0}', space=vmem, size = 0x200000, scoped, tag = 'input window, operand 4']
    #allocation9 [shape = 'u8[2048]{0}', space=vmem, size = 0x800, scoped, tag = 'input window, operand 5']
    #allocation10 [shape = 'u8[131072]{0}', space=vmem, size = 0x20000, scoped, tag = 'input window, operand 6']
    #allocation11 [shape = 'u8[8192]{0}', space=vmem, size = 0x2000, scoped, tag = 'output window, operand 0']
    %12 = vsyncpa [#allocation4], 0
    %13 = vsyncpa [#allocation7], 0
    %14 = vsyncpa [#allocation5], 0
    %s15 = scalar_lea.sflag [#allocation5], 1
    %16 = vsyncpa %s15, 0
    loop: start=0, step=1, limit=6
    $region2: #{tpu_custom_call.1} parent=1 // loop_pre_header
      _
    $region3: #{tpu_custom_call.1} parent=1 // loop_header
      %s18 = sphi 0, %s22
      %p19 = scmp.ge.s32.totalorder %s18, 6
      %s25 = sphi 0, %s37
      %s26 = sphi 0, %s33
      %s27 = sphi 0, %s25
      %s28 = sphi 0, %s26
      %s29 = sphi 0, %s27
      %s30 = sphi 0, %s28
      %s38 = sphi 0, %s38
      %s40 = sphi 0, %s38
      %s41 = sphi 0, %s40
      %s55 = sphi 0, %s41
      %s59 = sphi 0, %s59
      %s61 = sphi 0, %s59
      %s62 = sphi 0, %s61
      %s76 = sphi 0, %s62
      %s80 = sphi 0, %s80
      %s82 = sphi 0, %s80
      %s83 = sphi 0, %s82
      %s97 = sphi 0, %s83
      %s101 = sphi 0, %s101
      %s103 = sphi 0, %s101
      %s104 = sphi 0, %s103
      %s118 = sphi 0, %s104
      %s128 = sphi 0, %s130
      %s131 = sphi 0, %s128
      %s132 = sphi 0, %s131
      %s148 = sphi 0, %s132
      %s158 = sphi 0, %s160
      %s161 = sphi 0, %s158
      %s162 = sphi 0, %s161
      %s178 = sphi 0, %s162
      %s188 = sphi 0, %s190
      %s191 = sphi 0, %s188
      %s192 = sphi 0, %s191
      %s208 = sphi 0, %s192
      %s214 = sphi 0, %s216
      %s217 = sphi 0, %s214
      %s218 = sphi 0, %s217
      %s234 = sphi 0, %s218
    $region4: #{tpu_custom_call.1} parent=1 // loop_header_branch
      %21 = sbr.rel (%p19) target = $region8
    $region5: #{tpu_custom_call.1} parent=1 // loop_body
      %s23 = ssub.s32 %s18, 1
      %s24 = ssub.s32 %s18, 2
      %s31 = sadd.s32 1, %s26
      %p32 = scmp.ge.s32.totalorder %s31, 2
      %s33 = scalar_select %p32, 0, %s31
      %s34 = sadd.s32 1, %s25
      %s35 = scalar_select %p32, %s34, %s25
      %p36 = scmp.ge.s32.totalorder %s35, 2
      %s37 = scalar_select %p36, 0, %s35
      %s39 = sadd.s32 %s38, 1
      %p42 = scmp.eq.s32.totalorder %s18, 3
      %p43 = scmp.ne.s32.totalorder %s38, %s40
      %p44 = scmp.eq.s32.totalorder %s18, 0
      %p45 = por %p43, %p44
      %p46 = scmp.ne.s32.totalorder %s38, %s40
      %p47 = scmp.eq.s32.totalorder %s23, 3
      %p48 = por %p46, %p47
      %p49 = scmp.ne.s32.totalorder %s40, %s41
      %p50 = scmp.eq.s32.totalorder %s23, 0
      %p51 = por %p49, %p50
      %p52 = scmp.ne.s32.totalorder %s40, %s41
      %p53 = scmp.eq.s32.totalorder %s24, 3
      %p54 = por %p52, %p53
      %p56 = scmp.ne.s32.totalorder %s41, %s55
      %p57 = scmp.eq.s32.totalorder %s24, 0
      %p58 = por %p56, %p57
      %s60 = sadd.s32 %s59, 1
      %p63 = scmp.eq.s32.totalorder %s18, 3
      %p64 = scmp.ne.s32.totalorder %s59, %s61
      %p65 = scmp.eq.s32.totalorder %s18, 0
      %p66 = por %p64, %p65
      %p67 = scmp.ne.s32.totalorder %s59, %s61
      %p68 = scmp.eq.s32.totalorder %s23, 3
      %p69 = por %p67, %p68
      %p70 = scmp.ne.s32.totalorder %s61, %s62
      %p71 = scmp.eq.s32.totalorder %s23, 0
      %p72 = por %p70, %p71
      %p73 = scmp.ne.s32.totalorder %s61, %s62
      %p74 = scmp.eq.s32.totalorder %s24, 3
      %p75 = por %p73, %p74
      %p77 = scmp.ne.s32.totalorder %s62, %s76
      %p78 = scmp.eq.s32.totalorder %s24, 0
      %p79 = por %p77, %p78
      %s81 = sadd.s32 %s80, 1
      %p84 = scmp.eq.s32.totalorder %s18, 3
      %p85 = scmp.ne.s32.totalorder %s80, %s82
      %p86 = scmp.eq.s32.totalorder %s18, 0
      %p87 = por %p85, %p86
      %p88 = scmp.ne.s32.totalorder %s80, %s82
      %p89 = scmp.eq.s32.totalorder %s23, 3
      %p90 = por %p88, %p89
      %p91 = scmp.ne.s32.totalorder %s82, %s83
      %p92 = scmp.eq.s32.totalorder %s23, 0
      %p93 = por %p91, %p92
      %p94 = scmp.ne.s32.totalorder %s82, %s83
      %p95 = scmp.eq.s32.totalorder %s24, 3
      %p96 = por %p94, %p95
      %p98 = scmp.ne.s32.totalorder %s83, %s97
      %p99 = scmp.eq.s32.totalorder %s24, 0
      %p100 = por %p98, %p99
      %s102 = sadd.s32 %s101, 1
      %p105 = scmp.eq.s32.totalorder %s18, 3
      %p106 = scmp.ne.s32.totalorder %s101, %s103
      %p107 = scmp.eq.s32.totalorder %s18, 0
      %p108 = por %p106, %p107
      %p109 = scmp.ne.s32.totalorder %s101, %s103
      %p110 = scmp.eq.s32.totalorder %s23, 3
      %p111 = por %p109, %p110
      %p112 = scmp.ne.s32.totalorder %s103, %s104
      %p113 = scmp.eq.s32.totalorder %s23, 0
      %p114 = por %p112, %p113
      %p115 = scmp.ne.s32.totalorder %s103, %s104
      %p116 = scmp.eq.s32.totalorder %s24, 3
      %p117 = por %p115, %p116
      %p119 = scmp.ne.s32.totalorder %s104, %s118
      %p120 = scmp.eq.s32.totalorder %s24, 0
      %p121 = por %p119, %p120
      %s122 = smul.u32 %s25, 2
      %s123 = sadd.s32 %s122, %s26
      %s124 = smul.u32 %s37, 2
      %s125 = sadd.s32 %s124, %s33
      %s126 = ssub.s32 %s123, %s125
      %p127 = scmp.eq.s32.totalorder %s126, 0
      %s129 = sadd.s32 %s128, 1
      %s130 = scalar_select %p127, %s128, %s129
      %p133 = pneg %p127
      %p134 = scmp.eq.s32.totalorder %s18, 3
      %p135 = por %p133, %p134
      %p136 = scmp.ne.s32.totalorder %s128, %s131
      %p137 = scmp.eq.s32.totalorder %s18, 0
      %p138 = por %p136, %p137
      %p139 = scmp.ne.s32.totalorder %s128, %s131
      %p140 = scmp.eq.s32.totalorder %s23, 3
      %p141 = por %p139, %p140
      %p142 = scmp.ne.s32.totalorder %s131, %s132
      %p143 = scmp.eq.s32.totalorder %s23, 0
      %p144 = por %p142, %p143
      %p145 = scmp.ne.s32.totalorder %s131, %s132
      %p146 = scmp.eq.s32.totalorder %s24, 3
      %p147 = por %p145, %p146
      %p149 = scmp.ne.s32.totalorder %s132, %s148
      %p150 = scmp.eq.s32.totalorder %s24, 0
      %p151 = por %p149, %p150
      %s152 = smul.u32 %s25, 2
      %s153 = sadd.s32 %s152, %s26
      %s154 = smul.u32 %s37, 2
      %s155 = sadd.s32 %s154, %s33
      %s156 = ssub.s32 %s153, %s155
      %p157 = scmp.eq.s32.totalorder %s156, 0
      %s159 = sadd.s32 %s158, 1
      %s160 = scalar_select %p157, %s158, %s159
      %p163 = pneg %p157
      %p164 = scmp.eq.s32.totalorder %s18, 3
      %p165 = por %p163, %p164
      %p166 = scmp.ne.s32.totalorder %s158, %s161
      %p167 = scmp.eq.s32.totalorder %s18, 0
      %p168 = por %p166, %p167
      %p169 = scmp.ne.s32.totalorder %s158, %s161
      %p170 = scmp.eq.s32.totalorder %s23, 3
      %p171 = por %p169, %p170
      %p172 = scmp.ne.s32.totalorder %s161, %s162
      %p173 = scmp.eq.s32.totalorder %s23, 0
      %p174 = por %p172, %p173
      %p175 = scmp.ne.s32.totalorder %s161, %s162
      %p176 = scmp.eq.s32.totalorder %s24, 3
      %p177 = por %p175, %p176
      %p179 = scmp.ne.s32.totalorder %s162, %s178
      %p180 = scmp.eq.s32.totalorder %s24, 0
      %p181 = por %p179, %p180
      %s182 = smul.u32 %s25, 2
      %s183 = sadd.s32 %s182, %s26
      %s184 = smul.u32 %s37, 2
      %s185 = sadd.s32 %s184, %s33
      %s186 = ssub.s32 %s183, %s185
      %p187 = scmp.eq.s32.totalorder %s186, 0
      %s189 = sadd.s32 %s188, 1
      %s190 = scalar_select %p187, %s188, %s189
      %p193 = pneg %p187
      %p194 = scmp.eq.s32.totalorder %s18, 3
      %p195 = por %p193, %p194
      %p196 = scmp.ne.s32.totalorder %s188, %s191
      %p197 = scmp.eq.s32.totalorder %s18, 0
      %p198 = por %p196, %p197
      %p199 = scmp.ne.s32.totalorder %s188, %s191
      %p200 = scmp.eq.s32.totalorder %s23, 3
      %p201 = por %p199, %p200
      %p202 = scmp.ne.s32.totalorder %s191, %s192
      %p203 = scmp.eq.s32.totalorder %s23, 0
      %p204 = por %p202, %p203
      %p205 = scmp.ne.s32.totalorder %s191, %s192
      %p206 = scmp.eq.s32.totalorder %s24, 3
      %p207 = por %p205, %p206
      %p209 = scmp.ne.s32.totalorder %s192, %s208
      %p210 = scmp.eq.s32.totalorder %s24, 0
      %p211 = por %p209, %p210
      %s212 = ssub.s32 %s25, %s37
      %p213 = scmp.eq.s32.totalorder %s212, 0
      %s215 = sadd.s32 %s214, 1
      %s216 = scalar_select %p213, %s214, %s215
      %p219 = pneg %p213
      %p220 = scmp.eq.s32.totalorder %s18, 3
      %p221 = por %p219, %p220
      %p222 = scmp.ne.s32.totalorder %s214, %s217
      %p223 = scmp.eq.s32.totalorder %s18, 0
      %p224 = por %p222, %p223
      %p225 = scmp.ne.s32.totalorder %s214, %s217
      %p226 = scmp.eq.s32.totalorder %s23, 3
      %p227 = por %p225, %p226
      %p228 = scmp.ne.s32.totalorder %s217, %s218
      %p229 = scmp.eq.s32.totalorder %s23, 0
      %p230 = por %p228, %p229
      %p231 = scmp.ne.s32.totalorder %s217, %s218
      %p232 = scmp.eq.s32.totalorder %s24, 3
      %p233 = por %p231, %p232
      %p235 = scmp.ne.s32.totalorder %s218, %s234
      %p236 = scmp.eq.s32.totalorder %s24, 0
      %p237 = por %p235, %p236
      %p238 = scmp.le.s32.totalorder 1, %s18
      %p239 = scmp.lt.s32.totalorder %s18, 5
      %p240 = pnand %p238, %p239
      %p241 = pneg %p240
      // Predicated region
      $region9: #{tpu_custom_call.1} parent=5 // pred_check
        _
      $region10: #{tpu_custom_call.1} parent=5 // pred_check_branch
        %243 = sbr.rel (%p240) target = $region12
      $region11: #{tpu_custom_call.1} parent=5 // pred_region
        %s244 = ssub.s32 %s18, 1
        // Predicated region
        $region13: #{tpu_custom_call.1} parent=11 // pred_check
          %p245 = pneg %p51
        $region14: #{tpu_custom_call.1} parent=11 // pred_check_branch
          %247 = sbr.rel (%p245) target = $region16
        $region15: #{tpu_custom_call.1} parent=11 // pred_region
          _
        $region16: #{tpu_custom_call.1} parent=11 // pred_fallthru
          _
        // Predicated region
        $region17: #{tpu_custom_call.1} parent=11 // pred_check
          %p248 = pneg %p72
        $region18: #{tpu_custom_call.1} parent=11 // pred_check_branch
          %250 = sbr.rel (%p248) target = $region20
        $region19: #{tpu_custom_call.1} parent=11 // pred_region
          _
        $region20: #{tpu_custom_call.1} parent=11 // pred_fallthru
          _
        // Predicated region
        $region21: #{tpu_custom_call.1} parent=11 // pred_check
          %p251 = pneg %p93
        $region22: #{tpu_custom_call.1} parent=11 // pred_check_branch
          %253 = sbr.rel (%p251) target = $region24
        $region23: #{tpu_custom_call.1} parent=11 // pred_region
          %s255 = ssub.s32 256, 256
          %256 = vsyncadd [#allocation4], %s255
          %s257 = sshll.u32 [#allocation3], 4
          %s258 = int_to_ptr.vmem [resolvable:$true] %s257
          %263 = dma.hbm_to_vmem [thread:$0]  %s2, 256, %s258, [#allocation4], 128, 128, 8
        $region24: #{tpu_custom_call.1} parent=11 // pred_fallthru
          _
        // Predicated region
        $region25: #{tpu_custom_call.1} parent=11 // pred_check
          %p264 = pneg %p114
        $region26: #{tpu_custom_call.1} parent=11 // pred_check_branch
          %266 = sbr.rel (%p264) target = $region28
        $region27: #{tpu_custom_call.1} parent=11 // pred_region
          %s268 = ssub.s32 16, 16
          %269 = vsyncadd [#allocation7], %s268
          %s271 = sshll.u32 [#allocation6], 4
          %s272 = int_to_ptr.vmem [resolvable:$true] %s271
          %274 = dma.hbm_to_vmem [thread:$0]  %s3, 16, %s272, [#allocation7]
        $region28: #{tpu_custom_call.1} parent=11 // pred_fallthru
          _
      $region12: #{tpu_custom_call.1} parent=5 // pred_fallthru
        _
      %p275 = scmp.lt.s32.totalorder %s18, 4
      // Predicated region
      $region29: #{tpu_custom_call.1} parent=5 // pred_check
        %p276 = pneg %p275
      $region30: #{tpu_custom_call.1} parent=5 // pred_check_branch
        %278 = sbr.rel (%p276) target = $region32
      $region31: #{tpu_custom_call.1} parent=5 // pred_region
        // Predicated region
        $region33: #{tpu_custom_call.1} parent=31 // pred_check
          %p279 = pneg %p138
        $region34: #{tpu_custom_call.1} parent=31 // pred_check_branch
          %281 = sbr.rel (%p279) target = $region36
        $region35: #{tpu_custom_call.1} parent=31 // pred_region
          %s282 = sand.u32 %s18, 1
          %s283 = scalar_lea.sflag [#allocation4], %s282
          %s284 = sand.u32 %s128, 1
          %s285 = smul.addr %s284, 2048
          %s286 = scalar_lea.vmem [#allocation8], %s285
          %s287 = smul.u32 %s25, 2
          %s288 = sadd.s32 %s287, %s26
          %s289 = smul.u32 2, %s288
          %s291 = ssub.s32 32768, 32768
          %292 = vsyncadd %s283, %s291
          %s293 = smul.addr %s289, 64
          %s294 = scalar_lea.hbm %s4, %s293
          %s295 = sshll.u32 %s286, 4
          %s296 = int_to_ptr.vmem [resolvable:$true] %s295
          %301 = dma.hbm_to_vmem [thread:$0]  %s294, 32768, %s296, %s283, 512, 128, 8
        $region36: #{tpu_custom_call.1} parent=31 // pred_fallthru
          _
        // Predicated region
        $region37: #{tpu_custom_call.1} parent=31 // pred_check
          %p302 = pneg %p168
        $region38: #{tpu_custom_call.1} parent=31 // pred_check_branch
          %304 = sbr.rel (%p302) target = $region40
        $region39: #{tpu_custom_call.1} parent=31 // pred_region
          %s305 = sand.u32 %s18, 1
          %s306 = scalar_lea.sflag [#allocation4], %s305
          %s307 = sand.u32 %s158, 1
          %s308 = smul.addr %s307, 2
          %s309 = scalar_lea.vmem [#allocation9], %s308
          %s310 = smul.u32 %s25, 2
          %s311 = sadd.s32 %s310, %s26
          %s312 = smul.u32 2, %s311
          %s314 = ssub.s32 32, 32
          %315 = vsyncadd %s306, %s314
          %s316 = smul.addr %s312, 16
          %s317 = scalar_lea.hbm %s5, %s316
          %s319 = sshll.u32 %s309, 4
          %s320 = int_to_ptr.vmem [resolvable:$true] %s319
          %322 = dma.hbm_to_vmem [thread:$0]  %s317, 32, %s320, %s306
        $region40: #{tpu_custom_call.1} parent=31 // pred_fallthru
          _
        // Predicated region
        $region41: #{tpu_custom_call.1} parent=31 // pred_check
          %p323 = pneg %p198
        $region42: #{tpu_custom_call.1} parent=31 // pred_check_branch
          %325 = sbr.rel (%p323) target = $region44
        $region43: #{tpu_custom_call.1} parent=31 // pred_region
          %s326 = sand.u32 %s18, 1
          %s327 = scalar_lea.sflag [#allocation4], %s326
          %s328 = sand.u32 %s188, 1
          %s329 = smul.addr %s328, 128
          %s330 = scalar_lea.vmem [#allocation10], %s329
          %s331 = smul.u32 %s25, 2
          %s332 = sadd.s32 %s331, %s26
          %s333 = smul.u32 32, %s332
          %s335 = ssub.s32 2048, 2048
          %336 = vsyncadd %s327, %s335
          %s337 = smul.addr %s333, 64
          %s338 = scalar_lea.hbm %s6, %s337
          %s339 = sshll.u32 %s330, 4
          %s340 = int_to_ptr.vmem [resolvable:$true] %s339
          %345 = dma.hbm_to_vmem [thread:$0]  %s338, 2048, %s340, %s327, 64, 64, 4
        $region44: #{tpu_custom_call.1} parent=31 // pred_fallthru
          _
      $region32: #{tpu_custom_call.1} parent=5 // pred_fallthru
        _
      %p346 = scmp.le.s32.totalorder 1, %s18
      %p347 = scmp.lt.s32.totalorder %s18, 5
      %p348 = pnand %p346, %p347
      %p349 = pneg %p348
      // Predicated region
      $region45: #{tpu_custom_call.1} parent=5 // pred_check
        _
      $region46: #{tpu_custom_call.1} parent=5 // pred_check_branch
        %351 = sbr.rel (%p348) target = $region48
      $region47: #{tpu_custom_call.1} parent=5 // pred_region
        %s352 = ssub.s32 %s18, 1
        // Predicated region
        $region49: #{tpu_custom_call.1} parent=47 // pred_check
          %p353 = pneg %p93
        $region50: #{tpu_custom_call.1} parent=47 // pred_check_branch
          %355 = sbr.rel (%p353) target = $region52
        $region51: #{tpu_custom_call.1} parent=47 // pred_region
          %356 = dma.done [#allocation4], 256
        $region52: #{tpu_custom_call.1} parent=47 // pred_fallthru
          _
        // Predicated region
        $region53: #{tpu_custom_call.1} parent=47 // pred_check
          %p357 = pneg %p114
        $region54: #{tpu_custom_call.1} parent=47 // pred_check_branch
          %359 = sbr.rel (%p357) target = $region56
        $region55: #{tpu_custom_call.1} parent=47 // pred_region
          %360 = dma.done [#allocation7], 16
        $region56: #{tpu_custom_call.1} parent=47 // pred_fallthru
          _
        %s361 = sand.u32 %s23, 1
        %s362 = scalar_lea.sflag [#allocation4], %s361
        %s363 = sand.u32 %s131, 1
        %s364 = smul.addr %s363, 2048
        %s365 = scalar_lea.vmem [#allocation8], %s364
        // Predicated region
        $region57: #{tpu_custom_call.1} parent=47 // pred_check
          %p366 = pneg %p144
        $region58: #{tpu_custom_call.1} parent=47 // pred_check_branch
          %368 = sbr.rel (%p366) target = $region60
        $region59: #{tpu_custom_call.1} parent=47 // pred_region
          %369 = dma.done %s362, 32768
        $region60: #{tpu_custom_call.1} parent=47 // pred_fallthru
          _
        %s370 = sand.u32 %s23, 1
        %s371 = scalar_lea.sflag [#allocation4], %s370
        %s372 = sand.u32 %s161, 1
        %s373 = smul.addr %s372, 2
        %s374 = scalar_lea.vmem [#allocation9], %s373
        // Predicated region
        $region61: #{tpu_custom_call.1} parent=47 // pred_check
          %p375 = pneg %p174
        $region62: #{tpu_custom_call.1} parent=47 // pred_check_branch
          %377 = sbr.rel (%p375) target = $region64
        $region63: #{tpu_custom_call.1} parent=47 // pred_region
          %378 = dma.done %s371, 32
        $region64: #{tpu_custom_call.1} parent=47 // pred_fallthru
          _
        %s379 = sand.u32 %s23, 1
        %s380 = scalar_lea.sflag [#allocation4], %s379
        %s381 = sand.u32 %s191, 1
        %s382 = smul.addr %s381, 128
        %s383 = scalar_lea.vmem [#allocation10], %s382
        // Predicated region
        $region65: #{tpu_custom_call.1} parent=47 // pred_check
          %p384 = pneg %p204
        $region66: #{tpu_custom_call.1} parent=47 // pred_check_branch
          %386 = sbr.rel (%p384) target = $region68
        $region67: #{tpu_custom_call.1} parent=47 // pred_region
          %387 = dma.done %s380, 2048
        $region68: #{tpu_custom_call.1} parent=47 // pred_fallthru
          _
        %p388 = pneg %p51
        %p389 = pneg %p48
        %p390 = pneg %p72
        %p391 = pneg %p69
        %p392 = pneg %p93
        %p393 = pneg %p90
        %p394 = pneg %p114
        %p395 = pneg %p111
        %s396 = sand.u32 %s23, 1
        %s397 = scalar_lea.sflag [#allocation4], %s396
        %s398 = sand.u32 %s131, 1
        %s399 = smul.addr %s398, 2048
        %s400 = scalar_lea.vmem [#allocation8], %s399
        %p401 = pneg %p144
        %p402 = pneg %p141
        %s403 = sand.u32 %s23, 1
        %s404 = scalar_lea.sflag [#allocation4], %s403
        %s405 = sand.u32 %s161, 1
        %s406 = smul.addr %s405, 2
        %s407 = scalar_lea.vmem [#allocation9], %s406
        %p408 = pneg %p174
        %p409 = pneg %p171
        %s410 = sand.u32 %s23, 1
        %s411 = scalar_lea.sflag [#allocation4], %s410
        %s412 = sand.u32 %s191, 1
        %s413 = smul.addr %s412, 128
        %s414 = scalar_lea.vmem [#allocation10], %s413
        %p415 = pneg %p204
        %p416 = pneg %p201
        %p417 = pneg %p230
        %p418 = pneg %p227
        %s419 = sand.u32 %s217, 1
        %s420 = scalar_lea.sflag [#allocation5], %s419
        %s421 = sand.u32 %s217, 1
        %s422 = smul.addr %s421, 8
        %s423 = scalar_lea.vmem [#allocation11], %s422
        %s424 = smul.u32 %s27, 2
        %s425 = sadd.s32 %s424, %s28
        %s426 = smul.u32 2, %s425
        %s427 = smul.u32 %s27, 2
        %s428 = sadd.s32 %s427, %s28
        %s429 = smul.u32 2, %s428
        %s430 = smul.u32 %s27, 2
        %s431 = sadd.s32 %s430, %s28
        %s432 = smul.u32 32, %s431
        %p434 = scmp.eq.s32.totalorder %s28, 0
        // Predicated region
        $region69: #{tpu_custom_call.1} parent=47 // pred_check
          %p435 = pneg %p434
        $region70: #{tpu_custom_call.1} parent=47 // pred_check_branch
          %437 = sbr.rel (%p435) target = $region72
        $region71: #{tpu_custom_call.1} parent=47 // pred_region
          %v438 = vld [vmem:[%s1] sm:$0xff]
          %v439 = vld [vmem:[%s1 + $0x8] sm:$0xff]
          %v440 = vld [vmem:[%s1 + $0x10] sm:$0xff]
          %v441 = vld [vmem:[%s1 + $0x18] sm:$0xff]
          %v442 = vld [vmem:[%s1 + $0x20] sm:$0xff]
          %v443 = vld [vmem:[%s1 + $0x28] sm:$0xff]
          %v444 = vld [vmem:[%s1 + $0x30] sm:$0xff]
          %v445 = vld [vmem:[%s1 + $0x38] sm:$0xff]
          %v446 = vld [vmem:[%s1 + $0x40] sm:$0xff]
          %v447 = vld [vmem:[%s1 + $0x48] sm:$0xff]
          %v448 = vld [vmem:[%s1 + $0x50] sm:$0xff]
          %v449 = vld [vmem:[%s1 + $0x58] sm:$0xff]
          %v450 = vld [vmem:[%s1 + $0x60] sm:$0xff]
          %v451 = vld [vmem:[%s1 + $0x68] sm:$0xff]
          %v452 = vld [vmem:[%s1 + $0x70] sm:$0xff]
          %v453 = vld [vmem:[%s1 + $0x78] sm:$0xff]
          %v454 = vld [vmem:[%s1 + $0x80] sm:$0xff]
          %v455 = vld [vmem:[%s1 + $0x88] sm:$0xff]
          %v456 = vld [vmem:[%s1 + $0x90] sm:$0xff]
          %v457 = vld [vmem:[%s1 + $0x98] sm:$0xff]
          %v458 = vld [vmem:[%s1 + $0xa0] sm:$0xff]
          %v459 = vld [vmem:[%s1 + $0xa8] sm:$0xff]
          %v460 = vld [vmem:[%s1 + $0xb0] sm:$0xff]
          %v461 = vld [vmem:[%s1 + $0xb8] sm:$0xff]
          %v462 = vld [vmem:[%s1 + $0xc0] sm:$0xff]
          %v463 = vld [vmem:[%s1 + $0xc8] sm:$0xff]
          %v464 = vld [vmem:[%s1 + $0xd0] sm:$0xff]
          %v465 = vld [vmem:[%s1 + $0xd8] sm:$0xff]
          %v466 = vld [vmem:[%s1 + $0xe0] sm:$0xff]
          %v467 = vld [vmem:[%s1 + $0xe8] sm:$0xff]
          %v468 = vld [vmem:[%s1 + $0xf0] sm:$0xff]
          %v469 = vld [vmem:[%s1 + $0xf8] sm:$0xff]
          %v470 = vld [vmem:[%s1 + $0x100] sm:$0xff]
          %v471 = vld [vmem:[%s1 + $0x108] sm:$0xff]
          %v472 = vld [vmem:[%s1 + $0x110] sm:$0xff]
          %v473 = vld [vmem:[%s1 + $0x118] sm:$0xff]
          %v474 = vld [vmem:[%s1 + $0x120] sm:$0xff]
          %v475 = vld [vmem:[%s1 + $0x128] sm:$0xff]
          %v476 = vld [vmem:[%s1 + $0x130] sm:$0xff]
          %v477 = vld [vmem:[%s1 + $0x138] sm:$0xff]
          %v478 = vld [vmem:[%s1 + $0x140] sm:$0xff]
          %v479 = vld [vmem:[%s1 + $0x148] sm:$0xff]
          %v480 = vld [vmem:[%s1 + $0x150] sm:$0xff]
          %v481 = vld [vmem:[%s1 + $0x158] sm:$0xff]
          %v482 = vld [vmem:[%s1 + $0x160] sm:$0xff]
          %v483 = vld [vmem:[%s1 + $0x168] sm:$0xff]
          %v484 = vld [vmem:[%s1 + $0x170] sm:$0xff]
          %v485 = vld [vmem:[%s1 + $0x178] sm:$0xff]
          %v486 = vld [vmem:[%s1 + $0x180] sm:$0xff]
          %v487 = vld [vmem:[%s1 + $0x188] sm:$0xff]
          %v488 = vld [vmem:[%s1 + $0x190] sm:$0xff]
          %v489 = vld [vmem:[%s1 + $0x198] sm:$0xff]
          %v490 = vld [vmem:[%s1 + $0x1a0] sm:$0xff]
          %v491 = vld [vmem:[%s1 + $0x1a8] sm:$0xff]
          %v492 = vld [vmem:[%s1 + $0x1b0] sm:$0xff]
          %v493 = vld [vmem:[%s1 + $0x1b8] sm:$0xff]
          %v494 = vld [vmem:[%s1 + $0x1c0] sm:$0xff]
          %v495 = vld [vmem:[%s1 + $0x1c8] sm:$0xff]
          %v496 = vld [vmem:[%s1 + $0x1d0] sm:$0xff]
          %v497 = vld [vmem:[%s1 + $0x1d8] sm:$0xff]
          %v498 = vld [vmem:[%s1 + $0x1e0] sm:$0xff]
          %v499 = vld [vmem:[%s1 + $0x1e8] sm:$0xff]
          %v500 = vld [vmem:[%s1 + $0x1f0] sm:$0xff]
          %v501 = vld [vmem:[%s1 + $0x1f8] sm:$0xff]
          %v502 = vld [vmem:[%s0] sm:$0xff]
          %v503 = vld [vmem:[%s0 + $0x8] sm:$0xff]
          %v504 = vld [vmem:[%s0 + $0x10] sm:$0xff]
          %v505 = vld [vmem:[%s0 + $0x18] sm:$0xff]
          %v506 = vld [vmem:[%s0 + $0x20] sm:$0xff]
          %v507 = vld [vmem:[%s0 + $0x28] sm:$0xff]
          %v508 = vld [vmem:[%s0 + $0x30] sm:$0xff]
          %v509 = vld [vmem:[%s0 + $0x38] sm:$0xff]
          %v510 = vld [vmem:[%s0 + $0x40] sm:$0xff]
          %v511 = vld [vmem:[%s0 + $0x48] sm:$0xff]
          %v512 = vld [vmem:[%s0 + $0x50] sm:$0xff]
          %v513 = vld [vmem:[%s0 + $0x58] sm:$0xff]
          %v514 = vld [vmem:[%s0 + $0x60] sm:$0xff]
          %v515 = vld [vmem:[%s0 + $0x68] sm:$0xff]
          %v516 = vld [vmem:[%s0 + $0x70] sm:$0xff]
          %v517 = vld [vmem:[%s0 + $0x78] sm:$0xff]
          %v518 = vld [vmem:[%s0 + $0x80] sm:$0xff]
          %v519 = vld [vmem:[%s0 + $0x88] sm:$0xff]
          %v520 = vld [vmem:[%s0 + $0x90] sm:$0xff]
          %v521 = vld [vmem:[%s0 + $0x98] sm:$0xff]
          %v522 = vld [vmem:[%s0 + $0xa0] sm:$0xff]
          %v523 = vld [vmem:[%s0 + $0xa8] sm:$0xff]
          %v524 = vld [vmem:[%s0 + $0xb0] sm:$0xff]
          %v525 = vld [vmem:[%s0 + $0xb8] sm:$0xff]
          %v526 = vld [vmem:[%s0 + $0xc0] sm:$0xff]
          %v527 = vld [vmem:[%s0 + $0xc8] sm:$0xff]
          %v528 = vld [vmem:[%s0 + $0xd0] sm:$0xff]
          %v529 = vld [vmem:[%s0 + $0xd8] sm:$0xff]
          %v530 = vld [vmem:[%s0 + $0xe0] sm:$0xff]
          %v531 = vld [vmem:[%s0 + $0xe8] sm:$0xff]
          %v532 = vld [vmem:[%s0 + $0xf0] sm:$0xff]
          %v533 = vld [vmem:[%s0 + $0xf8] sm:$0xff]
          %v534 = vld [vmem:[%s0 + $0x100] sm:$0xff]
          %v535 = vld [vmem:[%s0 + $0x108] sm:$0xff]
          %v536 = vld [vmem:[%s0 + $0x110] sm:$0xff]
          %v537 = vld [vmem:[%s0 + $0x118] sm:$0xff]
          %v538 = vld [vmem:[%s0 + $0x120] sm:$0xff]
          %v539 = vld [vmem:[%s0 + $0x128] sm:$0xff]
          %v540 = vld [vmem:[%s0 + $0x130] sm:$0xff]
          %v541 = vld [vmem:[%s0 + $0x138] sm:$0xff]
          %v542 = vld [vmem:[%s0 + $0x140] sm:$0xff]
          %v543 = vld [vmem:[%s0 + $0x148] sm:$0xff]
          %v544 = vld [vmem:[%s0 + $0x150] sm:$0xff]
          %v545 = vld [vmem:[%s0 + $0x158] sm:$0xff]
          %v546 = vld [vmem:[%s0 + $0x160] sm:$0xff]
          %v547 = vld [vmem:[%s0 + $0x168] sm:$0xff]
          %v548 = vld [vmem:[%s0 + $0x170] sm:$0xff]
          %v549 = vld [vmem:[%s0 + $0x178] sm:$0xff]
          %v550 = vld [vmem:[%s0 + $0x180] sm:$0xff]
          %vm551 = vcmask 64512
          %v553 = vsel %vm551, %v441, 0
          %v556 = vsel %vm551, %v445, 0
          %v559 = vsel %vm551, %v449, 0
          %v562 = vsel %vm551, %v453, 0
          %v565 = vsel %vm551, %v457, 0
          %v568 = vsel %vm551, %v461, 0
          %v571 = vsel %vm551, %v465, 0
          %v574 = vsel %vm551, %v469, 0
          %v577 = vsel %vm551, %v473, 0
          %v580 = vsel %vm551, %v477, 0
          %v583 = vsel %vm551, %v481, 0
          %v586 = vsel %vm551, %v485, 0
          %v589 = vsel %vm551, %v489, 0
          %v592 = vsel %vm551, %v493, 0
          %v595 = vsel %vm551, %v497, 0
          %v598 = vsel %vm551, %v501, 0
          %600 = vmatprep.subr.mxu0 0.0
          %601 = vmatpush1.msra.mxu0 %v502
          %602 = vmatprep.subr.mxu0 0.0
          %603 = vmatpush1.msra.mxu0 %v503
          %604 = vmatprep.subr.mxu0 0.0
          %605 = vmatpush1.msra.mxu0 %v504
          %606 = vmatprep.subr.mxu0 0.0
          %607 = vmatpush1.msra.mxu0 %v505
          %608 = vmatprep.subr.mxu0 0.0
          %609 = vmatpush1.msra.mxu0 %v506
          %610 = vmatprep.subr.mxu0 0.0
          %611 = vmatpush1.msra.mxu0 %v507
          %612 = vmatprep.subr.mxu0 0.0
          %613 = vmatpush1.msra.mxu0 %v508
          %614 = vmatprep.subr.mxu0 0.0
          %615 = vmatpush1.msra.mxu0 %v509
          %616 = vmatprep.subr.mxu0 0.0
          %617 = vmatpush1.msra.mxu0 %v510
          %618 = vmatprep.subr.mxu0 0.0
          %619 = vmatpush1.msra.mxu0 %v511
          %620 = vmatprep.subr.mxu0 0.0
          %621 = vmatpush1.msra.mxu0 %v512
          %622 = vmatprep.subr.mxu0 0.0
          %623 = vmatpush1.msra.mxu0 %v513
          %624 = vmatprep.subr.mxu0 0.0
          %625 = vmatpush1.msra.mxu0 %v514
          %626 = vmatprep.subr.mxu0 0.0
          %627 = vmatpush1.msra.mxu0 %v515
          %628 = vmatprep.subr.mxu0 0.0
          %629 = vmatpush1.msra.mxu0 %v516
          %630 = vmatprep.subr.mxu0 0.0
          %631 = vmatpush1.msra.mxu0 %v517
          %632 = vmatprep.subr.mxu0 0.0
          %633 = vmatpush1.msra.mxu0 %v518
          %634 = vmatprep.subr.mxu0 0.0
          %635 = vmatpush1.msra.mxu0 %v519
          %636 = vmatprep.subr.mxu0 0.0
          %637 = vmatpush1.msra.mxu0 %v520
          %638 = vmatprep.subr.mxu0 0.0
          %639 = vmatpush1.msra.mxu0 %v521
          %640 = vmatprep.subr.mxu0 0.0
          %641 = vmatpush1.msra.mxu0 %v522
          %642 = vmatprep.subr.mxu0 0.0
          %643 = vmatpush1.msra.mxu0 %v523
          %644 = vmatprep.subr.mxu0 0.0
          %645 = vmatpush1.msra.mxu0 %v524
          %646 = vmatprep.subr.mxu0 0.0
          %647 = vmatpush1.msra.mxu0 %v525
          %648 = vmatprep.subr.mxu0 0.0
          %649 = vmatpush1.msra.mxu0 %v526
          %650 = vmatprep.subr.mxu0 0.0
          %651 = vmatpush1.msra.mxu0 %v527
          %652 = vmatprep.subr.mxu0 0.0
          %653 = vmatpush1.msra.mxu0 %v528
          %654 = vmatprep.subr.mxu0 0.0
          %655 = vmatpush1.msra.mxu0 %v529
          %656 = vmatprep.subr.mxu0 0.0
          %657 = vmatpush1.msra.mxu0 %v530
          %658 = vmatprep.subr.mxu0 0.0
          %659 = vmatpush1.msra.mxu0 %v531
          %660 = vmatprep.subr.mxu0 0.0
          %661 = vmatpush1.msra.mxu0 %v532
          %662 = vmatprep.subr.mxu0 0.0
          %663 = vmatpush1.msra.mxu0 %v533
          %664 = vmatprep.mubr.f32.mxu0 %v439
          %665 = vmatmul.mubr.f32.gmra.mrb[0].mxu0 %v438
          %v666 = vpop.f32.mrb[0].mxu0
          %v667 = vadd.f32 0.0, %v666
          %v668 = vpop.f32.mrb[0].mxu0
          %669 = vmatprep.mubr.f32.mxu0 %v443
          %670 = vmatmul.mubr.f32.gmra.mrb[0].mxu0 %v442
          %v671 = vpop.f32.mrb[0].mxu0
          %v672 = vadd.f32 0.0, %v671
          %v673 = vpop.f32.mrb[0].mxu0
          %674 = vmatprep.mubr.f32.mxu0 %v447
          %675 = vmatmul.mubr.f32.gmra.mrb[0].mxu0 %v446
          %v676 = vpop.f32.mrb[0].mxu0
          %v677 = vadd.f32 0.0, %v676
          %v678 = vpop.f32.mrb[0].mxu0
          %679 = vmatprep.mubr.f32.mxu0 %v451
          %680 = vmatmul.mubr.f32.gmra.mrb[0].mxu0 %v450
          %v681 = vpop.f32.mrb[0].mxu0
          %v682 = vadd.f32 0.0, %v681
          %v683 = vpop.f32.mrb[0].mxu0
          %684 = vmatprep.mubr.f32.mxu0 %v455
          %685 = vmatmul.mubr.f32.gmra.mrb[0].mxu0 %v454
          %v686 = vpop.f32.mrb[0].mxu0
          %v687 = vadd.f32 0.0, %v686
          %v688 = vpop.f32.mrb[0].mxu0
          %689 = vmatprep.mubr.f32.mxu0 %v459
          %690 = vmatmul.mubr.f32.gmra.mrb[0].mxu0 %v458
          %v691 = vpop.f32.mrb[0].mxu0
          %v692 = vadd.f32 0.0, %v691
          %v693 = vpop.f32.mrb[0].mxu0
          %694 = vmatprep.mubr.f32.mxu0 %v463
          %695 = vmatmul.mubr.f32.gmra.mrb[0].mxu0 %v462
          %v696 = vpop.f32.mrb[0].mxu0
          %v697 = vadd.f32 0.0, %v696
          %v698 = vpop.f32.mrb[0].mxu0
          %699 = vmatprep.mubr.f32.mxu0 %v467
          %700 = vmatmul.mubr.f32.gmra.mrb[0].mxu0 %v466
          %v701 = vpop.f32.mrb[0].mxu0
          %v702 = vadd.f32 0.0, %v701
          %v703 = vpop.f32.mrb[0].mxu0
          %704 = vmatprep.mubr.f32.mxu0 %v471
          %705 = vmatmul.mubr.f32.gmra.mrb[0].mxu0 %v470
          %v706 = vpop.f32.mrb[0].mxu0
          %v707 = vadd.f32 0.0, %v706
          %v708 = vpop.f32.mrb[0].mxu0
          %709 = vmatprep.mubr.f32.mxu0 %v475
          %710 = vmatmul.mubr.f32.gmra.mrb[0].mxu0 %v474
          %v711 = vpop.f32.mrb[0].mxu0
          %v712 = vadd.f32 0.0, %v711
          %v713 = vpop.f32.mrb[0].mxu0
          %714 = vmatprep.mubr.f32.mxu0 %v479
          %715 = vmatmul.mubr.f32.gmra.mrb[0].mxu0 %v478
          %v716 = vpop.f32.mrb[0].mxu0
          %v717 = vadd.f32 0.0, %v716
          %v718 = vpop.f32.mrb[0].mxu0
          %719 = vmatprep.mubr.f32.mxu0 %v483
          %720 = vmatmul.mubr.f32.gmra.mrb[0].mxu0 %v482
          %v721 = vpop.f32.mrb[0].mxu0
          %v722 = vadd.f32 0.0, %v721
          %v723 = vpop.f32.mrb[0].mxu0
          %724 = vmatprep.mubr.f32.mxu0 %v487
          %725 = vmatmul.mubr.f32.gmra.mrb[0].mxu0 %v486
          %v726 = vpop.f32.mrb[0].mxu0
          %v727 = vadd.f32 0.0, %v726
          %v728 = vpop.f32.mrb[0].mxu0
          %729 = vmatprep.mubr.f32.mxu0 %v491
          %730 = vmatmul.mubr.f32.gmra.mrb[0].mxu0 %v490
          %v731 = vpop.f32.mrb[0].mxu0
          %v732 = vadd.f32 0.0, %v731
          %v733 = vpop.f32.mrb[0].mxu0
          %734 = vmatprep.mubr.f32.mxu0 %v495
          %735 = vmatmul.mubr.f32.gmra.mrb[0].mxu0 %v494
          %v736 = vpop.f32.mrb[0].mxu0
          %v737 = vadd.f32 0.0, %v736
          %v738 = vpop.f32.mrb[0].mxu0
          %739 = vmatprep.mubr.f32.mxu0 %v499
          %740 = vmatmul.mubr.f32.gmra.mrb[0].mxu0 %v498
          %v741 = vpop.f32.mrb[0].mxu0
          %v742 = vadd.f32 0.0, %v741
          %v743 = vpop.f32.mrb[0].mxu0
          %744 = vdwg.mxu0
          %745 = vmatprep.subr.mxu0 0.0
          %746 = vmatpush1.msra.mxu0 %v534
          %747 = vmatprep.subr.mxu0 0.0
          %748 = vmatpush1.msra.mxu0 %v535
          %749 = vmatprep.subr.mxu0 0.0
          %750 = vmatpush1.msra.mxu0 %v536
          %751 = vmatprep.subr.mxu0 0.0
          %752 = vmatpush1.msra.mxu0 %v537
          %753 = vmatprep.subr.mxu0 0.0
          %754 = vmatpush1.msra.mxu0 %v538
          %755 = vmatprep.subr.mxu0 0.0
          %756 = vmatpush1.msra.mxu0 %v539
          %757 = vmatprep.subr.mxu0 0.0
          %758 = vmatpush1.msra.mxu0 %v540
          %759 = vmatprep.subr.mxu0 0.0
          %760 = vmatpush1.msra.mxu0 %v541
          %761 = vmatprep.subr.mxu0 0.0
          %762 = vmatpush1.msra.mxu0 %v542
          %763 = vmatprep.subr.mxu0 0.0
          %764 = vmatpush1.msra.mxu0 %v543
          %765 = vmatprep.subr.mxu0 0.0
          %766 = vmatpush1.msra.mxu0 %v544
          %767 = vmatprep.subr.mxu0 0.0
          %768 = vmatpush1.msra.mxu0 %v545
          %769 = vmatprep.subr.mxu0 0.0
          %770 = vmatpush1.msra.mxu0 %v546
          %771 = vmatprep.subr.mxu0 0.0
          %772 = vmatpush1.msra.mxu0 %v547
          %773 = vmatprep.subr.mxu0 0.0
          %774 = vmatpush1.msra.mxu0 %v548
          %775 = vmatprep.subr.mxu0 0.0
          %776 = vmatpush1.msra.mxu0 %v549
          %777 = vmatprep.subr.mxu0 0.0
          %778 = vmatpush1.msra.mxu0 %v550
          %779 = vmatprep.subr.mxu0 0.0
          %780 = vmatpush1.msra.mxu0 0.0
          %781 = vmatprep.subr.mxu0 0.0
          %782 = vmatpush1.msra.mxu0 0.0
          %783 = vmatprep.subr.mxu0 0.0
          %784 = vmatpush1.msra.mxu0 0.0
          %785 = vmatprep.subr.mxu0 0.0
          %786 = vmatpush1.msra.mxu0 0.0
          %787 = vmatprep.subr.mxu0 0.0
          %788 = vmatpush1.msra.mxu0 0.0
          %789 = vmatprep.subr.mxu0 0.0
          %790 = vmatpush1.msra.mxu0 0.0
          %791 = vmatprep.subr.mxu0 0.0
          %792 = vmatpush1.msra.mxu0 0.0
          %793 = vmatprep.subr.mxu0 0.0
          %794 = vmatpush1.msra.mxu0 0.0
          %795 = vmatprep.subr.mxu0 0.0
          %796 = vmatpush1.msra.mxu0 0.0
          %797 = vmatprep.subr.mxu0 0.0
          %798 = vmatpush1.msra.mxu0 0.0
          %799 = vmatprep.subr.mxu0 0.0
          %800 = vmatpush1.msra.mxu0 0.0
          %801 = vmatprep.subr.mxu0 0.0
          %802 = vmatpush1.msra.mxu0 0.0
          %803 = vmatprep.subr.mxu0 0.0
          %804 = vmatpush1.msra.mxu0 0.0
          %805 = vmatprep.subr.mxu0 0.0
          %806 = vmatpush1.msra.mxu0 0.0
          %807 = vmatprep.subr.mxu0 0.0
          %808 = vmatpush1.msra.mxu0 0.0
          %809 = vmatprep.mubr.f32.mxu0 %v553
          %810 = vmatmul.mubr.f32.gmra.mrb[0].mxu0 %v440
          %v811 = vpop.f32.mrb[0].mxu0
          %v812 = vadd.f32 %v667, %v811
          %v813 = vpop.f32.mrb[0].mxu0
          %814 = vmatprep.mubr.f32.mxu0 %v556
          %815 = vmatmul.mubr.f32.gmra.mrb[0].mxu0 %v444
          %v816 = vpop.f32.mrb[0].mxu0
          %v817 = vadd.f32 %v672, %v816
          %v818 = vpop.f32.mrb[0].mxu0
          %819 = vmatprep.mubr.f32.mxu0 %v559
          %820 = vmatmul.mubr.f32.gmra.mrb[0].mxu0 %v448
          %v821 = vpop.f32.mrb[0].mxu0
          %v822 = vadd.f32 %v677, %v821
          %v823 = vpop.f32.mrb[0].mxu0
          %824 = vmatprep.mubr.f32.mxu0 %v562
          %825 = vmatmul.mubr.f32.gmra.mrb[0].mxu0 %v452
          %v826 = vpop.f32.mrb[0].mxu0
          %v827 = vadd.f32 %v682, %v826
          %v828 = vpop.f32.mrb[0].mxu0
          %829 = vmatprep.mubr.f32.mxu0 %v565
          %830 = vmatmul.mubr.f32.gmra.mrb[0].mxu0 %v456
          %v831 = vpop.f32.mrb[0].mxu0
          %v832 = vadd.f32 %v687, %v831
          %v833 = vpop.f32.mrb[0].mxu0
          %834 = vmatprep.mubr.f32.mxu0 %v568
          %835 = vmatmul.mubr.f32.gmra.mrb[0].mxu0 %v460
          %v836 = vpop.f32.mrb[0].mxu0
          %v837 = vadd.f32 %v692, %v836
          %v838 = vpop.f32.mrb[0].mxu0
          %839 = vmatprep.mubr.f32.mxu0 %v571
          %840 = vmatmul.mubr.f32.gmra.mrb[0].mxu0 %v464
          %v841 = vpop.f32.mrb[0].mxu0
          %v842 = vadd.f32 %v697, %v841
          %v843 = vpop.f32.mrb[0].mxu0
          %844 = vmatprep.mubr.f32.mxu0 %v574
          %845 = vmatmul.mubr.f32.gmra.mrb[0].mxu0 %v468
          %v846 = vpop.f32.mrb[0].mxu0
          %v847 = vadd.f32 %v702, %v846
          %v848 = vpop.f32.mrb[0].mxu0
          %849 = vmatprep.mubr.f32.mxu0 %v577
          %850 = vmatmul.mubr.f32.gmra.mrb[0].mxu0 %v472
          %v851 = vpop.f32.mrb[0].mxu0
          %v852 = vadd.f32 %v707, %v851
          %v853 = vpop.f32.mrb[0].mxu0
          %854 = vmatprep.mubr.f32.mxu0 %v580
          %855 = vmatmul.mubr.f32.gmra.mrb[0].mxu0 %v476
          %v856 = vpop.f32.mrb[0].mxu0
          %v857 = vadd.f32 %v712, %v856
          %v858 = vpop.f32.mrb[0].mxu0
          %859 = vmatprep.mubr.f32.mxu0 %v583
          %860 = vmatmul.mubr.f32.gmra.mrb[0].mxu0 %v480
          %v861 = vpop.f32.mrb[0].mxu0
          %v862 = vadd.f32 %v717, %v861
          %v863 = vpop.f32.mrb[0].mxu0
          %864 = vmatprep.mubr.f32.mxu0 %v586
          %865 = vmatmul.mubr.f32.gmra.mrb[0].mxu0 %v484
          %v866 = vpop.f32.mrb[0].mxu0
          %v867 = vadd.f32 %v722, %v866
          %v868 = vpop.f32.mrb[0].mxu0
          %869 = vmatprep.mubr.f32.mxu0 %v589
          %870 = vmatmul.mubr.f32.gmra.mrb[0].mxu0 %v488
          %v871 = vpop.f32.mrb[0].mxu0
          %v872 = vadd.f32 %v727, %v871
          %v873 = vpop.f32.mrb[0].mxu0
          %874 = vmatprep.mubr.f32.mxu0 %v592
          %875 = vmatmul.mubr.f32.gmra.mrb[0].mxu0 %v492
          %v876 = vpop.f32.mrb[0].mxu0
          %v877 = vadd.f32 %v732, %v876
          %v878 = vpop.f32.mrb[0].mxu0
          %879 = vmatprep.mubr.f32.mxu0 %v595
          %880 = vmatmul.mubr.f32.gmra.mrb[0].mxu0 %v496
          %v881 = vpop.f32.mrb[0].mxu0
          %v882 = vadd.f32 %v737, %v881
          %v883 = vpop.f32.mrb[0].mxu0
          %884 = vmatprep.mubr.f32.mxu0 %v598
          %885 = vmatmul.mubr.f32.gmra.mrb[0].mxu0 %v500
          %v886 = vpop.f32.mrb[0].mxu0
          %v887 = vadd.f32 %v742, %v886
          %v888 = vpop.f32.mrb[0].mxu0
          %889 = vdwg.mxu0
          %v890 = vld [vmem:[#allocation3] sm:$0xff]
          %v891 = vld [vmem:[#allocation3 + $0x8] sm:$0xff]
          %v892 = vld [vmem:[#allocation6] sm:$0x1]
          %v894 = vlaneseq
          %v895 = vshrl.u32 %v894, 7
          %v896 = vsub.s32 0, %v895
          %v897 = vrot.slane %v892, %v896
          %vm899 = vcmask 130048
          %v901 = vsel %vm899, %v812, 0
          %v904 = vsel %vm899, %v817, 0
          %v907 = vsel %vm899, %v822, 0
          %v910 = vsel %vm899, %v827, 0
          %v913 = vsel %vm899, %v832, 0
          %v916 = vsel %vm899, %v837, 0
          %v919 = vsel %vm899, %v842, 0
          %v922 = vsel %vm899, %v847, 0
          %v925 = vsel %vm899, %v852, 0
          %v928 = vsel %vm899, %v857, 0
          %v931 = vsel %vm899, %v862, 0
          %v934 = vsel %vm899, %v867, 0
          %v937 = vsel %vm899, %v872, 0
          %v940 = vsel %vm899, %v877, 0
          %v943 = vsel %vm899, %v882, 0
          %v946 = vsel %vm899, %v887, 0
          %948 = vmatprep.subr.mxu0 0.0
          %949 = vmatpush1.msra.mxu0 %v890
          %950 = vmatprep.subr.mxu0 0.0
          %951 = vmatpush1.msra.mxu0 %v891
          %952 = vmatprep.subr.mxu0 0.0
          %953 = vmatpush1.msra.mxu0 0.0
          %954 = vmatprep.subr.mxu0 0.0
          %955 = vmatpush1.msra.mxu0 0.0
          %956 = vmatprep.subr.mxu0 0.0
          %957 = vmatpush1.msra.mxu0 0.0
          %958 = vmatprep.subr.mxu0 0.0
          %959 = vmatpush1.msra.mxu0 0.0
          %960 = vmatprep.subr.mxu0 0.0
          %961 = vmatpush1.msra.mxu0 0.0
          %962 = vmatprep.subr.mxu0 0.0
          %963 = vmatpush1.msra.mxu0 0.0
          %964 = vmatprep.subr.mxu0 0.0
          %965 = vmatpush1.msra.mxu0 0.0
          %966 = vmatprep.subr.mxu0 0.0
          %967 = vmatpush1.msra.mxu0 0.0
          %968 = vmatprep.subr.mxu0 0.0
          %969 = vmatpush1.msra.mxu0 0.0
          %970 = vmatprep.subr.mxu0 0.0
          %971 = vmatpush1.msra.mxu0 0.0
          %972 = vmatprep.subr.mxu0 0.0
          %973 = vmatpush1.msra.mxu0 0.0
          %974 = vmatprep.subr.mxu0 0.0
          %975 = vmatpush1.msra.mxu0 0.0
          %976 = vmatprep.subr.mxu0 0.0
          %977 = vmatpush1.msra.mxu0 0.0
          %978 = vmatprep.subr.mxu0 0.0
          %979 = vmatpush1.msra.mxu0 0.0
          %980 = vmatprep.subr.mxu0 0.0
          %981 = vmatpush1.msra.mxu0 0.0
          %982 = vmatprep.subr.mxu0 0.0
          %983 = vmatpush1.msra.mxu0 0.0
          %984 = vmatprep.subr.mxu0 0.0
          %985 = vmatpush1.msra.mxu0 0.0
          %986 = vmatprep.subr.mxu0 0.0
          %987 = vmatpush1.msra.mxu0 0.0
          %988 = vmatprep.subr.mxu0 0.0
          %989 = vmatpush1.msra.mxu0 0.0
          %990 = vmatprep.subr.mxu0 0.0
          %991 = vmatpush1.msra.mxu0 0.0
          %992 = vmatprep.subr.mxu0 0.0
          %993 = vmatpush1.msra.mxu0 0.0
          %994 = vmatprep.subr.mxu0 0.0
          %995 = vmatpush1.msra.mxu0 0.0
          %996 = vmatprep.subr.mxu0 0.0
          %997 = vmatpush1.msra.mxu0 0.0
          %998 = vmatprep.subr.mxu0 0.0
          %999 = vmatpush1.msra.mxu0 0.0
          %1000 = vmatprep.subr.mxu0 0.0
          %1001 = vmatpush1.msra.mxu0 0.0
          %1002 = vmatprep.subr.mxu0 0.0
          %1003 = vmatpush1.msra.mxu0 0.0
          %1004 = vmatprep.subr.mxu0 0.0
          %1005 = vmatpush1.msra.mxu0 0.0
          %1006 = vmatprep.subr.mxu0 0.0
          %1007 = vmatpush1.msra.mxu0 0.0
          %1008 = vmatprep.subr.mxu0 0.0
          %1009 = vmatpush1.msra.mxu0 0.0
          %1010 = vmatprep.subr.mxu0 0.0
          %1011 = vmatpush1.msra.mxu0 0.0
          %1012 = vmatprep.mubr.f32.mxu0 0.0
          %1013 = vmatmul.mubr.f32.gmra.mrb[0].mxu0 %v901
          %v1014 = vpop.f32.mrb[0].mxu0
          %v1015 = vadd.f32 %v897, %v1014
          %v1016 = vpop.f32.mrb[0].mxu0
          %1017 = vmatprep.mubr.f32.mxu0 0.0
          %1018 = vmatmul.mubr.f32.gmra.mrb[0].mxu0 %v904
          %v1019 = vpop.f32.mrb[0].mxu0
          %v1020 = vadd.f32 %v897, %v1019
          %v1021 = vpop.f32.mrb[0].mxu0
          %1022 = vmatprep.mubr.f32.mxu0 0.0
          %1023 = vmatmul.mubr.f32.gmra.mrb[0].mxu0 %v907
          %v1024 = vpop.f32.mrb[0].mxu0
          %v1025 = vadd.f32 %v897, %v1024
          %v1026 = vpop.f32.mrb[0].mxu0
          %1027 = vmatprep.mubr.f32.mxu0 0.0
          %1028 = vmatmul.mubr.f32.gmra.mrb[0].mxu0 %v910
          %v1029 = vpop.f32.mrb[0].mxu0
          %v1030 = vadd.f32 %v897, %v1029
          %v1031 = vpop.f32.mrb[0].mxu0
          %1032 = vmatprep.mubr.f32.mxu0 0.0
          %1033 = vmatmul.mubr.f32.gmra.mrb[0].mxu0 %v913
          %v1034 = vpop.f32.mrb[0].mxu0
          %v1035 = vadd.f32 %v897, %v1034
          %v1036 = vpop.f32.mrb[0].mxu0
          %1037 = vmatprep.mubr.f32.mxu0 0.0
          %1038 = vmatmul.mubr.f32.gmra.mrb[0].mxu0 %v916
          %v1039 = vpop.f32.mrb[0].mxu0
          %v1040 = vadd.f32 %v897, %v1039
          %v1041 = vpop.f32.mrb[0].mxu0
          %1042 = vmatprep.mubr.f32.mxu0 0.0
          %1043 = vmatmul.mubr.f32.gmra.mrb[0].mxu0 %v919
          %v1044 = vpop.f32.mrb[0].mxu0
          %v1045 = vadd.f32 %v897, %v1044
          %v1046 = vpop.f32.mrb[0].mxu0
          %1047 = vmatprep.mubr.f32.mxu0 0.0
          %1048 = vmatmul.mubr.f32.gmra.mrb[0].mxu0 %v922
          %v1049 = vpop.f32.mrb[0].mxu0
          %v1050 = vadd.f32 %v897, %v1049
          %v1051 = vpop.f32.mrb[0].mxu0
          %1052 = vmatprep.mubr.f32.mxu0 0.0
          %1053 = vmatmul.mubr.f32.gmra.mrb[0].mxu0 %v925
          %v1054 = vpop.f32.mrb[0].mxu0
          %v1055 = vadd.f32 %v897, %v1054
          %v1056 = vpop.f32.mrb[0].mxu0
          %1057 = vmatprep.mubr.f32.mxu0 0.0
          %1058 = vmatmul.mubr.f32.gmra.mrb[0].mxu0 %v928
          %v1059 = vpop.f32.mrb[0].mxu0
          %v1060 = vadd.f32 %v897, %v1059
          %v1061 = vpop.f32.mrb[0].mxu0
          %1062 = vmatprep.mubr.f32.mxu0 0.0
          %1063 = vmatmul.mubr.f32.gmra.mrb[0].mxu0 %v931
          %v1064 = vpop.f32.mrb[0].mxu0
          %v1065 = vadd.f32 %v897, %v1064
          %v1066 = vpop.f32.mrb[0].mxu0
          %1067 = vmatprep.mubr.f32.mxu0 0.0
          %1068 = vmatmul.mubr.f32.gmra.mrb[0].mxu0 %v934
          %v1069 = vpop.f32.mrb[0].mxu0
          %v1070 = vadd.f32 %v897, %v1069
          %v1071 = vpop.f32.mrb[0].mxu0
          %1072 = vmatprep.mubr.f32.mxu0 0.0
          %1073 = vmatmul.mubr.f32.gmra.mrb[0].mxu0 %v937
          %v1074 = vpop.f32.mrb[0].mxu0
          %v1075 = vadd.f32 %v897, %v1074
          %v1076 = vpop.f32.mrb[0].mxu0
          %1077 = vmatprep.mubr.f32.mxu0 0.0
          %1078 = vmatmul.mubr.f32.gmra.mrb[0].mxu0 %v940
          %v1079 = vpop.f32.mrb[0].mxu0
          %v1080 = vadd.f32 %v897, %v1079
          %v1081 = vpop.f32.mrb[0].mxu0
          %1082 = vmatprep.mubr.f32.mxu0 0.0
          %1083 = vmatmul.mubr.f32.gmra.mrb[0].mxu0 %v943
          %v1084 = vpop.f32.mrb[0].mxu0
          %v1085 = vadd.f32 %v897, %v1084
          %v1086 = vpop.f32.mrb[0].mxu0
          %1087 = vmatprep.mubr.f32.mxu0 0.0
          %1088 = vmatmul.mubr.f32.gmra.mrb[0].mxu0 %v946
          %v1089 = vpop.f32.mrb[0].mxu0
          %v1090 = vadd.f32 %v897, %v1089
          %v1091 = vpop.f32.mrb[0].mxu0
          %1092 = vdwg.mxu0
          %v1093 = vmax.f32 %v1015, 0.0
          %v1094 = vmax.f32 %v1020, 0.0
          %v1095 = vmax.f32 %v1025, 0.0
          %v1096 = vmax.f32 %v1030, 0.0
          %v1097 = vmax.f32 %v1035, 0.0
          %v1098 = vmax.f32 %v1040, 0.0
          %v1099 = vmax.f32 %v1045, 0.0
          %v1100 = vmax.f32 %v1050, 0.0
          %v1101 = vmax.f32 %v1055, 0.0
          %v1102 = vmax.f32 %v1060, 0.0
          %v1103 = vmax.f32 %v1065, 0.0
          %v1104 = vmax.f32 %v1070, 0.0
          %v1105 = vmax.f32 %v1075, 0.0
          %v1106 = vmax.f32 %v1080, 0.0
          %v1107 = vmax.f32 %v1085, 0.0
          %v1108 = vmax.f32 %v1090, 0.0
          %v1109 = vpack.c.bf16 %v1093, %v1093
          %1110 = vst [vmem:[#allocation2] sm:$0xf] %v1109
          %v1111 = vpack.c.bf16 %v1094, %v1094
          %1112 = vst [vmem:[#allocation2 + $0x4] sm:$0xf] %v1111
          %v1113 = vpack.c.bf16 %v1095, %v1095
          %1114 = vst [vmem:[#allocation2 + $0x8] sm:$0xf] %v1113
          %v1115 = vpack.c.bf16 %v1096, %v1096
          %1116 = vst [vmem:[#allocation2 + $0xc] sm:$0xf] %v1115
          %v1117 = vpack.c.bf16 %v1097, %v1097
          %1118 = vst [vmem:[#allocation2 + $0x10] sm:$0xf] %v1117
          %v1119 = vpack.c.bf16 %v1098, %v1098
          %1120 = vst [vmem:[#allocation2 + $0x14] sm:$0xf] %v1119
          %v1121 = vpack.c.bf16 %v1099, %v1099
          %1122 = vst [vmem:[#allocation2 + $0x18] sm:$0xf] %v1121
          %v1123 = vpack.c.bf16 %v1100, %v1100
          %1124 = vst [vmem:[#allocation2 + $0x1c] sm:$0xf] %v1123
          %v1125 = vpack.c.bf16 %v1101, %v1101
          %1126 = vst [vmem:[#allocation2 + $0x20] sm:$0xf] %v1125
          %v1127 = vpack.c.bf16 %v1102, %v1102
          %1128 = vst [vmem:[#allocation2 + $0x24] sm:$0xf] %v1127
          %v1129 = vpack.c.bf16 %v1103, %v1103
          %1130 = vst [vmem:[#allocation2 + $0x28] sm:$0xf] %v1129
          %v1131 = vpack.c.bf16 %v1104, %v1104
          %1132 = vst [vmem:[#allocation2 + $0x2c] sm:$0xf] %v1131
          %v1133 = vpack.c.bf16 %v1105, %v1105
          %1134 = vst [vmem:[#allocation2 + $0x30] sm:$0xf] %v1133
          %v1135 = vpack.c.bf16 %v1106, %v1106
          %1136 = vst [vmem:[#allocation2 + $0x34] sm:$0xf] %v1135
          %v1137 = vpack.c.bf16 %v1107, %v1107
          %1138 = vst [vmem:[#allocation2 + $0x38] sm:$0xf] %v1137
          %v1139 = vpack.c.bf16 %v1108, %v1108
          %1140 = vst [vmem:[#allocation2 + $0x3c] sm:$0xf] %v1139
          %1141 = vst [vmem:[%s423] sm:$0xff] 0.0
        $region72: #{tpu_custom_call.1} parent=47 // pred_fallthru
          _
        %v1142 = vld [vmem:[#allocation2] sm:$0xff]
        %v1143 = vld [vmem:[#allocation2 + $0x8] sm:$0xff]
        %v1144 = vld [vmem:[#allocation2 + $0x10] sm:$0xff]
        %v1145 = vld [vmem:[#allocation2 + $0x18] sm:$0xff]
        %v1146 = vld [vmem:[#allocation2 + $0x20] sm:$0xff]
        %v1147 = vld [vmem:[#allocation2 + $0x28] sm:$0xff]
        %v1148 = vld [vmem:[#allocation2 + $0x30] sm:$0xff]
        %v1149 = vld [vmem:[#allocation2 + $0x38] sm:$0xff]
        %v1150 = vld [vmem:[%s365] sm:$0xff]
        %v1151 = vld [vmem:[%s365 + $0x8] sm:$0xff]
        %v1152 = vld [vmem:[%s365 + $0x10] sm:$0xff]
        %v1153 = vld [vmem:[%s365 + $0x18] sm:$0xff]
        %v1154 = vld [vmem:[%s365 + $0x20] sm:$0xff]
        %v1155 = vld [vmem:[%s365 + $0x28] sm:$0xff]
        %v1156 = vld [vmem:[%s365 + $0x30] sm:$0xff]
        %v1157 = vld [vmem:[%s365 + $0x38] sm:$0xff]
        %v1158 = vld [vmem:[%s365 + $0x40] sm:$0xff]
        %v1159 = vld [vmem:[%s365 + $0x48] sm:$0xff]
        %v1160 = vld [vmem:[%s365 + $0x50] sm:$0xff]
        %v1161 = vld [vmem:[%s365 + $0x58] sm:$0xff]
        %v1162 = vld [vmem:[%s365 + $0x60] sm:$0xff]
        %v1163 = vld [vmem:[%s365 + $0x68] sm:$0xff]
        %v1164 = vld [vmem:[%s365 + $0x70] sm:$0xff]
        %v1165 = vld [vmem:[%s365 + $0x78] sm:$0xff]
        %v1166 = vld [vmem:[%s365 + $0x80] sm:$0xff]
        %v1167 = vld [vmem:[%s365 + $0x88] sm:$0xff]
        %v1168 = vld [vmem:[%s365 + $0x90] sm:$0xff]
        %v1169 = vld [vmem:[%s365 + $0x98] sm:$0xff]
        %v1170 = vld [vmem:[%s365 + $0xa0] sm:$0xff]
        %v1171 = vld [vmem:[%s365 + $0xa8] sm:$0xff]
        %v1172 = vld [vmem:[%s365 + $0xb0] sm:$0xff]
        %v1173 = vld [vmem:[%s365 + $0xb8] sm:$0xff]
        %v1174 = vld [vmem:[%s365 + $0xc0] sm:$0xff]
        %v1175 = vld [vmem:[%s365 + $0xc8] sm:$0xff]
        %v1176 = vld [vmem:[%s365 + $0xd0] sm:$0xff]
        %v1177 = vld [vmem:[%s365 + $0xd8] sm:$0xff]
        %v1178 = vld [vmem:[%s365 + $0xe0] sm:$0xff]
        %v1179 = vld [vmem:[%s365 + $0xe8] sm:$0xff]
        %v1180 = vld [vmem:[%s365 + $0xf0] sm:$0xff]
        %v1181 = vld [vmem:[%s365 + $0xf8] sm:$0xff]
        %v1182 = vld [vmem:[%s365 + $0x100] sm:$0xff]
        %v1183 = vld [vmem:[%s365 + $0x108] sm:$0xff]
        %v1184 = vld [vmem:[%s365 + $0x110] sm:$0xff]
        %v1185 = vld [vmem:[%s365 + $0x118] sm:$0xff]
        %v1186 = vld [vmem:[%s365 + $0x120] sm:$0xff]
        %v1187 = vld [vmem:[%s365 + $0x128] sm:$0xff]
        %v1188 = vld [vmem:[%s365 + $0x130] sm:$0xff]
        %v1189 = vld [vmem:[%s365 + $0x138] sm:$0xff]
        %v1190 = vld [vmem:[%s365 + $0x140] sm:$0xff]
        %v1191 = vld [vmem:[%s365 + $0x148] sm:$0xff]
        %v1192 = vld [vmem:[%s365 + $0x150] sm:$0xff]
        %v1193 = vld [vmem:[%s365 + $0x158] sm:$0xff]
        %v1194 = vld [vmem:[%s365 + $0x160] sm:$0xff]
        %v1195 = vld [vmem:[%s365 + $0x168] sm:$0xff]
        %v1196 = vld [vmem:[%s365 + $0x170] sm:$0xff]
        %v1197 = vld [vmem:[%s365 + $0x178] sm:$0xff]
        %v1198 = vld [vmem:[%s365 + $0x180] sm:$0xff]
        %v1199 = vld [vmem:[%s365 + $0x188] sm:$0xff]
        %v1200 = vld [vmem:[%s365 + $0x190] sm:$0xff]
        %v1201 = vld [vmem:[%s365 + $0x198] sm:$0xff]
        %v1202 = vld [vmem:[%s365 + $0x1a0] sm:$0xff]
        %v1203 = vld [vmem:[%s365 + $0x1a8] sm:$0xff]
        %v1204 = vld [vmem:[%s365 + $0x1b0] sm:$0xff]
        %v1205 = vld [vmem:[%s365 + $0x1b8] sm:$0xff]
        %v1206 = vld [vmem:[%s365 + $0x1c0] sm:$0xff]
        %v1207 = vld [vmem:[%s365 + $0x1c8] sm:$0xff]
        %v1208 = vld [vmem:[%s365 + $0x1d0] sm:$0xff]
        %v1209 = vld [vmem:[%s365 + $0x1d8] sm:$0xff]
        %v1210 = vld [vmem:[%s365 + $0x1e0] sm:$0xff]
        %v1211 = vld [vmem:[%s365 + $0x1e8] sm:$0xff]
        %v1212 = vld [vmem:[%s365 + $0x1f0] sm:$0xff]
        %v1213 = vld [vmem:[%s365 + $0x1f8] sm:$0xff]
        %v1214 = vld [vmem:[%s365 + $0x200] sm:$0xff]
        %v1215 = vld [vmem:[%s365 + $0x208] sm:$0xff]
        %v1216 = vld [vmem:[%s365 + $0x210] sm:$0xff]
        %v1217 = vld [vmem:[%s365 + $0x218] sm:$0xff]
        %v1218 = vld [vmem:[%s365 + $0x220] sm:$0xff]
        %v1219 = vld [vmem:[%s365 + $0x228] sm:$0xff]
        %v1220 = vld [vmem:[%s365 + $0x230] sm:$0xff]
        %v1221 = vld [vmem:[%s365 + $0x238] sm:$0xff]
        %v1222 = vld [vmem:[%s365 + $0x240] sm:$0xff]
        %v1223 = vld [vmem:[%s365 + $0x248] sm:$0xff]
        %v1224 = vld [vmem:[%s365 + $0x250] sm:$0xff]
        %v1225 = vld [vmem:[%s365 + $0x258] sm:$0xff]
        %v1226 = vld [vmem:[%s365 + $0x260] sm:$0xff]
        %v1227 = vld [vmem:[%s365 + $0x268] sm:$0xff]
        %v1228 = vld [vmem:[%s365 + $0x270] sm:$0xff]
        %v1229 = vld [vmem:[%s365 + $0x278] sm:$0xff]
        %v1230 = vld [vmem:[%s365 + $0x280] sm:$0xff]
        %v1231 = vld [vmem:[%s365 + $0x288] sm:$0xff]
        %v1232 = vld [vmem:[%s365 + $0x290] sm:$0xff]
        %v1233 = vld [vmem:[%s365 + $0x298] sm:$0xff]
        %v1234 = vld [vmem:[%s365 + $0x2a0] sm:$0xff]
        %v1235 = vld [vmem:[%s365 + $0x2a8] sm:$0xff]
        %v1236 = vld [vmem:[%s365 + $0x2b0] sm:$0xff]
        %v1237 = vld [vmem:[%s365 + $0x2b8] sm:$0xff]
        %v1238 = vld [vmem:[%s365 + $0x2c0] sm:$0xff]
        %v1239 = vld [vmem:[%s365 + $0x2c8] sm:$0xff]
        %v1240 = vld [vmem:[%s365 + $0x2d0] sm:$0xff]
        %v1241 = vld [vmem:[%s365 + $0x2d8] sm:$0xff]
        %v1242 = vld [vmem:[%s365 + $0x2e0] sm:$0xff]
        %v1243 = vld [vmem:[%s365 + $0x2e8] sm:$0xff]
        %v1244 = vld [vmem:[%s365 + $0x2f0] sm:$0xff]
        %v1245 = vld [vmem:[%s365 + $0x2f8] sm:$0xff]
        %v1246 = vld [vmem:[%s365 + $0x300] sm:$0xff]
        %v1247 = vld [vmem:[%s365 + $0x308] sm:$0xff]
        %v1248 = vld [vmem:[%s365 + $0x310] sm:$0xff]
        %v1249 = vld [vmem:[%s365 + $0x318] sm:$0xff]
        %v1250 = vld [vmem:[%s365 + $0x320] sm:$0xff]
        %v1251 = vld [vmem:[%s365 + $0x328] sm:$0xff]
        %v1252 = vld [vmem:[%s365 + $0x330] sm:$0xff]
        %v1253 = vld [vmem:[%s365 + $0x338] sm:$0xff]
        %v1254 = vld [vmem:[%s365 + $0x340] sm:$0xff]
        %v1255 = vld [vmem:[%s365 + $0x348] sm:$0xff]
        %v1256 = vld [vmem:[%s365 + $0x350] sm:$0xff]
        %v1257 = vld [vmem:[%s365 + $0x358] sm:$0xff]
        %v1258 = vld [vmem:[%s365 + $0x360] sm:$0xff]
        %v1259 = vld [vmem:[%s365 + $0x368] sm:$0xff]
        %v1260 = vld [vmem:[%s365 + $0x370] sm:$0xff]
        %v1261 = vld [vmem:[%s365 + $0x378] sm:$0xff]
        %v1262 = vld [vmem:[%s365 + $0x380] sm:$0xff]
        %v1263 = vld [vmem:[%s365 + $0x388] sm:$0xff]
        %v1264 = vld [vmem:[%s365 + $0x390] sm:$0xff]
        %v1265 = vld [vmem:[%s365 + $0x398] sm:$0xff]
        %v1266 = vld [vmem:[%s365 + $0x3a0] sm:$0xff]
        %v1267 = vld [vmem:[%s365 + $0x3a8] sm:$0xff]
        %v1268 = vld [vmem:[%s365 + $0x3b0] sm:$0xff]
        %v1269 = vld [vmem:[%s365 + $0x3b8] sm:$0xff]
        %v1270 = vld [vmem:[%s365 + $0x3c0] sm:$0xff]
        %v1271 = vld [vmem:[%s365 + $0x3c8] sm:$0xff]
        %v1272 = vld [vmem:[%s365 + $0x3d0] sm:$0xff]
        %v1273 = vld [vmem:[%s365 + $0x3d8] sm:$0xff]
        %v1274 = vld [vmem:[%s365 + $0x3e0] sm:$0xff]
        %v1275 = vld [vmem:[%s365 + $0x3e8] sm:$0xff]
        %v1276 = vld [vmem:[%s365 + $0x3f0] sm:$0xff]
        %v1277 = vld [vmem:[%s365 + $0x3f8] sm:$0xff]
        %v1278 = vld [vmem:[%s365 + $0x400] sm:$0xff]
        %v1279 = vld [vmem:[%s365 + $0x408] sm:$0xff]
        %v1280 = vld [vmem:[%s365 + $0x410] sm:$0xff]
        %v1281 = vld [vmem:[%s365 + $0x418] sm:$0xff]
        %v1282 = vld [vmem:[%s365 + $0x420] sm:$0xff]
        %v1283 = vld [vmem:[%s365 + $0x428] sm:$0xff]
        %v1284 = vld [vmem:[%s365 + $0x430] sm:$0xff]
        %v1285 = vld [vmem:[%s365 + $0x438] sm:$0xff]
        %v1286 = vld [vmem:[%s365 + $0x440] sm:$0xff]
        %v1287 = vld [vmem:[%s365 + $0x448] sm:$0xff]
        %v1288 = vld [vmem:[%s365 + $0x450] sm:$0xff]
        %v1289 = vld [vmem:[%s365 + $0x458] sm:$0xff]
        %v1290 = vld [vmem:[%s365 + $0x460] sm:$0xff]
        %v1291 = vld [vmem:[%s365 + $0x468] sm:$0xff]
        %v1292 = vld [vmem:[%s365 + $0x470] sm:$0xff]
        %v1293 = vld [vmem:[%s365 + $0x478] sm:$0xff]
        %v1294 = vld [vmem:[%s365 + $0x480] sm:$0xff]
        %v1295 = vld [vmem:[%s365 + $0x488] sm:$0xff]
        %v1296 = vld [vmem:[%s365 + $0x490] sm:$0xff]
        %v1297 = vld [vmem:[%s365 + $0x498] sm:$0xff]
        %v1298 = vld [vmem:[%s365 + $0x4a0] sm:$0xff]
        %v1299 = vld [vmem:[%s365 + $0x4a8] sm:$0xff]
        %v1300 = vld [vmem:[%s365 + $0x4b0] sm:$0xff]
        %v1301 = vld [vmem:[%s365 + $0x4b8] sm:$0xff]
        %v1302 = vld [vmem:[%s365 + $0x4c0] sm:$0xff]
        %v1303 = vld [vmem:[%s365 + $0x4c8] sm:$0xff]
        %v1304 = vld [vmem:[%s365 + $0x4d0] sm:$0xff]
        %v1305 = vld [vmem:[%s365 + $0x4d8] sm:$0xff]
        %v1306 = vld [vmem:[%s365 + $0x4e0] sm:$0xff]
        %v1307 = vld [vmem:[%s365 + $0x4e8] sm:$0xff]
        %v1308 = vld [vmem:[%s365 + $0x4f0] sm:$0xff]
        %v1309 = vld [vmem:[%s365 + $0x4f8] sm:$0xff]
        %v1310 = vld [vmem:[%s365 + $0x500] sm:$0xff]
        %v1311 = vld [vmem:[%s365 + $0x508] sm:$0xff]
        %v1312 = vld [vmem:[%s365 + $0x510] sm:$0xff]
        %v1313 = vld [vmem:[%s365 + $0x518] sm:$0xff]
        %v1314 = vld [vmem:[%s365 + $0x520] sm:$0xff]
        %v1315 = vld [vmem:[%s365 + $0x528] sm:$0xff]
        %v1316 = vld [vmem:[%s365 + $0x530] sm:$0xff]
        %v1317 = vld [vmem:[%s365 + $0x538] sm:$0xff]
        %v1318 = vld [vmem:[%s365 + $0x540] sm:$0xff]
        %v1319 = vld [vmem:[%s365 + $0x548] sm:$0xff]
        %v1320 = vld [vmem:[%s365 + $0x550] sm:$0xff]
        %v1321 = vld [vmem:[%s365 + $0x558] sm:$0xff]
        %v1322 = vld [vmem:[%s365 + $0x560] sm:$0xff]
        %v1323 = vld [vmem:[%s365 + $0x568] sm:$0xff]
        %v1324 = vld [vmem:[%s365 + $0x570] sm:$0xff]
        %v1325 = vld [vmem:[%s365 + $0x578] sm:$0xff]
        %v1326 = vld [vmem:[%s365 + $0x580] sm:$0xff]
        %v1327 = vld [vmem:[%s365 + $0x588] sm:$0xff]
        %v1328 = vld [vmem:[%s365 + $0x590] sm:$0xff]
        %v1329 = vld [vmem:[%s365 + $0x598] sm:$0xff]
        %v1330 = vld [vmem:[%s365 + $0x5a0] sm:$0xff]
        %v1331 = vld [vmem:[%s365 + $0x5a8] sm:$0xff]
        %v1332 = vld [vmem:[%s365 + $0x5b0] sm:$0xff]
        %v1333 = vld [vmem:[%s365 + $0x5b8] sm:$0xff]
        %v1334 = vld [vmem:[%s365 + $0x5c0] sm:$0xff]
        %v1335 = vld [vmem:[%s365 + $0x5c8] sm:$0xff]
        %v1336 = vld [vmem:[%s365 + $0x5d0] sm:$0xff]
        %v1337 = vld [vmem:[%s365 + $0x5d8] sm:$0xff]
        %v1338 = vld [vmem:[%s365 + $0x5e0] sm:$0xff]
        %v1339 = vld [vmem:[%s365 + $0x5e8] sm:$0xff]
        %v1340 = vld [vmem:[%s365 + $0x5f0] sm:$0xff]
        %v1341 = vld [vmem:[%s365 + $0x5f8] sm:$0xff]
        %v1342 = vld [vmem:[%s365 + $0x600] sm:$0xff]
        %v1343 = vld [vmem:[%s365 + $0x608] sm:$0xff]
        %v1344 = vld [vmem:[%s365 + $0x610] sm:$0xff]
        %v1345 = vld [vmem:[%s365 + $0x618] sm:$0xff]
        %v1346 = vld [vmem:[%s365 + $0x620] sm:$0xff]
        %v1347 = vld [vmem:[%s365 + $0x628] sm:$0xff]
        %v1348 = vld [vmem:[%s365 + $0x630] sm:$0xff]
        %v1349 = vld [vmem:[%s365 + $0x638] sm:$0xff]
        %v1350 = vld [vmem:[%s365 + $0x640] sm:$0xff]
        %v1351 = vld [vmem:[%s365 + $0x648] sm:$0xff]
        %v1352 = vld [vmem:[%s365 + $0x650] sm:$0xff]
        %v1353 = vld [vmem:[%s365 + $0x658] sm:$0xff]
        %v1354 = vld [vmem:[%s365 + $0x660] sm:$0xff]
        %v1355 = vld [vmem:[%s365 + $0x668] sm:$0xff]
        %v1356 = vld [vmem:[%s365 + $0x670] sm:$0xff]
        %v1357 = vld [vmem:[%s365 + $0x678] sm:$0xff]
        %v1358 = vld [vmem:[%s365 + $0x680] sm:$0xff]
        %v1359 = vld [vmem:[%s365 + $0x688] sm:$0xff]
        %v1360 = vld [vmem:[%s365 + $0x690] sm:$0xff]
        %v1361 = vld [vmem:[%s365 + $0x698] sm:$0xff]
        %v1362 = vld [vmem:[%s365 + $0x6a0] sm:$0xff]
        %v1363 = vld [vmem:[%s365 + $0x6a8] sm:$0xff]
        %v1364 = vld [vmem:[%s365 + $0x6b0] sm:$0xff]
        %v1365 = vld [vmem:[%s365 + $0x6b8] sm:$0xff]
        %v1366 = vld [vmem:[%s365 + $0x6c0] sm:$0xff]
        %v1367 = vld [vmem:[%s365 + $0x6c8] sm:$0xff]
        %v1368 = vld [vmem:[%s365 + $0x6d0] sm:$0xff]
        %v1369 = vld [vmem:[%s365 + $0x6d8] sm:$0xff]
        %v1370 = vld [vmem:[%s365 + $0x6e0] sm:$0xff]
        %v1371 = vld [vmem:[%s365 + $0x6e8] sm:$0xff]
        %v1372 = vld [vmem:[%s365 + $0x6f0] sm:$0xff]
        %v1373 = vld [vmem:[%s365 + $0x6f8] sm:$0xff]
        %v1374 = vld [vmem:[%s365 + $0x700] sm:$0xff]
        %v1375 = vld [vmem:[%s365 + $0x708] sm:$0xff]
        %v1376 = vld [vmem:[%s365 + $0x710] sm:$0xff]
        %v1377 = vld [vmem:[%s365 + $0x718] sm:$0xff]
        %v1378 = vld [vmem:[%s365 + $0x720] sm:$0xff]
        %v1379 = vld [vmem:[%s365 + $0x728] sm:$0xff]
        %v1380 = vld [vmem:[%s365 + $0x730] sm:$0xff]
        %v1381 = vld [vmem:[%s365 + $0x738] sm:$0xff]
        %v1382 = vld [vmem:[%s365 + $0x740] sm:$0xff]
        %v1383 = vld [vmem:[%s365 + $0x748] sm:$0xff]
        %v1384 = vld [vmem:[%s365 + $0x750] sm:$0xff]
        %v1385 = vld [vmem:[%s365 + $0x758] sm:$0xff]
        %v1386 = vld [vmem:[%s365 + $0x760] sm:$0xff]
        %v1387 = vld [vmem:[%s365 + $0x768] sm:$0xff]
        %v1388 = vld [vmem:[%s365 + $0x770] sm:$0xff]
        %v1389 = vld [vmem:[%s365 + $0x778] sm:$0xff]
        %v1390 = vld [vmem:[%s365 + $0x780] sm:$0xff]
        %v1391 = vld [vmem:[%s365 + $0x788] sm:$0xff]
        %v1392 = vld [vmem:[%s365 + $0x790] sm:$0xff]
        %v1393 = vld [vmem:[%s365 + $0x798] sm:$0xff]
        %v1394 = vld [vmem:[%s365 + $0x7a0] sm:$0xff]
        %v1395 = vld [vmem:[%s365 + $0x7a8] sm:$0xff]
        %v1396 = vld [vmem:[%s365 + $0x7b0] sm:$0xff]
        %v1397 = vld [vmem:[%s365 + $0x7b8] sm:$0xff]
        %v1398 = vld [vmem:[%s365 + $0x7c0] sm:$0xff]
        %v1399 = vld [vmem:[%s365 + $0x7c8] sm:$0xff]
        %v1400 = vld [vmem:[%s365 + $0x7d0] sm:$0xff]
        %v1401 = vld [vmem:[%s365 + $0x7d8] sm:$0xff]
        %v1402 = vld [vmem:[%s365 + $0x7e0] sm:$0xff]
        %v1403 = vld [vmem:[%s365 + $0x7e8] sm:$0xff]
        %v1404 = vld [vmem:[%s365 + $0x7f0] sm:$0xff]
        %v1405 = vld [vmem:[%s365 + $0x7f8] sm:$0xff]
        %v1406 = vld [vmem:[%s374] sm:$0x3]
        %v1408 = vlaneseq
        %v1409 = vshrl.u32 %v1408, 7
        %v1410 = vsub.s32 0, %v1409
        %v1411 = vrot.slane %v1406, %v1410
        %v1412 = vlaneseq
        %v1413 = vshrl.u32 %v1412, 7
        %v1414 = vsub.s32 1, %v1413
        %v1415 = vrot.slane %v1406, %v1414
        %v1426 = vunpack.c.l.b16 %v1142
        %v1427 = vunpack.c.h.b16 %v1142
        %v1428 = vunpack.c.l.b16 %v1143
        %v1429 = vunpack.c.h.b16 %v1143
        %v1430 = vunpack.c.l.b16 %v1144
        %v1431 = vunpack.c.h.b16 %v1144
        %v1432 = vunpack.c.l.b16 %v1145
        %v1433 = vunpack.c.h.b16 %v1145
        %v1434 = vunpack.c.l.b16 %v1146
        %v1435 = vunpack.c.h.b16 %v1146
        %v1436 = vunpack.c.l.b16 %v1147
        %v1437 = vunpack.c.h.b16 %v1147
        %v1438 = vunpack.c.l.b16 %v1148
        %v1439 = vunpack.c.h.b16 %v1148
        %v1440 = vunpack.c.l.b16 %v1149
        %v1441 = vunpack.c.h.b16 %v1149
        %v1442 = vpack.c.b16 %v1426, %v1426
        %v1443 = vpack.c.b16 %v1427, %v1427
        %v1444 = vpack.c.b16 %v1428, %v1428
        %v1445 = vpack.c.b16 %v1429, %v1429
        %v1446 = vpack.c.b16 %v1430, %v1430
        %v1447 = vpack.c.b16 %v1431, %v1431
        %v1448 = vpack.c.b16 %v1432, %v1432
        %v1449 = vpack.c.b16 %v1433, %v1433
        %v1450 = vpack.c.b16 %v1434, %v1434
        %v1451 = vpack.c.b16 %v1435, %v1435
        %v1452 = vpack.c.b16 %v1436, %v1436
        %v1453 = vpack.c.b16 %v1437, %v1437
        %v1454 = vpack.c.b16 %v1438, %v1438
        %v1455 = vpack.c.b16 %v1439, %v1439
        %v1456 = vpack.c.b16 %v1440, %v1440
        %v1457 = vpack.c.b16 %v1441, %v1441
        %v1730 = vunpack.c.l.b16 %v1150
        %v1731 = vunpack.c.h.b16 %v1150
        %v1732 = vunpack.c.l.b16 %v1151
        %v1733 = vunpack.c.h.b16 %v1151
        %v1734 = vunpack.c.l.b16 %v1152
        %v1735 = vunpack.c.h.b16 %v1152
        %v1736 = vunpack.c.l.b16 %v1153
        %v1737 = vunpack.c.h.b16 %v1153
        %v1738 = vunpack.c.l.b16 %v1154
        %v1739 = vunpack.c.h.b16 %v1154
        %v1740 = vunpack.c.l.b16 %v1155
        %v1741 = vunpack.c.h.b16 %v1155
        %v1742 = vunpack.c.l.b16 %v1156
        %v1743 = vunpack.c.h.b16 %v1156
        %v1744 = vunpack.c.l.b16 %v1157
        %v1745 = vunpack.c.h.b16 %v1157
        %v1746 = vunpack.c.l.b16 %v1158
        %v1747 = vunpack.c.h.b16 %v1158
        %v1748 = vunpack.c.l.b16 %v1159
        %v1749 = vunpack.c.h.b16 %v1159
        %v1750 = vunpack.c.l.b16 %v1160
        %v1751 = vunpack.c.h.b16 %v1160
        %v1752 = vunpack.c.l.b16 %v1161
        %v1753 = vunpack.c.h.b16 %v1161
        %v1754 = vunpack.c.l.b16 %v1162
        %v1755 = vunpack.c.h.b16 %v1162
        %v1756 = vunpack.c.l.b16 %v1163
        %v1757 = vunpack.c.h.b16 %v1163
        %v1758 = vunpack.c.l.b16 %v1164
        %v1759 = vunpack.c.h.b16 %v1164
        %v1760 = vunpack.c.l.b16 %v1165
        %v1761 = vunpack.c.h.b16 %v1165
        %v1762 = vunpack.c.l.b16 %v1166
        %v1763 = vunpack.c.h.b16 %v1166
        %v1764 = vunpack.c.l.b16 %v1167
        %v1765 = vunpack.c.h.b16 %v1167
        %v1766 = vunpack.c.l.b16 %v1168
        %v1767 = vunpack.c.h.b16 %v1168
        %v1768 = vunpack.c.l.b16 %v1169
        %v1769 = vunpack.c.h.b16 %v1169
        %v1770 = vunpack.c.l.b16 %v1170
        %v1771 = vunpack.c.h.b16 %v1170
        %v1772 = vunpack.c.l.b16 %v1171
        %v1773 = vunpack.c.h.b16 %v1171
        %v1774 = vunpack.c.l.b16 %v1172
        %v1775 = vunpack.c.h.b16 %v1172
        %v1776 = vunpack.c.l.b16 %v1173
        %v1777 = vunpack.c.h.b16 %v1173
        %v1778 = vunpack.c.l.b16 %v1174
        %v1779 = vunpack.c.h.b16 %v1174
        %v1780 = vunpack.c.l.b16 %v1175
        %v1781 = vunpack.c.h.b16 %v1175
        %v1782 = vunpack.c.l.b16 %v1176
        %v1783 = vunpack.c.h.b16 %v1176
        %v1784 = vunpack.c.l.b16 %v1177
        %v1785 = vunpack.c.h.b16 %v1177
        %v1786 = vunpack.c.l.b16 %v1178
        %v1787 = vunpack.c.h.b16 %v1178
        %v1788 = vunpack.c.l.b16 %v1179
        %v1789 = vunpack.c.h.b16 %v1179
        %v1790 = vunpack.c.l.b16 %v1180
        %v1791 = vunpack.c.h.b16 %v1180
        %v1792 = vunpack.c.l.b16 %v1181
        %v1793 = vunpack.c.h.b16 %v1181
        %v1794 = vunpack.c.l.b16 %v1182
        %v1795 = vunpack.c.h.b16 %v1182
        %v1796 = vunpack.c.l.b16 %v1183
        %v1797 = vunpack.c.h.b16 %v1183
        %v1798 = vunpack.c.l.b16 %v1184
        %v1799 = vunpack.c.h.b16 %v1184
        %v1800 = vunpack.c.l.b16 %v1185
        %v1801 = vunpack.c.h.b16 %v1185
        %v1802 = vunpack.c.l.b16 %v1186
        %v1803 = vunpack.c.h.b16 %v1186
        %v1804 = vunpack.c.l.b16 %v1187
        %v1805 = vunpack.c.h.b16 %v1187
        %v1806 = vunpack.c.l.b16 %v1188
        %v1807 = vunpack.c.h.b16 %v1188
        %v1808 = vunpack.c.l.b16 %v1189
        %v1809 = vunpack.c.h.b16 %v1189
        %v1810 = vunpack.c.l.b16 %v1190
        %v1811 = vunpack.c.h.b16 %v1190
        %v1812 = vunpack.c.l.b16 %v1191
        %v1813 = vunpack.c.h.b16 %v1191
        %v1814 = vunpack.c.l.b16 %v1192
        %v1815 = vunpack.c.h.b16 %v1192
        %v1816 = vunpack.c.l.b16 %v1193
        %v1817 = vunpack.c.h.b16 %v1193
        %v1818 = vunpack.c.l.b16 %v1194
        %v1819 = vunpack.c.h.b16 %v1194
        %v1820 = vunpack.c.l.b16 %v1195
        %v1821 = vunpack.c.h.b16 %v1195
        %v1822 = vunpack.c.l.b16 %v1196
        %v1823 = vunpack.c.h.b16 %v1196
        %v1824 = vunpack.c.l.b16 %v1197
        %v1825 = vunpack.c.h.b16 %v1197
        %v1826 = vunpack.c.l.b16 %v1198
        %v1827 = vunpack.c.h.b16 %v1198
        %v1828 = vunpack.c.l.b16 %v1199
        %v1829 = vunpack.c.h.b16 %v1199
        %v1830 = vunpack.c.l.b16 %v1200
        %v1831 = vunpack.c.h.b16 %v1200
        %v1832 = vunpack.c.l.b16 %v1201
        %v1833 = vunpack.c.h.b16 %v1201
        %v1834 = vunpack.c.l.b16 %v1202
        %v1835 = vunpack.c.h.b16 %v1202
        %v1836 = vunpack.c.l.b16 %v1203
        %v1837 = vunpack.c.h.b16 %v1203
        %v1838 = vunpack.c.l.b16 %v1204
        %v1839 = vunpack.c.h.b16 %v1204
        %v1840 = vunpack.c.l.b16 %v1205
        %v1841 = vunpack.c.h.b16 %v1205
        %v1842 = vunpack.c.l.b16 %v1206
        %v1843 = vunpack.c.h.b16 %v1206
        %v1844 = vunpack.c.l.b16 %v1207
        %v1845 = vunpack.c.h.b16 %v1207
        %v1846 = vunpack.c.l.b16 %v1208
        %v1847 = vunpack.c.h.b16 %v1208
        %v1848 = vunpack.c.l.b16 %v1209
        %v1849 = vunpack.c.h.b16 %v1209
        %v1850 = vunpack.c.l.b16 %v1210
        %v1851 = vunpack.c.h.b16 %v1210
        %v1852 = vunpack.c.l.b16 %v1211
        %v1853 = vunpack.c.h.b16 %v1211
        %v1854 = vunpack.c.l.b16 %v1212
        %v1855 = vunpack.c.h.b16 %v1212
        %v1856 = vunpack.c.l.b16 %v1213
        %v1857 = vunpack.c.h.b16 %v1213
        %v1858 = vunpack.c.l.b16 %v1214
        %v1859 = vunpack.c.h.b16 %v1214
        %v1860 = vunpack.c.l.b16 %v1215
        %v1861 = vunpack.c.h.b16 %v1215
        %v1862 = vunpack.c.l.b16 %v1216
        %v1863 = vunpack.c.h.b16 %v1216
        %v1864 = vunpack.c.l.b16 %v1217
        %v1865 = vunpack.c.h.b16 %v1217
        %v1866 = vunpack.c.l.b16 %v1218
        %v1867 = vunpack.c.h.b16 %v1218
        %v1868 = vunpack.c.l.b16 %v1219
        %v1869 = vunpack.c.h.b16 %v1219
        %v1870 = vunpack.c.l.b16 %v1220
        %v1871 = vunpack.c.h.b16 %v1220
        %v1872 = vunpack.c.l.b16 %v1221
        %v1873 = vunpack.c.h.b16 %v1221
        %v1874 = vunpack.c.l.b16 %v1222
        %v1875 = vunpack.c.h.b16 %v1222
        %v1876 = vunpack.c.l.b16 %v1223
        %v1877 = vunpack.c.h.b16 %v1223
        %v1878 = vunpack.c.l.b16 %v1224
        %v1879 = vunpack.c.h.b16 %v1224
        %v1880 = vunpack.c.l.b16 %v1225
        %v1881 = vunpack.c.h.b16 %v1225
        %v1882 = vunpack.c.l.b16 %v1226
        %v1883 = vunpack.c.h.b16 %v1226
        %v1884 = vunpack.c.l.b16 %v1227
        %v1885 = vunpack.c.h.b16 %v1227
        %v1886 = vunpack.c.l.b16 %v1228
        %v1887 = vunpack.c.h.b16 %v1228
        %v1888 = vunpack.c.l.b16 %v1229
        %v1889 = vunpack.c.h.b16 %v1229
        %v1890 = vunpack.c.l.b16 %v1230
        %v1891 = vunpack.c.h.b16 %v1230
        %v1892 = vunpack.c.l.b16 %v1231
        %v1893 = vunpack.c.h.b16 %v1231
        %v1894 = vunpack.c.l.b16 %v1232
        %v1895 = vunpack.c.h.b16 %v1232
        %v1896 = vunpack.c.l.b16 %v1233
        %v1897 = vunpack.c.h.b16 %v1233
        %v1898 = vunpack.c.l.b16 %v1234
        %v1899 = vunpack.c.h.b16 %v1234
        %v1900 = vunpack.c.l.b16 %v1235
        %v1901 = vunpack.c.h.b16 %v1235
        %v1902 = vunpack.c.l.b16 %v1236
        %v1903 = vunpack.c.h.b16 %v1236
        %v1904 = vunpack.c.l.b16 %v1237
        %v1905 = vunpack.c.h.b16 %v1237
        %v1906 = vunpack.c.l.b16 %v1238
        %v1907 = vunpack.c.h.b16 %v1238
        %v1908 = vunpack.c.l.b16 %v1239
        %v1909 = vunpack.c.h.b16 %v1239
        %v1910 = vunpack.c.l.b16 %v1240
        %v1911 = vunpack.c.h.b16 %v1240
        %v1912 = vunpack.c.l.b16 %v1241
        %v1913 = vunpack.c.h.b16 %v1241
        %v1914 = vunpack.c.l.b16 %v1242
        %v1915 = vunpack.c.h.b16 %v1242
        %v1916 = vunpack.c.l.b16 %v1243
        %v1917 = vunpack.c.h.b16 %v1243
        %v1918 = vunpack.c.l.b16 %v1244
        %v1919 = vunpack.c.h.b16 %v1244
        %v1920 = vunpack.c.l.b16 %v1245
        %v1921 = vunpack.c.h.b16 %v1245
        %v1922 = vunpack.c.l.b16 %v1246
        %v1923 = vunpack.c.h.b16 %v1246
        %v1924 = vunpack.c.l.b16 %v1247
        %v1925 = vunpack.c.h.b16 %v1247
        %v1926 = vunpack.c.l.b16 %v1248
        %v1927 = vunpack.c.h.b16 %v1248
        %v1928 = vunpack.c.l.b16 %v1249
        %v1929 = vunpack.c.h.b16 %v1249
        %v1930 = vunpack.c.l.b16 %v1250
        %v1931 = vunpack.c.h.b16 %v1250
        %v1932 = vunpack.c.l.b16 %v1251
        %v1933 = vunpack.c.h.b16 %v1251
        %v1934 = vunpack.c.l.b16 %v1252
        %v1935 = vunpack.c.h.b16 %v1252
        %v1936 = vunpack.c.l.b16 %v1253
        %v1937 = vunpack.c.h.b16 %v1253
        %v1938 = vunpack.c.l.b16 %v1254
        %v1939 = vunpack.c.h.b16 %v1254
        %v1940 = vunpack.c.l.b16 %v1255
        %v1941 = vunpack.c.h.b16 %v1255
        %v1942 = vunpack.c.l.b16 %v1256
        %v1943 = vunpack.c.h.b16 %v1256
        %v1944 = vunpack.c.l.b16 %v1257
        %v1945 = vunpack.c.h.b16 %v1257
        %v1946 = vunpack.c.l.b16 %v1258
        %v1947 = vunpack.c.h.b16 %v1258
        %v1948 = vunpack.c.l.b16 %v1259
        %v1949 = vunpack.c.h.b16 %v1259
        %v1950 = vunpack.c.l.b16 %v1260
        %v1951 = vunpack.c.h.b16 %v1260
        %v1952 = vunpack.c.l.b16 %v1261
        %v1953 = vunpack.c.h.b16 %v1261
        %v1954 = vunpack.c.l.b16 %v1262
        %v1955 = vunpack.c.h.b16 %v1262
        %v1956 = vunpack.c.l.b16 %v1263
        %v1957 = vunpack.c.h.b16 %v1263
        %v1958 = vunpack.c.l.b16 %v1264
        %v1959 = vunpack.c.h.b16 %v1264
        %v1960 = vunpack.c.l.b16 %v1265
        %v1961 = vunpack.c.h.b16 %v1265
        %v1962 = vunpack.c.l.b16 %v1266
        %v1963 = vunpack.c.h.b16 %v1266
        %v1964 = vunpack.c.l.b16 %v1267
        %v1965 = vunpack.c.h.b16 %v1267
        %v1966 = vunpack.c.l.b16 %v1268
        %v1967 = vunpack.c.h.b16 %v1268
        %v1968 = vunpack.c.l.b16 %v1269
        %v1969 = vunpack.c.h.b16 %v1269
        %v1970 = vunpack.c.l.b16 %v1270
        %v1971 = vunpack.c.h.b16 %v1270
        %v1972 = vunpack.c.l.b16 %v1271
        %v1973 = vunpack.c.h.b16 %v1271
        %v1974 = vunpack.c.l.b16 %v1272
        %v1975 = vunpack.c.h.b16 %v1272
        %v1976 = vunpack.c.l.b16 %v1273
        %v1977 = vunpack.c.h.b16 %v1273
        %v1978 = vunpack.c.l.b16 %v1274
        %v1979 = vunpack.c.h.b16 %v1274
        %v1980 = vunpack.c.l.b16 %v1275
        %v1981 = vunpack.c.h.b16 %v1275
        %v1982 = vunpack.c.l.b16 %v1276
        %v1983 = vunpack.c.h.b16 %v1276
        %v1984 = vunpack.c.l.b16 %v1277
        %v1985 = vunpack.c.h.b16 %v1277
        %v1986 = vunpack.c.l.b16 %v1278
        %v1987 = vunpack.c.h.b16 %v1278
        %v1988 = vunpack.c.l.b16 %v1279
        %v1989 = vunpack.c.h.b16 %v1279
        %v1990 = vunpack.c.l.b16 %v1280
        %v1991 = vunpack.c.h.b16 %v1280
        %v1992 = vunpack.c.l.b16 %v1281
        %v1993 = vunpack.c.h.b16 %v1281
        %v1994 = vunpack.c.l.b16 %v1282
        %v1995 = vunpack.c.h.b16 %v1282
        %v1996 = vunpack.c.l.b16 %v1283
        %v1997 = vunpack.c.h.b16 %v1283
        %v1998 = vunpack.c.l.b16 %v1284
        %v1999 = vunpack.c.h.b16 %v1284
        %v2000 = vunpack.c.l.b16 %v1285
        %v2001 = vunpack.c.h.b16 %v1285
        %v2002 = vunpack.c.l.b16 %v1286
        %v2003 = vunpack.c.h.b16 %v1286
        %v2004 = vunpack.c.l.b16 %v1287
        %v2005 = vunpack.c.h.b16 %v1287
        %v2006 = vunpack.c.l.b16 %v1288
        %v2007 = vunpack.c.h.b16 %v1288
        %v2008 = vunpack.c.l.b16 %v1289
        %v2009 = vunpack.c.h.b16 %v1289
        %v2010 = vunpack.c.l.b16 %v1290
        %v2011 = vunpack.c.h.b16 %v1290
        %v2012 = vunpack.c.l.b16 %v1291
        %v2013 = vunpack.c.h.b16 %v1291
        %v2014 = vunpack.c.l.b16 %v1292
        %v2015 = vunpack.c.h.b16 %v1292
        %v2016 = vunpack.c.l.b16 %v1293
        %v2017 = vunpack.c.h.b16 %v1293
        %v2018 = vunpack.c.l.b16 %v1294
        %v2019 = vunpack.c.h.b16 %v1294
        %v2020 = vunpack.c.l.b16 %v1295
        %v2021 = vunpack.c.h.b16 %v1295
        %v2022 = vunpack.c.l.b16 %v1296
        %v2023 = vunpack.c.h.b16 %v1296
        %v2024 = vunpack.c.l.b16 %v1297
        %v2025 = vunpack.c.h.b16 %v1297
        %v2026 = vunpack.c.l.b16 %v1298
        %v2027 = vunpack.c.h.b16 %v1298
        %v2028 = vunpack.c.l.b16 %v1299
        %v2029 = vunpack.c.h.b16 %v1299
        %v2030 = vunpack.c.l.b16 %v1300
        %v2031 = vunpack.c.h.b16 %v1300
        %v2032 = vunpack.c.l.b16 %v1301
        %v2033 = vunpack.c.h.b16 %v1301
        %v2034 = vunpack.c.l.b16 %v1302
        %v2035 = vunpack.c.h.b16 %v1302
        %v2036 = vunpack.c.l.b16 %v1303
        %v2037 = vunpack.c.h.b16 %v1303
        %v2038 = vunpack.c.l.b16 %v1304
        %v2039 = vunpack.c.h.b16 %v1304
        %v2040 = vunpack.c.l.b16 %v1305
        %v2041 = vunpack.c.h.b16 %v1305
        %v2042 = vunpack.c.l.b16 %v1306
        %v2043 = vunpack.c.h.b16 %v1306
        %v2044 = vunpack.c.l.b16 %v1307
        %v2045 = vunpack.c.h.b16 %v1307
        %v2046 = vunpack.c.l.b16 %v1308
        %v2047 = vunpack.c.h.b16 %v1308
        %v2048 = vunpack.c.l.b16 %v1309
        %v2049 = vunpack.c.h.b16 %v1309
        %v2050 = vunpack.c.l.b16 %v1310
        %v2051 = vunpack.c.h.b16 %v1310
        %v2052 = vunpack.c.l.b16 %v1311
        %v2053 = vunpack.c.h.b16 %v1311
        %v2054 = vunpack.c.l.b16 %v1312
        %v2055 = vunpack.c.h.b16 %v1312
        %v2056 = vunpack.c.l.b16 %v1313
        %v2057 = vunpack.c.h.b16 %v1313
        %v2058 = vunpack.c.l.b16 %v1314
        %v2059 = vunpack.c.h.b16 %v1314
        %v2060 = vunpack.c.l.b16 %v1315
        %v2061 = vunpack.c.h.b16 %v1315
        %v2062 = vunpack.c.l.b16 %v1316
        %v2063 = vunpack.c.h.b16 %v1316
        %v2064 = vunpack.c.l.b16 %v1317
        %v2065 = vunpack.c.h.b16 %v1317
        %v2066 = vunpack.c.l.b16 %v1318
        %v2067 = vunpack.c.h.b16 %v1318
        %v2068 = vunpack.c.l.b16 %v1319
        %v2069 = vunpack.c.h.b16 %v1319
        %v2070 = vunpack.c.l.b16 %v1320
        %v2071 = vunpack.c.h.b16 %v1320
        %v2072 = vunpack.c.l.b16 %v1321
        %v2073 = vunpack.c.h.b16 %v1321
        %v2074 = vunpack.c.l.b16 %v1322
        %v2075 = vunpack.c.h.b16 %v1322
        %v2076 = vunpack.c.l.b16 %v1323
        %v2077 = vunpack.c.h.b16 %v1323
        %v2078 = vunpack.c.l.b16 %v1324
        %v2079 = vunpack.c.h.b16 %v1324
        %v2080 = vunpack.c.l.b16 %v1325
        %v2081 = vunpack.c.h.b16 %v1325
        %v2082 = vunpack.c.l.b16 %v1326
        %v2083 = vunpack.c.h.b16 %v1326
        %v2084 = vunpack.c.l.b16 %v1327
        %v2085 = vunpack.c.h.b16 %v1327
        %v2086 = vunpack.c.l.b16 %v1328
        %v2087 = vunpack.c.h.b16 %v1328
        %v2088 = vunpack.c.l.b16 %v1329
        %v2089 = vunpack.c.h.b16 %v1329
        %v2090 = vunpack.c.l.b16 %v1330
        %v2091 = vunpack.c.h.b16 %v1330
        %v2092 = vunpack.c.l.b16 %v1331
        %v2093 = vunpack.c.h.b16 %v1331
        %v2094 = vunpack.c.l.b16 %v1332
        %v2095 = vunpack.c.h.b16 %v1332
        %v2096 = vunpack.c.l.b16 %v1333
        %v2097 = vunpack.c.h.b16 %v1333
        %v2098 = vunpack.c.l.b16 %v1334
        %v2099 = vunpack.c.h.b16 %v1334
        %v2100 = vunpack.c.l.b16 %v1335
        %v2101 = vunpack.c.h.b16 %v1335
        %v2102 = vunpack.c.l.b16 %v1336
        %v2103 = vunpack.c.h.b16 %v1336
        %v2104 = vunpack.c.l.b16 %v1337
        %v2105 = vunpack.c.h.b16 %v1337
        %v2106 = vunpack.c.l.b16 %v1338
        %v2107 = vunpack.c.h.b16 %v1338
        %v2108 = vunpack.c.l.b16 %v1339
        %v2109 = vunpack.c.h.b16 %v1339
        %v2110 = vunpack.c.l.b16 %v1340
        %v2111 = vunpack.c.h.b16 %v1340
        %v2112 = vunpack.c.l.b16 %v1341
        %v2113 = vunpack.c.h.b16 %v1341
        %v2114 = vunpack.c.l.b16 %v1342
        %v2115 = vunpack.c.h.b16 %v1342
        %v2116 = vunpack.c.l.b16 %v1343
        %v2117 = vunpack.c.h.b16 %v1343
        %v2118 = vunpack.c.l.b16 %v1344
        %v2119 = vunpack.c.h.b16 %v1344
        %v2120 = vunpack.c.l.b16 %v1345
        %v2121 = vunpack.c.h.b16 %v1345
        %v2122 = vunpack.c.l.b16 %v1346
        %v2123 = vunpack.c.h.b16 %v1346
        %v2124 = vunpack.c.l.b16 %v1347
        %v2125 = vunpack.c.h.b16 %v1347
        %v2126 = vunpack.c.l.b16 %v1348
        %v2127 = vunpack.c.h.b16 %v1348
        %v2128 = vunpack.c.l.b16 %v1349
        %v2129 = vunpack.c.h.b16 %v1349
        %v2130 = vunpack.c.l.b16 %v1350
        %v2131 = vunpack.c.h.b16 %v1350
        %v2132 = vunpack.c.l.b16 %v1351
        %v2133 = vunpack.c.h.b16 %v1351
        %v2134 = vunpack.c.l.b16 %v1352
        %v2135 = vunpack.c.h.b16 %v1352
        %v2136 = vunpack.c.l.b16 %v1353
        %v2137 = vunpack.c.h.b16 %v1353
        %v2138 = vunpack.c.l.b16 %v1354
        %v2139 = vunpack.c.h.b16 %v1354
        %v2140 = vunpack.c.l.b16 %v1355
        %v2141 = vunpack.c.h.b16 %v1355
        %v2142 = vunpack.c.l.b16 %v1356
        %v2143 = vunpack.c.h.b16 %v1356
        %v2144 = vunpack.c.l.b16 %v1357
        %v2145 = vunpack.c.h.b16 %v1357
        %v2146 = vunpack.c.l.b16 %v1358
        %v2147 = vunpack.c.h.b16 %v1358
        %v2148 = vunpack.c.l.b16 %v1359
        %v2149 = vunpack.c.h.b16 %v1359
        %v2150 = vunpack.c.l.b16 %v1360
        %v2151 = vunpack.c.h.b16 %v1360
        %v2152 = vunpack.c.l.b16 %v1361
        %v2153 = vunpack.c.h.b16 %v1361
        %v2154 = vunpack.c.l.b16 %v1362
        %v2155 = vunpack.c.h.b16 %v1362
        %v2156 = vunpack.c.l.b16 %v1363
        %v2157 = vunpack.c.h.b16 %v1363
        %v2158 = vunpack.c.l.b16 %v1364
        %v2159 = vunpack.c.h.b16 %v1364
        %v2160 = vunpack.c.l.b16 %v1365
        %v2161 = vunpack.c.h.b16 %v1365
        %v2162 = vunpack.c.l.b16 %v1366
        %v2163 = vunpack.c.h.b16 %v1366
        %v2164 = vunpack.c.l.b16 %v1367
        %v2165 = vunpack.c.h.b16 %v1367
        %v2166 = vunpack.c.l.b16 %v1368
        %v2167 = vunpack.c.h.b16 %v1368
        %v2168 = vunpack.c.l.b16 %v1369
        %v2169 = vunpack.c.h.b16 %v1369
        %v2170 = vunpack.c.l.b16 %v1370
        %v2171 = vunpack.c.h.b16 %v1370
        %v2172 = vunpack.c.l.b16 %v1371
        %v2173 = vunpack.c.h.b16 %v1371
        %v2174 = vunpack.c.l.b16 %v1372
        %v2175 = vunpack.c.h.b16 %v1372
        %v2176 = vunpack.c.l.b16 %v1373
        %v2177 = vunpack.c.h.b16 %v1373
        %v2178 = vunpack.c.l.b16 %v1374
        %v2179 = vunpack.c.h.b16 %v1374
        %v2180 = vunpack.c.l.b16 %v1375
        %v2181 = vunpack.c.h.b16 %v1375
        %v2182 = vunpack.c.l.b16 %v1376
        %v2183 = vunpack.c.h.b16 %v1376
        %v2184 = vunpack.c.l.b16 %v1377
        %v2185 = vunpack.c.h.b16 %v1377
        %v2186 = vunpack.c.l.b16 %v1378
        %v2187 = vunpack.c.h.b16 %v1378
        %v2188 = vunpack.c.l.b16 %v1379
        %v2189 = vunpack.c.h.b16 %v1379
        %v2190 = vunpack.c.l.b16 %v1380
        %v2191 = vunpack.c.h.b16 %v1380
        %v2192 = vunpack.c.l.b16 %v1381
        %v2193 = vunpack.c.h.b16 %v1381
        %v2194 = vunpack.c.l.b16 %v1382
        %v2195 = vunpack.c.h.b16 %v1382
        %v2196 = vunpack.c.l.b16 %v1383
        %v2197 = vunpack.c.h.b16 %v1383
        %v2198 = vunpack.c.l.b16 %v1384
        %v2199 = vunpack.c.h.b16 %v1384
        %v2200 = vunpack.c.l.b16 %v1385
        %v2201 = vunpack.c.h.b16 %v1385
        %v2202 = vunpack.c.l.b16 %v1386
        %v2203 = vunpack.c.h.b16 %v1386
        %v2204 = vunpack.c.l.b16 %v1387
        %v2205 = vunpack.c.h.b16 %v1387
        %v2206 = vunpack.c.l.b16 %v1388
        %v2207 = vunpack.c.h.b16 %v1388
        %v2208 = vunpack.c.l.b16 %v1389
        %v2209 = vunpack.c.h.b16 %v1389
        %v2210 = vunpack.c.l.b16 %v1390
        %v2211 = vunpack.c.h.b16 %v1390
        %v2212 = vunpack.c.l.b16 %v1391
        %v2213 = vunpack.c.h.b16 %v1391
        %v2214 = vunpack.c.l.b16 %v1392
        %v2215 = vunpack.c.h.b16 %v1392
        %v2216 = vunpack.c.l.b16 %v1393
        %v2217 = vunpack.c.h.b16 %v1393
        %v2218 = vunpack.c.l.b16 %v1394
        %v2219 = vunpack.c.h.b16 %v1394
        %v2220 = vunpack.c.l.b16 %v1395
        %v2221 = vunpack.c.h.b16 %v1395
        %v2222 = vunpack.c.l.b16 %v1396
        %v2223 = vunpack.c.h.b16 %v1396
        %v2224 = vunpack.c.l.b16 %v1397
        %v2225 = vunpack.c.h.b16 %v1397
        %v2226 = vunpack.c.l.b16 %v1398
        %v2227 = vunpack.c.h.b16 %v1398
        %v2228 = vunpack.c.l.b16 %v1399
        %v2229 = vunpack.c.h.b16 %v1399
        %v2230 = vunpack.c.l.b16 %v1400
        %v2231 = vunpack.c.h.b16 %v1400
        %v2232 = vunpack.c.l.b16 %v1401
        %v2233 = vunpack.c.h.b16 %v1401
        %v2234 = vunpack.c.l.b16 %v1402
        %v2235 = vunpack.c.h.b16 %v1402
        %v2236 = vunpack.c.l.b16 %v1403
        %v2237 = vunpack.c.h.b16 %v1403
        %v2238 = vunpack.c.l.b16 %v1404
        %v2239 = vunpack.c.h.b16 %v1404
        %v2240 = vunpack.c.l.b16 %v1405
        %v2241 = vunpack.c.h.b16 %v1405
        %v2242 = vpack.c.b16 %v1732, %v1730
        %v2243 = vpack.c.b16 %v1733, %v1731
        %v2244 = vpack.c.b16 %v1736, %v1734
        %v2245 = vpack.c.b16 %v1737, %v1735
        %v2246 = vpack.c.b16 %v1740, %v1738
        %v2247 = vpack.c.b16 %v1741, %v1739
        %v2248 = vpack.c.b16 %v1744, %v1742
        %v2249 = vpack.c.b16 %v1745, %v1743
        %v2250 = vpack.c.b16 %v1748, %v1746
        %v2251 = vpack.c.b16 %v1749, %v1747
        %v2252 = vpack.c.b16 %v1752, %v1750
        %v2253 = vpack.c.b16 %v1753, %v1751
        %v2254 = vpack.c.b16 %v1756, %v1754
        %v2255 = vpack.c.b16 %v1757, %v1755
        %v2256 = vpack.c.b16 %v1760, %v1758
        %v2257 = vpack.c.b16 %v1761, %v1759
        %v2258 = vpack.c.b16 %v1764, %v1762
        %v2259 = vpack.c.b16 %v1765, %v1763
        %v2260 = vpack.c.b16 %v1768, %v1766
        %v2261 = vpack.c.b16 %v1769, %v1767
        %v2262 = vpack.c.b16 %v1772, %v1770
        %v2263 = vpack.c.b16 %v1773, %v1771
        %v2264 = vpack.c.b16 %v1776, %v1774
        %v2265 = vpack.c.b16 %v1777, %v1775
        %v2266 = vpack.c.b16 %v1780, %v1778
        %v2267 = vpack.c.b16 %v1781, %v1779
        %v2268 = vpack.c.b16 %v1784, %v1782
        %v2269 = vpack.c.b16 %v1785, %v1783
        %v2270 = vpack.c.b16 %v1788, %v1786
        %v2271 = vpack.c.b16 %v1789, %v1787
        %v2272 = vpack.c.b16 %v1792, %v1790
        %v2273 = vpack.c.b16 %v1793, %v1791
        %v2274 = vpack.c.b16 %v1796, %v1794
        %v2275 = vpack.c.b16 %v1797, %v1795
        %v2276 = vpack.c.b16 %v1800, %v1798
        %v2277 = vpack.c.b16 %v1801, %v1799
        %v2278 = vpack.c.b16 %v1804, %v1802
        %v2279 = vpack.c.b16 %v1805, %v1803
        %v2280 = vpack.c.b16 %v1808, %v1806
        %v2281 = vpack.c.b16 %v1809, %v1807
        %v2282 = vpack.c.b16 %v1812, %v1810
        %v2283 = vpack.c.b16 %v1813, %v1811
        %v2284 = vpack.c.b16 %v1816, %v1814
        %v2285 = vpack.c.b16 %v1817, %v1815
        %v2286 = vpack.c.b16 %v1820, %v1818
        %v2287 = vpack.c.b16 %v1821, %v1819
        %v2288 = vpack.c.b16 %v1824, %v1822
        %v2289 = vpack.c.b16 %v1825, %v1823
        %v2290 = vpack.c.b16 %v1828, %v1826
        %v2291 = vpack.c.b16 %v1829, %v1827
        %v2292 = vpack.c.b16 %v1832, %v1830
        %v2293 = vpack.c.b16 %v1833, %v1831
        %v2294 = vpack.c.b16 %v1836, %v1834
        %v2295 = vpack.c.b16 %v1837, %v1835
        %v2296 = vpack.c.b16 %v1840, %v1838
        %v2297 = vpack.c.b16 %v1841, %v1839
        %v2298 = vpack.c.b16 %v1844, %v1842
        %v2299 = vpack.c.b16 %v1845, %v1843
        %v2300 = vpack.c.b16 %v1848, %v1846
        %v2301 = vpack.c.b16 %v1849, %v1847
        %v2302 = vpack.c.b16 %v1852, %v1850
        %v2303 = vpack.c.b16 %v1853, %v1851
        %v2304 = vpack.c.b16 %v1856, %v1854
        %v2305 = vpack.c.b16 %v1857, %v1855
        %v2306 = vpack.c.b16 %v1860, %v1858
        %v2307 = vpack.c.b16 %v1861, %v1859
        %v2308 = vpack.c.b16 %v1864, %v1862
        %v2309 = vpack.c.b16 %v1865, %v1863
        %v2310 = vpack.c.b16 %v1868, %v1866
        %v2311 = vpack.c.b16 %v1869, %v1867
        %v2312 = vpack.c.b16 %v1872, %v1870
        %v2313 = vpack.c.b16 %v1873, %v1871
        %v2314 = vpack.c.b16 %v1876, %v1874
        %v2315 = vpack.c.b16 %v1877, %v1875
        %v2316 = vpack.c.b16 %v1880, %v1878
        %v2317 = vpack.c.b16 %v1881, %v1879
        %v2318 = vpack.c.b16 %v1884, %v1882
        %v2319 = vpack.c.b16 %v1885, %v1883
        %v2320 = vpack.c.b16 %v1888, %v1886
        %v2321 = vpack.c.b16 %v1889, %v1887
        %v2322 = vpack.c.b16 %v1892, %v1890
        %v2323 = vpack.c.b16 %v1893, %v1891
        %v2324 = vpack.c.b16 %v1896, %v1894
        %v2325 = vpack.c.b16 %v1897, %v1895
        %v2326 = vpack.c.b16 %v1900, %v1898
        %v2327 = vpack.c.b16 %v1901, %v1899
        %v2328 = vpack.c.b16 %v1904, %v1902
        %v2329 = vpack.c.b16 %v1905, %v1903
        %v2330 = vpack.c.b16 %v1908, %v1906
        %v2331 = vpack.c.b16 %v1909, %v1907
        %v2332 = vpack.c.b16 %v1912, %v1910
        %v2333 = vpack.c.b16 %v1913, %v1911
        %v2334 = vpack.c.b16 %v1916, %v1914
        %v2335 = vpack.c.b16 %v1917, %v1915
        %v2336 = vpack.c.b16 %v1920, %v1918
        %v2337 = vpack.c.b16 %v1921, %v1919
        %v2338 = vpack.c.b16 %v1924, %v1922
        %v2339 = vpack.c.b16 %v1925, %v1923
        %v2340 = vpack.c.b16 %v1928, %v1926
        %v2341 = vpack.c.b16 %v1929, %v1927
        %v2342 = vpack.c.b16 %v1932, %v1930
        %v2343 = vpack.c.b16 %v1933, %v1931
        %v2344 = vpack.c.b16 %v1936, %v1934
        %v2345 = vpack.c.b16 %v1937, %v1935
        %v2346 = vpack.c.b16 %v1940, %v1938
        %v2347 = vpack.c.b16 %v1941, %v1939
        %v2348 = vpack.c.b16 %v1944, %v1942
        %v2349 = vpack.c.b16 %v1945, %v1943
        %v2350 = vpack.c.b16 %v1948, %v1946
        %v2351 = vpack.c.b16 %v1949, %v1947
        %v2352 = vpack.c.b16 %v1952, %v1950
        %v2353 = vpack.c.b16 %v1953, %v1951
        %v2354 = vpack.c.b16 %v1956, %v1954
        %v2355 = vpack.c.b16 %v1957, %v1955
        %v2356 = vpack.c.b16 %v1960, %v1958
        %v2357 = vpack.c.b16 %v1961, %v1959
        %v2358 = vpack.c.b16 %v1964, %v1962
        %v2359 = vpack.c.b16 %v1965, %v1963
        %v2360 = vpack.c.b16 %v1968, %v1966
        %v2361 = vpack.c.b16 %v1969, %v1967
        %v2362 = vpack.c.b16 %v1972, %v1970
        %v2363 = vpack.c.b16 %v1973, %v1971
        %v2364 = vpack.c.b16 %v1976, %v1974
        %v2365 = vpack.c.b16 %v1977, %v1975
        %v2366 = vpack.c.b16 %v1980, %v1978
        %v2367 = vpack.c.b16 %v1981, %v1979
        %v2368 = vpack.c.b16 %v1984, %v1982
        %v2369 = vpack.c.b16 %v1985, %v1983
        %v2370 = vpack.c.b16 %v1988, %v1986
        %v2371 = vpack.c.b16 %v1989, %v1987
        %v2372 = vpack.c.b16 %v1992, %v1990
        %v2373 = vpack.c.b16 %v1993, %v1991
        %v2374 = vpack.c.b16 %v1996, %v1994
        %v2375 = vpack.c.b16 %v1997, %v1995
        %v2376 = vpack.c.b16 %v2000, %v1998
        %v2377 = vpack.c.b16 %v2001, %v1999
        %v2378 = vpack.c.b16 %v2004, %v2002
        %v2379 = vpack.c.b16 %v2005, %v2003
        %v2380 = vpack.c.b16 %v2008, %v2006
        %v2381 = vpack.c.b16 %v2009, %v2007
        %v2382 = vpack.c.b16 %v2012, %v2010
        %v2383 = vpack.c.b16 %v2013, %v2011
        %v2384 = vpack.c.b16 %v2016, %v2014
        %v2385 = vpack.c.b16 %v2017, %v2015
        %v2386 = vpack.c.b16 %v2020, %v2018
        %v2387 = vpack.c.b16 %v2021, %v2019
        %v2388 = vpack.c.b16 %v2024, %v2022
        %v2389 = vpack.c.b16 %v2025, %v2023
        %v2390 = vpack.c.b16 %v2028, %v2026
        %v2391 = vpack.c.b16 %v2029, %v2027
        %v2392 = vpack.c.b16 %v2032, %v2030
        %v2393 = vpack.c.b16 %v2033, %v2031
        %v2394 = vpack.c.b16 %v2036, %v2034
        %v2395 = vpack.c.b16 %v2037, %v2035
        %v2396 = vpack.c.b16 %v2040, %v2038
        %v2397 = vpack.c.b16 %v2041, %v2039
        %v2398 = vpack.c.b16 %v2044, %v2042
        %v2399 = vpack.c.b16 %v2045, %v2043
        %v2400 = vpack.c.b16 %v2048, %v2046
        %v2401 = vpack.c.b16 %v2049, %v2047
        %v2402 = vpack.c.b16 %v2052, %v2050
        %v2403 = vpack.c.b16 %v2053, %v2051
        %v2404 = vpack.c.b16 %v2056, %v2054
        %v2405 = vpack.c.b16 %v2057, %v2055
        %v2406 = vpack.c.b16 %v2060, %v2058
        %v2407 = vpack.c.b16 %v2061, %v2059
        %v2408 = vpack.c.b16 %v2064, %v2062
        %v2409 = vpack.c.b16 %v2065, %v2063
        %v2410 = vpack.c.b16 %v2068, %v2066
        %v2411 = vpack.c.b16 %v2069, %v2067
        %v2412 = vpack.c.b16 %v2072, %v2070
        %v2413 = vpack.c.b16 %v2073, %v2071
        %v2414 = vpack.c.b16 %v2076, %v2074
        %v2415 = vpack.c.b16 %v2077, %v2075
        %v2416 = vpack.c.b16 %v2080, %v2078
        %v2417 = vpack.c.b16 %v2081, %v2079
        %v2418 = vpack.c.b16 %v2084, %v2082
        %v2419 = vpack.c.b16 %v2085, %v2083
        %v2420 = vpack.c.b16 %v2088, %v2086
        %v2421 = vpack.c.b16 %v2089, %v2087
        %v2422 = vpack.c.b16 %v2092, %v2090
        %v2423 = vpack.c.b16 %v2093, %v2091
        %v2424 = vpack.c.b16 %v2096, %v2094
        %v2425 = vpack.c.b16 %v2097, %v2095
        %v2426 = vpack.c.b16 %v2100, %v2098
        %v2427 = vpack.c.b16 %v2101, %v2099
        %v2428 = vpack.c.b16 %v2104, %v2102
        %v2429 = vpack.c.b16 %v2105, %v2103
        %v2430 = vpack.c.b16 %v2108, %v2106
        %v2431 = vpack.c.b16 %v2109, %v2107
        %v2432 = vpack.c.b16 %v2112, %v2110
        %v2433 = vpack.c.b16 %v2113, %v2111
        %v2434 = vpack.c.b16 %v2116, %v2114
        %v2435 = vpack.c.b16 %v2117, %v2115
        %v2436 = vpack.c.b16 %v2120, %v2118
        %v2437 = vpack.c.b16 %v2121, %v2119
        %v2438 = vpack.c.b16 %v2124, %v2122
        %v2439 = vpack.c.b16 %v2125, %v2123
        %v2440 = vpack.c.b16 %v2128, %v2126
        %v2441 = vpack.c.b16 %v2129, %v2127
        %v2442 = vpack.c.b16 %v2132, %v2130
        %v2443 = vpack.c.b16 %v2133, %v2131
        %v2444 = vpack.c.b16 %v2136, %v2134
        %v2445 = vpack.c.b16 %v2137, %v2135
        %v2446 = vpack.c.b16 %v2140, %v2138
        %v2447 = vpack.c.b16 %v2141, %v2139
        %v2448 = vpack.c.b16 %v2144, %v2142
        %v2449 = vpack.c.b16 %v2145, %v2143
        %v2450 = vpack.c.b16 %v2148, %v2146
        %v2451 = vpack.c.b16 %v2149, %v2147
        %v2452 = vpack.c.b16 %v2152, %v2150
        %v2453 = vpack.c.b16 %v2153, %v2151
        %v2454 = vpack.c.b16 %v2156, %v2154
        %v2455 = vpack.c.b16 %v2157, %v2155
        %v2456 = vpack.c.b16 %v2160, %v2158
        %v2457 = vpack.c.b16 %v2161, %v2159
        %v2458 = vpack.c.b16 %v2164, %v2162
        %v2459 = vpack.c.b16 %v2165, %v2163
        %v2460 = vpack.c.b16 %v2168, %v2166
        %v2461 = vpack.c.b16 %v2169, %v2167
        %v2462 = vpack.c.b16 %v2172, %v2170
        %v2463 = vpack.c.b16 %v2173, %v2171
        %v2464 = vpack.c.b16 %v2176, %v2174
        %v2465 = vpack.c.b16 %v2177, %v2175
        %v2466 = vpack.c.b16 %v2180, %v2178
        %v2467 = vpack.c.b16 %v2181, %v2179
        %v2468 = vpack.c.b16 %v2184, %v2182
        %v2469 = vpack.c.b16 %v2185, %v2183
        %v2470 = vpack.c.b16 %v2188, %v2186
        %v2471 = vpack.c.b16 %v2189, %v2187
        %v2472 = vpack.c.b16 %v2192, %v2190
        %v2473 = vpack.c.b16 %v2193, %v2191
        %v2474 = vpack.c.b16 %v2196, %v2194
        %v2475 = vpack.c.b16 %v2197, %v2195
        %v2476 = vpack.c.b16 %v2200, %v2198
        %v2477 = vpack.c.b16 %v2201, %v2199
        %v2478 = vpack.c.b16 %v2204, %v2202
        %v2479 = vpack.c.b16 %v2205, %v2203
        %v2480 = vpack.c.b16 %v2208, %v2206
        %v2481 = vpack.c.b16 %v2209, %v2207
        %v2482 = vpack.c.b16 %v2212, %v2210
        %v2483 = vpack.c.b16 %v2213, %v2211
        %v2484 = vpack.c.b16 %v2216, %v2214
        %v2485 = vpack.c.b16 %v2217, %v2215
        %v2486 = vpack.c.b16 %v2220, %v2218
        %v2487 = vpack.c.b16 %v2221, %v2219
        %v2488 = vpack.c.b16 %v2224, %v2222
        %v2489 = vpack.c.b16 %v2225, %v2223
        %v2490 = vpack.c.b16 %v2228, %v2226
        %v2491 = vpack.c.b16 %v2229, %v2227
        %v2492 = vpack.c.b16 %v2232, %v2230
        %v2493 = vpack.c.b16 %v2233, %v2231
        %v2494 = vpack.c.b16 %v2236, %v2234
        %v2495 = vpack.c.b16 %v2237, %v2235
        %v2496 = vpack.c.b16 %v2240, %v2238
        %v2497 = vpack.c.b16 %v2241, %v2239
        %2754 = vmatprep.subr.bf16.mxu0 %v2243
        %2755 = vmatpush1.bf16.msra.mxu0 %v2242
        %2756 = vmatprep.subr.bf16.mxu0 %v2245
        %2757 = vmatpush1.bf16.msra.mxu0 %v2244
        %2758 = vmatprep.subr.bf16.mxu0 %v2247
        %2759 = vmatpush1.bf16.msra.mxu0 %v2246
        %2760 = vmatprep.subr.bf16.mxu0 %v2249
        %2761 = vmatpush1.bf16.msra.mxu0 %v2248
        %2762 = vmatprep.subr.bf16.mxu0 %v2251
        %2763 = vmatpush1.bf16.msra.mxu0 %v2250
        %2764 = vmatprep.subr.bf16.mxu0 %v2253
        %2765 = vmatpush1.bf16.msra.mxu0 %v2252
        %2766 = vmatprep.subr.bf16.mxu0 %v2255
        %2767 = vmatpush1.bf16.msra.mxu0 %v2254
        %2768 = vmatprep.subr.bf16.mxu0 %v2257
        %2769 = vmatpush1.bf16.msra.mxu0 %v2256
        %2770 = vmatprep.subr.bf16.mxu0 %v2259
        %2771 = vmatpush1.bf16.msra.mxu0 %v2258
        %2772 = vmatprep.subr.bf16.mxu0 %v2261
        %2773 = vmatpush1.bf16.msra.mxu0 %v2260
        %2774 = vmatprep.subr.bf16.mxu0 %v2263
        %2775 = vmatpush1.bf16.msra.mxu0 %v2262
        %2776 = vmatprep.subr.bf16.mxu0 %v2265
        %2777 = vmatpush1.bf16.msra.mxu0 %v2264
        %2778 = vmatprep.subr.bf16.mxu0 %v2267
        %2779 = vmatpush1.bf16.msra.mxu0 %v2266
        %2780 = vmatprep.subr.bf16.mxu0 %v2269
        %2781 = vmatpush1.bf16.msra.mxu0 %v2268
        %2782 = vmatprep.subr.bf16.mxu0 %v2271
        %2783 = vmatpush1.bf16.msra.mxu0 %v2270
        %2784 = vmatprep.subr.bf16.mxu0 %v2273
        %2785 = vmatpush1.bf16.msra.mxu0 %v2272
        %2786 = vmatprep.mubr.bf16.mxu0 %v1443
        %2787 = vmatmul.mubr.bf16.gmra.mrb[0].mxu0 %v1442
        %v2788 = vpop.f32.mrb[0].mxu0
        %v2789 = vadd.f32 %v1411, %v2788
        %v2790 = vpop.f32.mrb[0].mxu0
        %v2791 = vadd.f32 %v1415, %v2790
        %v2792 = vpop.f32.mrb[0].mxu0
        %v2793 = vpop.f32.mrb[0].mxu0
        %2794 = vdwg.mxu0
        %2795 = vmatprep.subr.bf16.mxu0 %v2275
        %2796 = vmatpush1.bf16.msra.mxu0 %v2274
        %2797 = vmatprep.subr.bf16.mxu0 %v2277
        %2798 = vmatpush1.bf16.msra.mxu0 %v2276
        %2799 = vmatprep.subr.bf16.mxu0 %v2279
        %2800 = vmatpush1.bf16.msra.mxu0 %v2278
        %2801 = vmatprep.subr.bf16.mxu0 %v2281
        %2802 = vmatpush1.bf16.msra.mxu0 %v2280
        %2803 = vmatprep.subr.bf16.mxu0 %v2283
        %2804 = vmatpush1.bf16.msra.mxu0 %v2282
        %2805 = vmatprep.subr.bf16.mxu0 %v2285
        %2806 = vmatpush1.bf16.msra.mxu0 %v2284
        %2807 = vmatprep.subr.bf16.mxu0 %v2287
        %2808 = vmatpush1.bf16.msra.mxu0 %v2286
        %2809 = vmatprep.subr.bf16.mxu0 %v2289
        %2810 = vmatpush1.bf16.msra.mxu0 %v2288
        %2811 = vmatprep.subr.bf16.mxu0 %v2291
        %2812 = vmatpush1.bf16.msra.mxu0 %v2290
        %2813 = vmatprep.subr.bf16.mxu0 %v2293
        %2814 = vmatpush1.bf16.msra.mxu0 %v2292
        %2815 = vmatprep.subr.bf16.mxu0 %v2295
        %2816 = vmatpush1.bf16.msra.mxu0 %v2294
        %2817 = vmatprep.subr.bf16.mxu0 %v2297
        %2818 = vmatpush1.bf16.msra.mxu0 %v2296
        %2819 = vmatprep.subr.bf16.mxu0 %v2299
        %2820 = vmatpush1.bf16.msra.mxu0 %v2298
        %2821 = vmatprep.subr.bf16.mxu0 %v2301
        %2822 = vmatpush1.bf16.msra.mxu0 %v2300
        %2823 = vmatprep.subr.bf16.mxu0 %v2303
        %2824 = vmatpush1.bf16.msra.mxu0 %v2302
        %2825 = vmatprep.subr.bf16.mxu0 %v2305
        %2826 = vmatpush1.bf16.msra.mxu0 %v2304
        %2827 = vmatprep.mubr.bf16.mxu0 %v1445
        %2828 = vmatmul.mubr.bf16.gmra.mrb[0].mxu0 %v1444
        %v2829 = vpop.f32.mrb[0].mxu0
        %v2830 = vadd.f32 %v2789, %v2829
        %v2831 = vpop.f32.mrb[0].mxu0
        %v2832 = vadd.f32 %v2791, %v2831
        %v2833 = vpop.f32.mrb[0].mxu0
        %v2834 = vpop.f32.mrb[0].mxu0
        %2835 = vdwg.mxu0
        %2836 = vmatprep.subr.bf16.mxu0 %v2307
        %2837 = vmatpush1.bf16.msra.mxu0 %v2306
        %2838 = vmatprep.subr.bf16.mxu0 %v2309
        %2839 = vmatpush1.bf16.msra.mxu0 %v2308
        %2840 = vmatprep.subr.bf16.mxu0 %v2311
        %2841 = vmatpush1.bf16.msra.mxu0 %v2310
        %2842 = vmatprep.subr.bf16.mxu0 %v2313
        %2843 = vmatpush1.bf16.msra.mxu0 %v2312
        %2844 = vmatprep.subr.bf16.mxu0 %v2315
        %2845 = vmatpush1.bf16.msra.mxu0 %v2314
        %2846 = vmatprep.subr.bf16.mxu0 %v2317
        %2847 = vmatpush1.bf16.msra.mxu0 %v2316
        %2848 = vmatprep.subr.bf16.mxu0 %v2319
        %2849 = vmatpush1.bf16.msra.mxu0 %v2318
        %2850 = vmatprep.subr.bf16.mxu0 %v2321
        %2851 = vmatpush1.bf16.msra.mxu0 %v2320
        %2852 = vmatprep.subr.bf16.mxu0 %v2323
        %2853 = vmatpush1.bf16.msra.mxu0 %v2322
        %2854 = vmatprep.subr.bf16.mxu0 %v2325
        %2855 = vmatpush1.bf16.msra.mxu0 %v2324
        %2856 = vmatprep.subr.bf16.mxu0 %v2327
        %2857 = vmatpush1.bf16.msra.mxu0 %v2326
        %2858 = vmatprep.subr.bf16.mxu0 %v2329
        %2859 = vmatpush1.bf16.msra.mxu0 %v2328
        %2860 = vmatprep.subr.bf16.mxu0 %v2331
        %2861 = vmatpush1.bf16.msra.mxu0 %v2330
        %2862 = vmatprep.subr.bf16.mxu0 %v2333
        %2863 = vmatpush1.bf16.msra.mxu0 %v2332
        %2864 = vmatprep.subr.bf16.mxu0 %v2335
        %2865 = vmatpush1.bf16.msra.mxu0 %v2334
        %2866 = vmatprep.subr.bf16.mxu0 %v2337
        %2867 = vmatpush1.bf16.msra.mxu0 %v2336
        %2868 = vmatprep.mubr.bf16.mxu0 %v1447
        %2869 = vmatmul.mubr.bf16.gmra.mrb[0].mxu0 %v1446
        %v2870 = vpop.f32.mrb[0].mxu0
        %v2871 = vadd.f32 %v2830, %v2870
        %v2872 = vpop.f32.mrb[0].mxu0
        %v2873 = vadd.f32 %v2832, %v2872
        %v2874 = vpop.f32.mrb[0].mxu0
        %v2875 = vpop.f32.mrb[0].mxu0
        %2876 = vdwg.mxu0
        %2877 = vmatprep.subr.bf16.mxu0 %v2339
        %2878 = vmatpush1.bf16.msra.mxu0 %v2338
        %2879 = vmatprep.subr.bf16.mxu0 %v2341
        %2880 = vmatpush1.bf16.msra.mxu0 %v2340
        %2881 = vmatprep.subr.bf16.mxu0 %v2343
        %2882 = vmatpush1.bf16.msra.mxu0 %v2342
        %2883 = vmatprep.subr.bf16.mxu0 %v2345
        %2884 = vmatpush1.bf16.msra.mxu0 %v2344
        %2885 = vmatprep.subr.bf16.mxu0 %v2347
        %2886 = vmatpush1.bf16.msra.mxu0 %v2346
        %2887 = vmatprep.subr.bf16.mxu0 %v2349
        %2888 = vmatpush1.bf16.msra.mxu0 %v2348
        %2889 = vmatprep.subr.bf16.mxu0 %v2351
        %2890 = vmatpush1.bf16.msra.mxu0 %v2350
        %2891 = vmatprep.subr.bf16.mxu0 %v2353
        %2892 = vmatpush1.bf16.msra.mxu0 %v2352
        %2893 = vmatprep.subr.bf16.mxu0 %v2355
        %2894 = vmatpush1.bf16.msra.mxu0 %v2354
        %2895 = vmatprep.subr.bf16.mxu0 %v2357
        %2896 = vmatpush1.bf16.msra.mxu0 %v2356
        %2897 = vmatprep.subr.bf16.mxu0 %v2359
        %2898 = vmatpush1.bf16.msra.mxu0 %v2358
        %2899 = vmatprep.subr.bf16.mxu0 %v2361
        %2900 = vmatpush1.bf16.msra.mxu0 %v2360
        %2901 = vmatprep.subr.bf16.mxu0 %v2363
        %2902 = vmatpush1.bf16.msra.mxu0 %v2362
        %2903 = vmatprep.subr.bf16.mxu0 %v2365
        %2904 = vmatpush1.bf16.msra.mxu0 %v2364
        %2905 = vmatprep.subr.bf16.mxu0 %v2367
        %2906 = vmatpush1.bf16.msra.mxu0 %v2366
        %2907 = vmatprep.subr.bf16.mxu0 %v2369
        %2908 = vmatpush1.bf16.msra.mxu0 %v2368
        %2909 = vmatprep.mubr.bf16.mxu0 %v1449
        %2910 = vmatmul.mubr.bf16.gmra.mrb[0].mxu0 %v1448
        %v2911 = vpop.f32.mrb[0].mxu0
        %v2912 = vadd.f32 %v2871, %v2911
        %v2913 = vpop.f32.mrb[0].mxu0
        %v2914 = vadd.f32 %v2873, %v2913
        %v2915 = vpop.f32.mrb[0].mxu0
        %v2916 = vpop.f32.mrb[0].mxu0
        %2917 = vdwg.mxu0
        %2918 = vmatprep.subr.bf16.mxu0 %v2371
        %2919 = vmatpush1.bf16.msra.mxu0 %v2370
        %2920 = vmatprep.subr.bf16.mxu0 %v2373
        %2921 = vmatpush1.bf16.msra.mxu0 %v2372
        %2922 = vmatprep.subr.bf16.mxu0 %v2375
        %2923 = vmatpush1.bf16.msra.mxu0 %v2374
        %2924 = vmatprep.subr.bf16.mxu0 %v2377
        %2925 = vmatpush1.bf16.msra.mxu0 %v2376
        %2926 = vmatprep.subr.bf16.mxu0 %v2379
        %2927 = vmatpush1.bf16.msra.mxu0 %v2378
        %2928 = vmatprep.subr.bf16.mxu0 %v2381
        %2929 = vmatpush1.bf16.msra.mxu0 %v2380
        %2930 = vmatprep.subr.bf16.mxu0 %v2383
        %2931 = vmatpush1.bf16.msra.mxu0 %v2382
        %2932 = vmatprep.subr.bf16.mxu0 %v2385
        %2933 = vmatpush1.bf16.msra.mxu0 %v2384
        %2934 = vmatprep.subr.bf16.mxu0 %v2387
        %2935 = vmatpush1.bf16.msra.mxu0 %v2386
        %2936 = vmatprep.subr.bf16.mxu0 %v2389
        %2937 = vmatpush1.bf16.msra.mxu0 %v2388
        %2938 = vmatprep.subr.bf16.mxu0 %v2391
        %2939 = vmatpush1.bf16.msra.mxu0 %v2390
        %2940 = vmatprep.subr.bf16.mxu0 %v2393
        %2941 = vmatpush1.bf16.msra.mxu0 %v2392
        %2942 = vmatprep.subr.bf16.mxu0 %v2395
        %2943 = vmatpush1.bf16.msra.mxu0 %v2394
        %2944 = vmatprep.subr.bf16.mxu0 %v2397
        %2945 = vmatpush1.bf16.msra.mxu0 %v2396
        %2946 = vmatprep.subr.bf16.mxu0 %v2399
        %2947 = vmatpush1.bf16.msra.mxu0 %v2398
        %2948 = vmatprep.subr.bf16.mxu0 %v2401
        %2949 = vmatpush1.bf16.msra.mxu0 %v2400
        %2950 = vmatprep.mubr.bf16.mxu0 %v1451
        %2951 = vmatmul.mubr.bf16.gmra.mrb[0].mxu0 %v1450
        %v2952 = vpop.f32.mrb[0].mxu0
        %v2953 = vadd.f32 %v2912, %v2952
        %v2954 = vpop.f32.mrb[0].mxu0
        %v2955 = vadd.f32 %v2914, %v2954
        %v2956 = vpop.f32.mrb[0].mxu0
        %v2957 = vpop.f32.mrb[0].mxu0
        %2958 = vdwg.mxu0
        %2959 = vmatprep.subr.bf16.mxu0 %v2403
        %2960 = vmatpush1.bf16.msra.mxu0 %v2402
        %2961 = vmatprep.subr.bf16.mxu0 %v2405
        %2962 = vmatpush1.bf16.msra.mxu0 %v2404
        %2963 = vmatprep.subr.bf16.mxu0 %v2407
        %2964 = vmatpush1.bf16.msra.mxu0 %v2406
        %2965 = vmatprep.subr.bf16.mxu0 %v2409
        %2966 = vmatpush1.bf16.msra.mxu0 %v2408
        %2967 = vmatprep.subr.bf16.mxu0 %v2411
        %2968 = vmatpush1.bf16.msra.mxu0 %v2410
        %2969 = vmatprep.subr.bf16.mxu0 %v2413
        %2970 = vmatpush1.bf16.msra.mxu0 %v2412
        %2971 = vmatprep.subr.bf16.mxu0 %v2415
        %2972 = vmatpush1.bf16.msra.mxu0 %v2414
        %2973 = vmatprep.subr.bf16.mxu0 %v2417
        %2974 = vmatpush1.bf16.msra.mxu0 %v2416
        %2975 = vmatprep.subr.bf16.mxu0 %v2419
        %2976 = vmatpush1.bf16.msra.mxu0 %v2418
        %2977 = vmatprep.subr.bf16.mxu0 %v2421
        %2978 = vmatpush1.bf16.msra.mxu0 %v2420
        %2979 = vmatprep.subr.bf16.mxu0 %v2423
        %2980 = vmatpush1.bf16.msra.mxu0 %v2422
        %2981 = vmatprep.subr.bf16.mxu0 %v2425
        %2982 = vmatpush1.bf16.msra.mxu0 %v2424
        %2983 = vmatprep.subr.bf16.mxu0 %v2427
        %2984 = vmatpush1.bf16.msra.mxu0 %v2426
        %2985 = vmatprep.subr.bf16.mxu0 %v2429
        %2986 = vmatpush1.bf16.msra.mxu0 %v2428
        %2987 = vmatprep.subr.bf16.mxu0 %v2431
        %2988 = vmatpush1.bf16.msra.mxu0 %v2430
        %2989 = vmatprep.subr.bf16.mxu0 %v2433
        %2990 = vmatpush1.bf16.msra.mxu0 %v2432
        %2991 = vmatprep.mubr.bf16.mxu0 %v1453
        %2992 = vmatmul.mubr.bf16.gmra.mrb[0].mxu0 %v1452
        %v2993 = vpop.f32.mrb[0].mxu0
        %v2994 = vadd.f32 %v2953, %v2993
        %v2995 = vpop.f32.mrb[0].mxu0
        %v2996 = vadd.f32 %v2955, %v2995
        %v2997 = vpop.f32.mrb[0].mxu0
        %v2998 = vpop.f32.mrb[0].mxu0
        %2999 = vdwg.mxu0
        %3000 = vmatprep.subr.bf16.mxu0 %v2435
        %3001 = vmatpush1.bf16.msra.mxu0 %v2434
        %3002 = vmatprep.subr.bf16.mxu0 %v2437
        %3003 = vmatpush1.bf16.msra.mxu0 %v2436
        %3004 = vmatprep.subr.bf16.mxu0 %v2439
        %3005 = vmatpush1.bf16.msra.mxu0 %v2438
        %3006 = vmatprep.subr.bf16.mxu0 %v2441
        %3007 = vmatpush1.bf16.msra.mxu0 %v2440
        %3008 = vmatprep.subr.bf16.mxu0 %v2443
        %3009 = vmatpush1.bf16.msra.mxu0 %v2442
        %3010 = vmatprep.subr.bf16.mxu0 %v2445
        %3011 = vmatpush1.bf16.msra.mxu0 %v2444
        %3012 = vmatprep.subr.bf16.mxu0 %v2447
        %3013 = vmatpush1.bf16.msra.mxu0 %v2446
        %3014 = vmatprep.subr.bf16.mxu0 %v2449
        %3015 = vmatpush1.bf16.msra.mxu0 %v2448
        %3016 = vmatprep.subr.bf16.mxu0 %v2451
        %3017 = vmatpush1.bf16.msra.mxu0 %v2450
        %3018 = vmatprep.subr.bf16.mxu0 %v2453
        %3019 = vmatpush1.bf16.msra.mxu0 %v2452
        %3020 = vmatprep.subr.bf16.mxu0 %v2455
        %3021 = vmatpush1.bf16.msra.mxu0 %v2454
        %3022 = vmatprep.subr.bf16.mxu0 %v2457
        %3023 = vmatpush1.bf16.msra.mxu0 %v2456
        %3024 = vmatprep.subr.bf16.mxu0 %v2459
        %3025 = vmatpush1.bf16.msra.mxu0 %v2458
        %3026 = vmatprep.subr.bf16.mxu0 %v2461
        %3027 = vmatpush1.bf16.msra.mxu0 %v2460
        %3028 = vmatprep.subr.bf16.mxu0 %v2463
        %3029 = vmatpush1.bf16.msra.mxu0 %v2462
        %3030 = vmatprep.subr.bf16.mxu0 %v2465
        %3031 = vmatpush1.bf16.msra.mxu0 %v2464
        %3032 = vmatprep.mubr.bf16.mxu0 %v1455
        %3033 = vmatmul.mubr.bf16.gmra.mrb[0].mxu0 %v1454
        %v3034 = vpop.f32.mrb[0].mxu0
        %v3035 = vadd.f32 %v2994, %v3034
        %v3036 = vpop.f32.mrb[0].mxu0
        %v3037 = vadd.f32 %v2996, %v3036
        %v3038 = vpop.f32.mrb[0].mxu0
        %v3039 = vpop.f32.mrb[0].mxu0
        %3040 = vdwg.mxu0
        %3041 = vmatprep.subr.bf16.mxu0 %v2467
        %3042 = vmatpush1.bf16.msra.mxu0 %v2466
        %3043 = vmatprep.subr.bf16.mxu0 %v2469
        %3044 = vmatpush1.bf16.msra.mxu0 %v2468
        %3045 = vmatprep.subr.bf16.mxu0 %v2471
        %3046 = vmatpush1.bf16.msra.mxu0 %v2470
        %3047 = vmatprep.subr.bf16.mxu0 %v2473
        %3048 = vmatpush1.bf16.msra.mxu0 %v2472
        %3049 = vmatprep.subr.bf16.mxu0 %v2475
        %3050 = vmatpush1.bf16.msra.mxu0 %v2474
        %3051 = vmatprep.subr.bf16.mxu0 %v2477
        %3052 = vmatpush1.bf16.msra.mxu0 %v2476
        %3053 = vmatprep.subr.bf16.mxu0 %v2479
        %3054 = vmatpush1.bf16.msra.mxu0 %v2478
        %3055 = vmatprep.subr.bf16.mxu0 %v2481
        %3056 = vmatpush1.bf16.msra.mxu0 %v2480
        %3057 = vmatprep.subr.bf16.mxu0 %v2483
        %3058 = vmatpush1.bf16.msra.mxu0 %v2482
        %3059 = vmatprep.subr.bf16.mxu0 %v2485
        %3060 = vmatpush1.bf16.msra.mxu0 %v2484
        %3061 = vmatprep.subr.bf16.mxu0 %v2487
        %3062 = vmatpush1.bf16.msra.mxu0 %v2486
        %3063 = vmatprep.subr.bf16.mxu0 %v2489
        %3064 = vmatpush1.bf16.msra.mxu0 %v2488
        %3065 = vmatprep.subr.bf16.mxu0 %v2491
        %3066 = vmatpush1.bf16.msra.mxu0 %v2490
        %3067 = vmatprep.subr.bf16.mxu0 %v2493
        %3068 = vmatpush1.bf16.msra.mxu0 %v2492
        %3069 = vmatprep.subr.bf16.mxu0 %v2495
        %3070 = vmatpush1.bf16.msra.mxu0 %v2494
        %3071 = vmatprep.subr.bf16.mxu0 %v2497
        %3072 = vmatpush1.bf16.msra.mxu0 %v2496
        %3073 = vmatprep.mubr.bf16.mxu0 %v1457
        %3074 = vmatmul.mubr.bf16.gmra.mrb[0].mxu0 %v1456
        %v3075 = vpop.f32.mrb[0].mxu0
        %v3076 = vadd.f32 %v3035, %v3075
        %v3077 = vpop.f32.mrb[0].mxu0
        %v3078 = vadd.f32 %v3037, %v3077
        %v3079 = vpop.f32.mrb[0].mxu0
        %v3080 = vpop.f32.mrb[0].mxu0
        %3081 = vdwg.mxu0
        %v3082 = vmax.f32 %v3076, 0.0
        %v3083 = vmax.f32 %v3078, 0.0
        %v3084 = vld [vmem:[%s423] sm:$0xff]
        %v3085 = vpack.c.bf16 %v3082, %v3082
        %v3086 = vpack.c.bf16 %v3083, %v3083
        %v3087 = vld [vmem:[%s383] sm:$0xf]
        %v3088 = vld [vmem:[%s383 + $0x4] sm:$0xf]
        %v3089 = vld [vmem:[%s383 + $0x8] sm:$0xf]
        %v3090 = vld [vmem:[%s383 + $0xc] sm:$0xf]
        %v3091 = vld [vmem:[%s383 + $0x10] sm:$0xf]
        %v3092 = vld [vmem:[%s383 + $0x14] sm:$0xf]
        %v3093 = vld [vmem:[%s383 + $0x18] sm:$0xf]
        %v3094 = vld [vmem:[%s383 + $0x1c] sm:$0xf]
        %v3095 = vld [vmem:[%s383 + $0x20] sm:$0xf]
        %v3096 = vld [vmem:[%s383 + $0x24] sm:$0xf]
        %v3097 = vld [vmem:[%s383 + $0x28] sm:$0xf]
        %v3098 = vld [vmem:[%s383 + $0x2c] sm:$0xf]
        %v3099 = vld [vmem:[%s383 + $0x30] sm:$0xf]
        %v3100 = vld [vmem:[%s383 + $0x34] sm:$0xf]
        %v3101 = vld [vmem:[%s383 + $0x38] sm:$0xf]
        %v3102 = vld [vmem:[%s383 + $0x3c] sm:$0xf]
        %v3103 = vld [vmem:[%s383 + $0x40] sm:$0xf]
        %v3104 = vld [vmem:[%s383 + $0x44] sm:$0xf]
        %v3105 = vld [vmem:[%s383 + $0x48] sm:$0xf]
        %v3106 = vld [vmem:[%s383 + $0x4c] sm:$0xf]
        %v3107 = vld [vmem:[%s383 + $0x50] sm:$0xf]
        %v3108 = vld [vmem:[%s383 + $0x54] sm:$0xf]
        %v3109 = vld [vmem:[%s383 + $0x58] sm:$0xf]
        %v3110 = vld [vmem:[%s383 + $0x5c] sm:$0xf]
        %v3111 = vld [vmem:[%s383 + $0x60] sm:$0xf]
        %v3112 = vld [vmem:[%s383 + $0x64] sm:$0xf]
        %v3113 = vld [vmem:[%s383 + $0x68] sm:$0xf]
        %v3114 = vld [vmem:[%s383 + $0x6c] sm:$0xf]
        %v3115 = vld [vmem:[%s383 + $0x70] sm:$0xf]
        %v3116 = vld [vmem:[%s383 + $0x74] sm:$0xf]
        %v3117 = vld [vmem:[%s383 + $0x78] sm:$0xf]
        %v3118 = vld [vmem:[%s383 + $0x7c] sm:$0xf]
        %v3151 = vunpack.c.l.b16 %v3087
        %v3152 = vunpack.c.l.b16 %v3088
        %v3153 = vunpack.c.l.b16 %v3089
        %v3154 = vunpack.c.l.b16 %v3090
        %v3155 = vunpack.c.l.b16 %v3091
        %v3156 = vunpack.c.l.b16 %v3092
        %v3157 = vunpack.c.l.b16 %v3093
        %v3158 = vunpack.c.l.b16 %v3094
        %v3159 = vunpack.c.l.b16 %v3095
        %v3160 = vunpack.c.l.b16 %v3096
        %v3161 = vunpack.c.l.b16 %v3097
        %v3162 = vunpack.c.l.b16 %v3098
        %v3163 = vunpack.c.l.b16 %v3099
        %v3164 = vunpack.c.l.b16 %v3100
        %v3165 = vunpack.c.l.b16 %v3101
        %v3166 = vunpack.c.l.b16 %v3102
        %v3167 = vunpack.c.l.b16 %v3103
        %v3168 = vunpack.c.l.b16 %v3104
        %v3169 = vunpack.c.l.b16 %v3105
        %v3170 = vunpack.c.l.b16 %v3106
        %v3171 = vunpack.c.l.b16 %v3107
        %v3172 = vunpack.c.l.b16 %v3108
        %v3173 = vunpack.c.l.b16 %v3109
        %v3174 = vunpack.c.l.b16 %v3110
        %v3175 = vunpack.c.l.b16 %v3111
        %v3176 = vunpack.c.l.b16 %v3112
        %v3177 = vunpack.c.l.b16 %v3113
        %v3178 = vunpack.c.l.b16 %v3114
        %v3179 = vunpack.c.l.b16 %v3115
        %v3180 = vunpack.c.l.b16 %v3116
        %v3181 = vunpack.c.l.b16 %v3117
        %v3182 = vunpack.c.l.b16 %v3118
        %v3183 = vpack.c.b16 %v3152, %v3151
        %v3184 = vpack.c.b16 %v3154, %v3153
        %v3185 = vpack.c.b16 %v3156, %v3155
        %v3186 = vpack.c.b16 %v3158, %v3157
        %v3187 = vpack.c.b16 %v3160, %v3159
        %v3188 = vpack.c.b16 %v3162, %v3161
        %v3189 = vpack.c.b16 %v3164, %v3163
        %v3190 = vpack.c.b16 %v3166, %v3165
        %v3191 = vpack.c.b16 %v3168, %v3167
        %v3192 = vpack.c.b16 %v3170, %v3169
        %v3193 = vpack.c.b16 %v3172, %v3171
        %v3194 = vpack.c.b16 %v3174, %v3173
        %v3195 = vpack.c.b16 %v3176, %v3175
        %v3196 = vpack.c.b16 %v3178, %v3177
        %v3197 = vpack.c.b16 %v3180, %v3179
        %v3198 = vpack.c.b16 %v3182, %v3181
        %3215 = vmatprep.subr.bf16.mxu0 0
        %3216 = vmatpush1.bf16.msra.mxu0 %v3183
        %3217 = vmatprep.subr.bf16.mxu0 0
        %3218 = vmatpush1.bf16.msra.mxu0 %v3184
        %3219 = vmatprep.subr.bf16.mxu0 0
        %3220 = vmatpush1.bf16.msra.mxu0 %v3185
        %3221 = vmatprep.subr.bf16.mxu0 0
        %3222 = vmatpush1.bf16.msra.mxu0 %v3186
        %3223 = vmatprep.subr.bf16.mxu0 0
        %3224 = vmatpush1.bf16.msra.mxu0 %v3187
        %3225 = vmatprep.subr.bf16.mxu0 0
        %3226 = vmatpush1.bf16.msra.mxu0 %v3188
        %3227 = vmatprep.subr.bf16.mxu0 0
        %3228 = vmatpush1.bf16.msra.mxu0 %v3189
        %3229 = vmatprep.subr.bf16.mxu0 0
        %3230 = vmatpush1.bf16.msra.mxu0 %v3190
        %3231 = vmatprep.subr.bf16.mxu0 0
        %3232 = vmatpush1.bf16.msra.mxu0 %v3191
        %3233 = vmatprep.subr.bf16.mxu0 0
        %3234 = vmatpush1.bf16.msra.mxu0 %v3192
        %3235 = vmatprep.subr.bf16.mxu0 0
        %3236 = vmatpush1.bf16.msra.mxu0 %v3193
        %3237 = vmatprep.subr.bf16.mxu0 0
        %3238 = vmatpush1.bf16.msra.mxu0 %v3194
        %3239 = vmatprep.subr.bf16.mxu0 0
        %3240 = vmatpush1.bf16.msra.mxu0 %v3195
        %3241 = vmatprep.subr.bf16.mxu0 0
        %3242 = vmatpush1.bf16.msra.mxu0 %v3196
        %3243 = vmatprep.subr.bf16.mxu0 0
        %3244 = vmatpush1.bf16.msra.mxu0 %v3197
        %3245 = vmatprep.subr.bf16.mxu0 0
        %3246 = vmatpush1.bf16.msra.mxu0 %v3198
        %3247 = vmatprep.mubr.bf16.mxu0 %v3086
        %3248 = vmatmul.mubr.bf16.gmra.mrb[0].mxu0 %v3085
        %v3249 = vpop.f32.mrb[0].mxu0
        %v3250 = vadd.f32 0.0, %v3249
        %v3251 = vpop.f32.mrb[0].mxu0
        %v3252 = vpop.f32.mrb[0].mxu0
        %v3253 = vpop.f32.mrb[0].mxu0
        %3254 = vdwg.mxu0
        %v3255 = vadd.f32 %v3084, %v3250
        %3256 = vst [vmem:[%s423] sm:$0xff] %v3255
        %s3257 = sand.u32 %s217, 1
        %s3258 = scalar_lea.sflag [#allocation5], %s3257
        %s3259 = sand.u32 %s217, 1
        %s3260 = smul.addr %s3259, 8
        %s3261 = scalar_lea.vmem [#allocation11], %s3260
        // Predicated region
        $region73: #{tpu_custom_call.1} parent=47 // pred_check
          %p3262 = pneg %p227
        $region74: #{tpu_custom_call.1} parent=47 // pred_check_branch
          %3264 = sbr.rel (%p3262) target = $region76
        $region75: #{tpu_custom_call.1} parent=47 // pred_region
          %s3266 = ssub.s32 128, 128
          %3267 = vsyncadd %s3258, %s3266
          %s3268 = smul.addr %s27, 128
          %s3269 = scalar_lea.hbm %s7, %s3268
          %s3271 = sshll.u32 %s3261, 4
          %s3272 = int_to_ptr.vmem [resolvable:$true] %s3271
          %3274 = dma.vmem_to_hbm [thread:$0]  %s3272, 128, %s3269, %s3258
        $region76: #{tpu_custom_call.1} parent=47 // pred_fallthru
          _
      $region48: #{tpu_custom_call.1} parent=5 // pred_fallthru
        _
      %p3275 = scmp.le.s32.totalorder 2, %s18
      // Predicated region
      $region77: #{tpu_custom_call.1} parent=5 // pred_check
        %p3276 = pneg %p3275
      $region78: #{tpu_custom_call.1} parent=5 // pred_check_branch
        %3278 = sbr.rel (%p3276) target = $region80
      $region79: #{tpu_custom_call.1} parent=5 // pred_region
        %s3279 = ssub.s32 %s18, 2
        // Predicated region
        $region81: #{tpu_custom_call.1} parent=79 // pred_check
          %p3280 = pneg %p233
        $region82: #{tpu_custom_call.1} parent=79 // pred_check_branch
          %3282 = sbr.rel (%p3280) target = $region84
        $region83: #{tpu_custom_call.1} parent=79 // pred_region
          %s3283 = sand.u32 %s218, 1
          %s3284 = scalar_lea.sflag [#allocation5], %s3283
          %s3285 = sand.u32 %s218, 1
          %s3286 = smul.addr %s3285, 8
          %s3287 = scalar_lea.vmem [#allocation11], %s3286
          %3288 = dma.done %s3284, 128
        $region84: #{tpu_custom_call.1} parent=79 // pred_fallthru
          _
      $region80: #{tpu_custom_call.1} parent=5 // pred_fallthru
        _
    $region6: #{tpu_custom_call.1} parent=1 // loop_footer
      %s22 = sadd.s32 1, %s18
    $region7: #{tpu_custom_call.1} parent=1 // loop_footer_branch
      %17 = sbr.rel target = $region3
    $region8: #{tpu_custom_call.1} parent=1 // loop_exit
      _
    %3289 = vsyncpa [#allocation4], 1
    %s3290 = scalar_lea.sflag [#allocation4], 1
    %3291 = vsyncpa %s3290, 1
    %3292 = vsyncpa [#allocation7], 1
    %3293 = vsyncpa [#allocation5], 1
    %s3294 = scalar_lea.sflag [#allocation5], 1
    %3295 = vsyncpa %s3294, 1

</llo_original>
